<compile_context>
chip_gen: v7x
topology: tpu7x:2x2x1
jax: 0.10.0
libtpu: 0.0.40
codegen_flags: <defaults>
</compile_context>

<pallas_src>
import functools

import jax
import jax.numpy as jnp
import numpy as np
from jax.experimental import pallas as pl
from jax.experimental.pallas import tpu as pltpu

NEG_INF = -9e15
LEAKY_ALPHA = 0.01  # matches GAT(..., alpha=0.01) default in the module


def _elu(x):
    # ELU(alpha=1): same helper used by kernel and reference.
    return jnp.where(x > 0, x, jnp.exp(jnp.minimum(x, 0.0)) - 1.0)


def _pick_block_bs(bs, n_nodes):
    """Batch elements per grid step: fill ~128 MXU rows, keep >=2 grid steps."""
    target = max(1, 128 // max(n_nodes, 1))
    bt = max(1, min(bs, target))
    if bs >= 2:
        bt = min(bt, bs // 2)           # >= 2 parallel steps for v7x's 2 TCs
    bt = max(bt, 1)
    while bs % bt:
        bt -= 1
    if (bt * n_nodes) % 8 and bt != bs:  # keep BlockSpec sublane dim 8-aligned
        bt = bs
    return bt


# ---------- Fused kernel: Bt graphs, all heads + output projection ----------
def gat_fused_kernel(x_ref, w_ref, a_ref, bias_ref, wo_ref, bo_ref, o_ref,
                     cat_ref, *, block_bs, n_nodes, nheads, nhid):
    N, D = n_nodes, nhid

    # All heads' projections for all Bt graphs in one wide MXU matmul.
    # x_ref: (Bt*N, F) bf16, w_ref: (F, H) bf16, H = nheads*nhid.
    Wh = jnp.dot(x_ref[...], w_ref[...], preferred_element_type=jnp.float32)
    Wh_bf = Wh.astype(jnp.bfloat16)                        # reused by every head

    # All heads' attention-logit vectors in one MXU push against the
    # block-diagonal [A1 | A2] matrix:  column hd -> f1 of head hd,
    # column nheads+hd -> f2 of head hd.
    Fmat = jnp.dot(Wh_bf, a_ref[...], preferred_element_type=jnp.float32)

    # Hoisted: ONE sublane<->lane transpose per grid step for all f2 vectors.
    F2T = Fmat[:, nheads:].T                               # (nheads, Bt*N)

    # Additive mask bias (0 / NEG_INF), shipped bf16, used in f32.
    bias_all = bias_ref[...].astype(jnp.float32)           # (Bt*N, N)

    for b in range(block_bs):                              # unrolled at trace time
        r0 = b * N
        Whb = Wh_bf[r0:r0 + N, :]                          # (N, H) bf16
        Fb = Fmat[r0:r0 + N, :]                            # (N, 2*nheads) f32
        bias_b = bias_all[r0:r0 + N, :]                    # (N, N)
        for hd in range(nheads):
            Wh_h = Whb[:, hd * D:(hd + 1) * D]             # (N, D) bf16
            # e[i, j] = f1[i] + f2[j]
            e = Fb[:, hd:hd + 1] + F2T[hd:hd + 1, r0:r0 + N]
            e = jnp.where(e > 0, e, LEAKY_ALPHA * e)       # LeakyReLU(alpha)
            att = e + bias_b                               # masked logits
            # torch softmax(dim=1) on (bs, N, N) == axis 0 of this per-graph tile
            m = jnp.max(att, axis=0, keepdims=True)
            p = jnp.exp(att - m)
            inv = pl.reciprocal(jnp.sum(p, axis=0, keepdims=True), approx=True)
            hp = jnp.dot((p * inv).astype(jnp.bfloat16), Wh_h,
                         preferred_element_type=jnp.float32)   # (N, D)
            # concat=True -> ELU; write straight into the VMEM concat scratch
            cat_ref[r0:r0 + N, hd * D:(hd + 1) * D] = _elu(hp).astype(jnp.bfloat16)

    # Output linear + ELU + log_softmax(dim=-1), fused in the same kernel.
    y = jnp.dot(cat_ref[...], wo_ref[...],
                preferred_element_type=jnp.float32) + bo_ref[...]
    y = _elu(y)
    m = jnp.max(y, axis=-1, keepdims=True)
    z = y - m
    o_ref[...] = z - jnp.log(jnp.sum(jnp.exp(z), axis=-1, keepdims=True))


# ---------------- Wrapper ----------------
def gat_forward(x, attn_mask, W_all, a_all, W_out, b_out, *, block_bs=None):
    bs, N, F_in = x.shape
    nheads, _, D = W_all.shape
    H = nheads * D
    C = W_out.shape[1]

    if block_bs is None:
        block_bs = _pick_block_bs(bs, N)
    assert bs % block_bs == 0
    grid_b = bs // block_bs

    # Fuse per-head projection matrices: columns hd*D:(hd+1)*D of W2d = W_all[hd].
    W2d = jnp.transpose(W_all, (1, 0, 2)).reshape(F_in, H).astype(jnp.bfloat16)

    # Block-diagonal attention-vector matrix (H, 2*nheads): [A1 | A2].
    a1 = a_all[:, :D, 0]                                   # (nheads, D)
    a2 = a_all[:, D:, 0]                                   # (nheads, D)
    eye = jnp.eye(nheads, dtype=jnp.float32)
    A1 = (a1[:, :, None] * eye[:, None, :]).reshape(H, nheads)
    A2 = (a2[:, :, None] * eye[:, None, :]).reshape(H, nheads)
    A_cat = jnp.concatenate([A1, A2], axis=1).astype(jnp.bfloat16)

    # Batch folded into the sublane axis -> all kernel tensors are 2D.
    x2 = x.reshape(bs * N, F_in).astype(jnp.bfloat16)
    # Additive 0 / NEG_INF bias shipped in bf16 (halves the only N^2 HBM term).
    bias2 = jnp.where(attn_mask > 0, 0.0, NEG_INF).astype(jnp.bfloat16)
    bias2 = bias2.reshape(bs * N, N)
    Wo_bf = W_out.astype(jnp.bfloat16)
    bo = b_out.reshape(1, C).astype(jnp.float32)

    out2 = pl.pallas_call(
        functools.partial(gat_fused_kernel, block_bs=block_bs, n_nodes=N,
                          nheads=nheads, nhid=D),
        out_shape=jax.ShapeDtypeStruct((bs * N, C), jnp.float32),
        grid=(grid_b,),
        in_specs=[
            pl.BlockSpec((block_bs * N, F_in), lambda b: (b, 0)),   # x (per block)
            pl.BlockSpec((F_in, H), lambda b: (0, 0)),              # W2d (resident)
            pl.BlockSpec((H, 2 * nheads), lambda b: (0, 0)),        # A_cat (resident)
            pl.BlockSpec((block_bs * N, N), lambda b: (b, 0)),      # mask bias (per block)
            pl.BlockSpec((H, C), lambda b: (0, 0)),                 # W_out (resident)
            pl.BlockSpec((1, C), lambda b: (0, 0)),                 # b_out (resident)
        ],
        out_specs=pl.BlockSpec((block_bs * N, C), lambda b: (b, 0)),
        scratch_shapes=[pltpu.VMEM((block_bs * N, H), jnp.bfloat16)],  # concat buffer
        compiler_params=pltpu.CompilerParams(
            dimension_semantics=("parallel",)),   # >=2 steps -> both v7x TCs busy
    )(x2, W2d, A_cat, bias2, Wo_bf, bo)

    return out2.reshape(bs, N, C)


# ------- Pure-JAX reference (mirrors the kernel's bf16-at-MXU policy) -------
def gat_reference(x, attn_mask, W_all, a_all, W_out, b_out):
    nheads, _, D = W_all.shape
    xb = x.astype(jnp.bfloat16)
    bias = jnp.where(attn_mask > 0, 0.0, NEG_INF).astype(jnp.bfloat16)
    bias = bias.astype(jnp.float32)
    outs = []
    for h in range(nheads):
        Wh = jnp.einsum("bnf,fd->bnd", xb, W_all[h].astype(jnp.bfloat16),
                        preferred_element_type=jnp.float32)
        Whb = Wh.astype(jnp.bfloat16)
        ab = a_all[h].astype(jnp.bfloat16)
        f1 = jnp.einsum("bnd,dk->bnk", Whb, ab[:D], preferred_element_type=jnp.float32)
        f2 = jnp.einsum("bnd,dk->bnk", Whb, ab[D:], preferred_element_type=jnp.float32)
        e = f1 + jnp.swapaxes(f2, 1, 2)
        e = jnp.where(e > 0, e, LEAKY_ALPHA * e)
        att = jax.nn.softmax(e + bias, axis=1)             # torch softmax(dim=1)
        hp = jnp.einsum("bij,bjd->bid", att.astype(jnp.bfloat16), Whb,
                        preferred_element_type=jnp.float32)
        outs.append(_elu(hp))
    xc = jnp.concatenate(outs, axis=2)
    y = jnp.einsum("bnh,hc->bnc", xc.astype(jnp.bfloat16),
                   W_out.astype(jnp.bfloat16),
                   preferred_element_type=jnp.float32) + b_out
    y = _elu(y)
    return jax.nn.log_softmax(y, axis=-1)


def _xavier_uniform(key, shape, gain=1.414):
    fan_in, fan_out = shape[-2], shape[-1]
    bound = gain * np.sqrt(6.0 / (fan_in + fan_out))
    return jax.random.uniform(key, shape, jnp.float32, -bound, bound)


if __name__ == "__main__":
    # Small shapes consistent with the module's forward. bs=8 exercises batch
    # packing (block_bs=4 -> grid of 2 parallel steps).
    bs, N, nfeat, nhid, nheads, nclass = 8, 8, 32, 16, 4, 8

    key = jax.random.PRNGKey(0)
    kx, km, kw, ka, kow, kob = jax.random.split(key, 6)

    x = jax.random.normal(kx, (bs, N, nfeat), jnp.float32)
    attn_mask = jax.random.bernoulli(km, 0.6, (bs, N, N)).astype(jnp.float32)
    attn_mask = jnp.maximum(attn_mask, jnp.eye(N, dtype=jnp.float32)[None])  # keep diagonal

    # Per-head GraphAttentionLayer parameters (deterministic synthetic init)
    W_all = _xavier_uniform(kw, (nheads, nfeat, nhid))            # W: (in, out) per head
    a_all = _xavier_uniform(ka, (nheads, 2 * nhid, 1))            # a: (2*out, 1) per head
    # out_layer = nn.Linear(nhid*nheads, nclass); weight stored already transposed
    W_out = _xavier_uniform(kow, (nhid * nheads, nclass), gain=1.0)
    b_out = jax.random.uniform(kob, (1, nclass), jnp.float32, -0.1, 0.1)

    out = jax.block_until_ready(
        gat_forward(x, attn_mask, W_all, a_all, W_out, b_out))
    ref = jax.block_until_ready(
        gat_reference(x, attn_mask, W_all, a_all, W_out, b_out))

    # Reference mirrors the kernel's bf16-at-MXU policy; residual differences
    # come from the approx softmax reciprocal (~2^-12) and bf16 rounding.
    np.testing.assert_allclose(np.asarray(out), np.asarray(ref), rtol=2e-2, atol=2e-2)
    print("KERNEL_OK")
</pallas_src>

<mosaic_0001>
module attributes {stable_mosaic.version = 11 : i64} {
  func.func @gat_fused_kernel(%arg0: i32, %arg1: memref<32x32xbf16, #tpu.memory_space<vmem>>, %arg2: memref<32x64xbf16, #tpu.memory_space<vmem>>, %arg3: memref<64x8xbf16, #tpu.memory_space<vmem>>, %arg4: memref<32x8xbf16, #tpu.memory_space<vmem>>, %arg5: memref<64x8xbf16, #tpu.memory_space<vmem>>, %arg6: memref<1x8xf32, #tpu.memory_space<vmem>>, %arg7: memref<32x8xf32, #tpu.memory_space<vmem>>, %arg8: memref<32x64xbf16, #tpu.memory_space<vmem>>) attributes {dimension_semantics = [#tpu.dimension_semantics<parallel>], iteration_bounds = array<i64: 2>, scalar_prefetch = 0 : i64, scratch_operands = 1 : i64, tpu.core_type = #tpu.core_type<tc>, window_params = [{transform_indices = @transform_0, window_bounds = array<i64: 32, 32>}, {pipeline_mode = #tpu.pipeline_mode<synchronous>, transform_indices = @transform_1, window_bounds = array<i64: 32, 64>}, {pipeline_mode = #tpu.pipeline_mode<synchronous>, transform_indices = @transform_2, window_bounds = array<i64: 64, 8>}, {transform_indices = @transform_3, window_bounds = array<i64: 32, 8>}, {pipeline_mode = #tpu.pipeline_mode<synchronous>, transform_indices = @transform_4, window_bounds = array<i64: 64, 8>}, {pipeline_mode = #tpu.pipeline_mode<synchronous>, transform_indices = @transform_5, window_bounds = array<i64: 1, 8>}, {transform_indices = @transform_6, window_bounds = array<i64: 32, 8>}]} {
    %c0 = arith.constant 0 : index
    %c0_0 = arith.constant 0 : index
    %0 = vector.load %arg1[%c0, %c0_0] : memref<32x32xbf16, #tpu.memory_space<vmem>>, vector<32x32xbf16>
    %c0_1 = arith.constant 0 : index
    %c0_2 = arith.constant 0 : index
    %1 = vector.load %arg2[%c0_1, %c0_2] : memref<32x64xbf16, #tpu.memory_space<vmem>>, vector<32x64xbf16>
    %cst = arith.constant dense<0.000000e+00> : vector<32x64xf32>
    %2 = tpu.matmul %0, %1, %cst {dimension_numbers = #tpu.dot_dimension_numbers<[1], [0], [0], [1], [0, 0, 1, 1], [], []>} : vector<32x32xbf16>, vector<32x64xbf16>, vector<32x64xf32> -> vector<32x64xf32>
    %3 = arith.truncf %2 : vector<32x64xf32> to vector<32x64xbf16>
    %c0_3 = arith.constant 0 : index
    %c0_4 = arith.constant 0 : index
    %4 = vector.load %arg3[%c0_3, %c0_4] : memref<64x8xbf16, #tpu.memory_space<vmem>>, vector<64x8xbf16>
    %cst_5 = arith.constant dense<0.000000e+00> : vector<32x8xf32>
    %5 = tpu.matmul %3, %4, %cst_5 {dimension_numbers = #tpu.dot_dimension_numbers<[1], [0], [0], [1], [0, 0, 1, 1], [], []>} : vector<32x64xbf16>, vector<64x8xbf16>, vector<32x8xf32> -> vector<32x8xf32>
    %6 = vector.extract_strided_slice %5 {offsets = [0, 4], sizes = [32, 4], strides = [1, 1]} : vector<32x8xf32> to vector<32x4xf32>
    %7 = tpu.transpose %6, [1, 0] : vector<32x4xf32> -> vector<4x32xf32>
    %c0_6 = arith.constant 0 : index
    %c0_7 = arith.constant 0 : index
    %8 = vector.load %arg4[%c0_6, %c0_7] : memref<32x8xbf16, #tpu.memory_space<vmem>>, vector<32x8xbf16>
    %9 = arith.extf %8 : vector<32x8xbf16> to vector<32x8xf32>
    %10 = vector.extract_strided_slice %3 {offsets = [0, 0], sizes = [8, 64], strides = [1, 1]} : vector<32x64xbf16> to vector<8x64xbf16>
    %11 = vector.extract_strided_slice %5 {offsets = [0, 0], sizes = [8, 8], strides = [1, 1]} : vector<32x8xf32> to vector<8x8xf32>
    %12 = vector.extract_strided_slice %9 {offsets = [0, 0], sizes = [8, 8], strides = [1, 1]} : vector<32x8xf32> to vector<8x8xf32>
    %13 = vector.extract_strided_slice %10 {offsets = [0, 0], sizes = [8, 16], strides = [1, 1]} : vector<8x64xbf16> to vector<8x16xbf16>
    %14 = vector.extract_strided_slice %11 {offsets = [0, 0], sizes = [8, 1], strides = [1, 1]} : vector<8x8xf32> to vector<8x1xf32>
    %15 = vector.extract_strided_slice %7 {offsets = [0, 0], sizes = [1, 8], strides = [1, 1]} : vector<4x32xf32> to vector<1x8xf32>
    %16 = vector.broadcast %14 : vector<8x1xf32> to vector<8x8xf32>
    %17 = vector.broadcast %15 : vector<1x8xf32> to vector<8x8xf32>
    %18 = arith.addf %16, %17 : vector<8x8xf32>
    %cst_8 = arith.constant 0.000000e+00 : f32
    %19 = vector.broadcast %cst_8 : f32 to vector<8x8xf32>
    %20 = arith.cmpf ogt, %18, %19 : vector<8x8xf32>
    %cst_9 = arith.constant 0.00999999977 : f32
    %21 = vector.broadcast %cst_9 : f32 to vector<8x8xf32>
    %22 = arith.mulf %21, %18 : vector<8x8xf32>
    %23 = arith.select %20, %18, %22 : vector<8x8xi1>, vector<8x8xf32>
    %24 = arith.addf %23, %12 : vector<8x8xf32>
    %cst_10 = arith.constant dense<0xFF800000> : vector<8xf32>
    %25 = vector.multi_reduction <maximumf>, %24, %cst_10 [0] : vector<8x8xf32> to vector<8xf32>
    %26 = vector.shape_cast %25 : vector<8xf32> to vector<1x8xf32>
    %27 = vector.broadcast %26 : vector<1x8xf32> to vector<8x8xf32>
    %28 = arith.subf %24, %27 : vector<8x8xf32>
    %29 = math.exp %28 : vector<8x8xf32>
    %cst_11 = arith.constant dense<0.000000e+00> : vector<8xf32>
    %30 = vector.multi_reduction <add>, %29, %cst_11 [0] : vector<8x8xf32> to vector<8xf32>
    %31 = vector.shape_cast %30 : vector<8xf32> to vector<1x8xf32>
    %32 = tpu.reciprocal %31 {approx = true} : vector<1x8xf32> -> vector<1x8xf32>
    %33 = vector.broadcast %32 : vector<1x8xf32> to vector<8x8xf32>
    %34 = arith.mulf %29, %33 : vector<8x8xf32>
    %35 = arith.truncf %34 : vector<8x8xf32> to vector<8x8xbf16>
    %cst_12 = arith.constant dense<0.000000e+00> : vector<8x16xf32>
    %36 = tpu.matmul %35, %13, %cst_12 {dimension_numbers = #tpu.dot_dimension_numbers<[1], [0], [0], [1], [0, 0, 1, 1], [], []>} : vector<8x8xbf16>, vector<8x16xbf16>, vector<8x16xf32> -> vector<8x16xf32>
    %cst_13 = arith.constant 0.000000e+00 : f32
    %37 = vector.broadcast %cst_13 : f32 to vector<8x16xf32>
    %38 = arith.cmpf ogt, %36, %37 : vector<8x16xf32>
    %cst_14 = arith.constant 0.000000e+00 : f32
    %39 = vector.broadcast %cst_14 : f32 to vector<8x16xf32>
    %40 = arith.minimumf %36, %39 : vector<8x16xf32>
    %41 = math.exp %40 : vector<8x16xf32>
    %cst_15 = arith.constant 1.000000e+00 : f32
    %42 = vector.broadcast %cst_15 : f32 to vector<8x16xf32>
    %43 = arith.subf %41, %42 : vector<8x16xf32>
    %44 = arith.select %38, %36, %43 : vector<8x16xi1>, vector<8x16xf32>
    %45 = arith.truncf %44 : vector<8x16xf32> to vector<8x16xbf16>
    %c0_16 = arith.constant 0 : index
    %c0_17 = arith.constant 0 : index
    %46 = vector.load %arg8[%c0_16, %c0_17] : memref<32x64xbf16, #tpu.memory_space<vmem>>, vector<8x16xbf16>
    tpu.vector_store %arg8[%c0_16, %c0_17], %45 {strides = array<i32>} : memref<32x64xbf16, #tpu.memory_space<vmem>>, vector<8x16xbf16>,
    %47 = vector.extract_strided_slice %10 {offsets = [0, 16], sizes = [8, 16], strides = [1, 1]} : vector<8x64xbf16> to vector<8x16xbf16>
    %48 = vector.extract_strided_slice %11 {offsets = [0, 1], sizes = [8, 1], strides = [1, 1]} : vector<8x8xf32> to vector<8x1xf32>
    %49 = vector.extract_strided_slice %7 {offsets = [1, 0], sizes = [1, 8], strides = [1, 1]} : vector<4x32xf32> to vector<1x8xf32>
    %50 = vector.broadcast %48 : vector<8x1xf32> to vector<8x8xf32>
    %51 = vector.broadcast %49 : vector<1x8xf32> to vector<8x8xf32>
    %52 = arith.addf %50, %51 : vector<8x8xf32>
    %cst_18 = arith.constant 0.000000e+00 : f32
    %53 = vector.broadcast %cst_18 : f32 to vector<8x8xf32>
    %54 = arith.cmpf ogt, %52, %53 : vector<8x8xf32>
    %cst_19 = arith.constant 0.00999999977 : f32
    %55 = vector.broadcast %cst_19 : f32 to vector<8x8xf32>
    %56 = arith.mulf %55, %52 : vector<8x8xf32>
    %57 = arith.select %54, %52, %56 : vector<8x8xi1>, vector<8x8xf32>
    %58 = arith.addf %57, %12 : vector<8x8xf32>
    %cst_20 = arith.constant dense<0xFF800000> : vector<8xf32>
    %59 = vector.multi_reduction <maximumf>, %58, %cst_20 [0] : vector<8x8xf32> to vector<8xf32>
    %60 = vector.shape_cast %59 : vector<8xf32> to vector<1x8xf32>
    %61 = vector.broadcast %60 : vector<1x8xf32> to vector<8x8xf32>
    %62 = arith.subf %58, %61 : vector<8x8xf32>
    %63 = math.exp %62 : vector<8x8xf32>
    %cst_21 = arith.constant dense<0.000000e+00> : vector<8xf32>
    %64 = vector.multi_reduction <add>, %63, %cst_21 [0] : vector<8x8xf32> to vector<8xf32>
    %65 = vector.shape_cast %64 : vector<8xf32> to vector<1x8xf32>
    %66 = tpu.reciprocal %65 {approx = true} : vector<1x8xf32> -> vector<1x8xf32>
    %67 = vector.broadcast %66 : vector<1x8xf32> to vector<8x8xf32>
    %68 = arith.mulf %63, %67 : vector<8x8xf32>
    %69 = arith.truncf %68 : vector<8x8xf32> to vector<8x8xbf16>
    %cst_22 = arith.constant dense<0.000000e+00> : vector<8x16xf32>
    %70 = tpu.matmul %69, %47, %cst_22 {dimension_numbers = #tpu.dot_dimension_numbers<[1], [0], [0], [1], [0, 0, 1, 1], [], []>} : vector<8x8xbf16>, vector<8x16xbf16>, vector<8x16xf32> -> vector<8x16xf32>
    %cst_23 = arith.constant 0.000000e+00 : f32
    %71 = vector.broadcast %cst_23 : f32 to vector<8x16xf32>
    %72 = arith.cmpf ogt, %70, %71 : vector<8x16xf32>
    %cst_24 = arith.constant 0.000000e+00 : f32
    %73 = vector.broadcast %cst_24 : f32 to vector<8x16xf32>
    %74 = arith.minimumf %70, %73 : vector<8x16xf32>
    %75 = math.exp %74 : vector<8x16xf32>
    %cst_25 = arith.constant 1.000000e+00 : f32
    %76 = vector.broadcast %cst_25 : f32 to vector<8x16xf32>
    %77 = arith.subf %75, %76 : vector<8x16xf32>
    %78 = arith.select %72, %70, %77 : vector<8x16xi1>, vector<8x16xf32>
    %79 = arith.truncf %78 : vector<8x16xf32> to vector<8x16xbf16>
    %c0_26 = arith.constant 0 : index
    %c16 = arith.constant 16 : index
    %80 = vector.load %arg8[%c0_26, %c16] : memref<32x64xbf16, #tpu.memory_space<vmem>>, vector<8x16xbf16>
    tpu.vector_store %arg8[%c0_26, %c16], %79 {strides = array<i32>} : memref<32x64xbf16, #tpu.memory_space<vmem>>, vector<8x16xbf16>,
    %81 = vector.extract_strided_slice %10 {offsets = [0, 32], sizes = [8, 16], strides = [1, 1]} : vector<8x64xbf16> to vector<8x16xbf16>
    %82 = vector.extract_strided_slice %11 {offsets = [0, 2], sizes = [8, 1], strides = [1, 1]} : vector<8x8xf32> to vector<8x1xf32>
    %83 = vector.extract_strided_slice %7 {offsets = [2, 0], sizes = [1, 8], strides = [1, 1]} : vector<4x32xf32> to vector<1x8xf32>
    %84 = vector.broadcast %82 : vector<8x1xf32> to vector<8x8xf32>
    %85 = vector.broadcast %83 : vector<1x8xf32> to vector<8x8xf32>
    %86 = arith.addf %84, %85 : vector<8x8xf32>
    %cst_27 = arith.constant 0.000000e+00 : f32
    %87 = vector.broadcast %cst_27 : f32 to vector<8x8xf32>
    %88 = arith.cmpf ogt, %86, %87 : vector<8x8xf32>
    %cst_28 = arith.constant 0.00999999977 : f32
    %89 = vector.broadcast %cst_28 : f32 to vector<8x8xf32>
    %90 = arith.mulf %89, %86 : vector<8x8xf32>
    %91 = arith.select %88, %86, %90 : vector<8x8xi1>, vector<8x8xf32>
    %92 = arith.addf %91, %12 : vector<8x8xf32>
    %cst_29 = arith.constant dense<0xFF800000> : vector<8xf32>
    %93 = vector.multi_reduction <maximumf>, %92, %cst_29 [0] : vector<8x8xf32> to vector<8xf32>
    %94 = vector.shape_cast %93 : vector<8xf32> to vector<1x8xf32>
    %95 = vector.broadcast %94 : vector<1x8xf32> to vector<8x8xf32>
    %96 = arith.subf %92, %95 : vector<8x8xf32>
    %97 = math.exp %96 : vector<8x8xf32>
    %cst_30 = arith.constant dense<0.000000e+00> : vector<8xf32>
    %98 = vector.multi_reduction <add>, %97, %cst_30 [0] : vector<8x8xf32> to vector<8xf32>
    %99 = vector.shape_cast %98 : vector<8xf32> to vector<1x8xf32>
    %100 = tpu.reciprocal %99 {approx = true} : vector<1x8xf32> -> vector<1x8xf32>
    %101 = vector.broadcast %100 : vector<1x8xf32> to vector<8x8xf32>
    %102 = arith.mulf %97, %101 : vector<8x8xf32>
    %103 = arith.truncf %102 : vector<8x8xf32> to vector<8x8xbf16>
    %cst_31 = arith.constant dense<0.000000e+00> : vector<8x16xf32>
    %104 = tpu.matmul %103, %81, %cst_31 {dimension_numbers = #tpu.dot_dimension_numbers<[1], [0], [0], [1], [0, 0, 1, 1], [], []>} : vector<8x8xbf16>, vector<8x16xbf16>, vector<8x16xf32> -> vector<8x16xf32>
    %cst_32 = arith.constant 0.000000e+00 : f32
    %105 = vector.broadcast %cst_32 : f32 to vector<8x16xf32>
    %106 = arith.cmpf ogt, %104, %105 : vector<8x16xf32>
    %cst_33 = arith.constant 0.000000e+00 : f32
    %107 = vector.broadcast %cst_33 : f32 to vector<8x16xf32>
    %108 = arith.minimumf %104, %107 : vector<8x16xf32>
    %109 = math.exp %108 : vector<8x16xf32>
    %cst_34 = arith.constant 1.000000e+00 : f32
    %110 = vector.broadcast %cst_34 : f32 to vector<8x16xf32>
    %111 = arith.subf %109, %110 : vector<8x16xf32>
    %112 = arith.select %106, %104, %111 : vector<8x16xi1>, vector<8x16xf32>
    %113 = arith.truncf %112 : vector<8x16xf32> to vector<8x16xbf16>
    %c0_35 = arith.constant 0 : index
    %c32 = arith.constant 32 : index
    %114 = vector.load %arg8[%c0_35, %c32] : memref<32x64xbf16, #tpu.memory_space<vmem>>, vector<8x16xbf16>
    tpu.vector_store %arg8[%c0_35, %c32], %113 {strides = array<i32>} : memref<32x64xbf16, #tpu.memory_space<vmem>>, vector<8x16xbf16>,
    %115 = vector.extract_strided_slice %10 {offsets = [0, 48], sizes = [8, 16], strides = [1, 1]} : vector<8x64xbf16> to vector<8x16xbf16>
    %116 = vector.extract_strided_slice %11 {offsets = [0, 3], sizes = [8, 1], strides = [1, 1]} : vector<8x8xf32> to vector<8x1xf32>
    %117 = vector.extract_strided_slice %7 {offsets = [3, 0], sizes = [1, 8], strides = [1, 1]} : vector<4x32xf32> to vector<1x8xf32>
    %118 = vector.broadcast %116 : vector<8x1xf32> to vector<8x8xf32>
    %119 = vector.broadcast %117 : vector<1x8xf32> to vector<8x8xf32>
    %120 = arith.addf %118, %119 : vector<8x8xf32>
    %cst_36 = arith.constant 0.000000e+00 : f32
    %121 = vector.broadcast %cst_36 : f32 to vector<8x8xf32>
    %122 = arith.cmpf ogt, %120, %121 : vector<8x8xf32>
    %cst_37 = arith.constant 0.00999999977 : f32
    %123 = vector.broadcast %cst_37 : f32 to vector<8x8xf32>
    %124 = arith.mulf %123, %120 : vector<8x8xf32>
    %125 = arith.select %122, %120, %124 : vector<8x8xi1>, vector<8x8xf32>
    %126 = arith.addf %125, %12 : vector<8x8xf32>
    %cst_38 = arith.constant dense<0xFF800000> : vector<8xf32>
    %127 = vector.multi_reduction <maximumf>, %126, %cst_38 [0] : vector<8x8xf32> to vector<8xf32>
    %128 = vector.shape_cast %127 : vector<8xf32> to vector<1x8xf32>
    %129 = vector.broadcast %128 : vector<1x8xf32> to vector<8x8xf32>
    %130 = arith.subf %126, %129 : vector<8x8xf32>
    %131 = math.exp %130 : vector<8x8xf32>
    %cst_39 = arith.constant dense<0.000000e+00> : vector<8xf32>
    %132 = vector.multi_reduction <add>, %131, %cst_39 [0] : vector<8x8xf32> to vector<8xf32>
    %133 = vector.shape_cast %132 : vector<8xf32> to vector<1x8xf32>
    %134 = tpu.reciprocal %133 {approx = true} : vector<1x8xf32> -> vector<1x8xf32>
    %135 = vector.broadcast %134 : vector<1x8xf32> to vector<8x8xf32>
    %136 = arith.mulf %131, %135 : vector<8x8xf32>
    %137 = arith.truncf %136 : vector<8x8xf32> to vector<8x8xbf16>
    %cst_40 = arith.constant dense<0.000000e+00> : vector<8x16xf32>
    %138 = tpu.matmul %137, %115, %cst_40 {dimension_numbers = #tpu.dot_dimension_numbers<[1], [0], [0], [1], [0, 0, 1, 1], [], []>} : vector<8x8xbf16>, vector<8x16xbf16>, vector<8x16xf32> -> vector<8x16xf32>
    %cst_41 = arith.constant 0.000000e+00 : f32
    %139 = vector.broadcast %cst_41 : f32 to vector<8x16xf32>
    %140 = arith.cmpf ogt, %138, %139 : vector<8x16xf32>
    %cst_42 = arith.constant 0.000000e+00 : f32
    %141 = vector.broadcast %cst_42 : f32 to vector<8x16xf32>
    %142 = arith.minimumf %138, %141 : vector<8x16xf32>
    %143 = math.exp %142 : vector<8x16xf32>
    %cst_43 = arith.constant 1.000000e+00 : f32
    %144 = vector.broadcast %cst_43 : f32 to vector<8x16xf32>
    %145 = arith.subf %143, %144 : vector<8x16xf32>
    %146 = arith.select %140, %138, %145 : vector<8x16xi1>, vector<8x16xf32>
    %147 = arith.truncf %146 : vector<8x16xf32> to vector<8x16xbf16>
    %c0_44 = arith.constant 0 : index
    %c48 = arith.constant 48 : index
    %148 = vector.load %arg8[%c0_44, %c48] : memref<32x64xbf16, #tpu.memory_space<vmem>>, vector<8x16xbf16>
    tpu.vector_store %arg8[%c0_44, %c48], %147 {strides = array<i32>} : memref<32x64xbf16, #tpu.memory_space<vmem>>, vector<8x16xbf16>,
    %149 = vector.extract_strided_slice %3 {offsets = [8, 0], sizes = [8, 64], strides = [1, 1]} : vector<32x64xbf16> to vector<8x64xbf16>
    %150 = vector.extract_strided_slice %5 {offsets = [8, 0], sizes = [8, 8], strides = [1, 1]} : vector<32x8xf32> to vector<8x8xf32>
    %151 = vector.extract_strided_slice %9 {offsets = [8, 0], sizes = [8, 8], strides = [1, 1]} : vector<32x8xf32> to vector<8x8xf32>
    %152 = vector.extract_strided_slice %149 {offsets = [0, 0], sizes = [8, 16], strides = [1, 1]} : vector<8x64xbf16> to vector<8x16xbf16>
    %153 = vector.extract_strided_slice %150 {offsets = [0, 0], sizes = [8, 1], strides = [1, 1]} : vector<8x8xf32> to vector<8x1xf32>
    %154 = vector.extract_strided_slice %7 {offsets = [0, 8], sizes = [1, 8], strides = [1, 1]} : vector<4x32xf32> to vector<1x8xf32>
    %155 = vector.broadcast %153 : vector<8x1xf32> to vector<8x8xf32>
    %156 = vector.broadcast %154 : vector<1x8xf32> to vector<8x8xf32>
    %157 = arith.addf %155, %156 : vector<8x8xf32>
    %cst_45 = arith.constant 0.000000e+00 : f32
    %158 = vector.broadcast %cst_45 : f32 to vector<8x8xf32>
    %159 = arith.cmpf ogt, %157, %158 : vector<8x8xf32>
    %cst_46 = arith.constant 0.00999999977 : f32
    %160 = vector.broadcast %cst_46 : f32 to vector<8x8xf32>
    %161 = arith.mulf %160, %157 : vector<8x8xf32>
    %162 = arith.select %159, %157, %161 : vector<8x8xi1>, vector<8x8xf32>
    %163 = arith.addf %162, %151 : vector<8x8xf32>
    %cst_47 = arith.constant dense<0xFF800000> : vector<8xf32>
    %164 = vector.multi_reduction <maximumf>, %163, %cst_47 [0] : vector<8x8xf32> to vector<8xf32>
    %165 = vector.shape_cast %164 : vector<8xf32> to vector<1x8xf32>
    %166 = vector.broadcast %165 : vector<1x8xf32> to vector<8x8xf32>
    %167 = arith.subf %163, %166 : vector<8x8xf32>
    %168 = math.exp %167 : vector<8x8xf32>
    %cst_48 = arith.constant dense<0.000000e+00> : vector<8xf32>
    %169 = vector.multi_reduction <add>, %168, %cst_48 [0] : vector<8x8xf32> to vector<8xf32>
    %170 = vector.shape_cast %169 : vector<8xf32> to vector<1x8xf32>
    %171 = tpu.reciprocal %170 {approx = true} : vector<1x8xf32> -> vector<1x8xf32>
    %172 = vector.broadcast %171 : vector<1x8xf32> to vector<8x8xf32>
    %173 = arith.mulf %168, %172 : vector<8x8xf32>
    %174 = arith.truncf %173 : vector<8x8xf32> to vector<8x8xbf16>
    %cst_49 = arith.constant dense<0.000000e+00> : vector<8x16xf32>
    %175 = tpu.matmul %174, %152, %cst_49 {dimension_numbers = #tpu.dot_dimension_numbers<[1], [0], [0], [1], [0, 0, 1, 1], [], []>} : vector<8x8xbf16>, vector<8x16xbf16>, vector<8x16xf32> -> vector<8x16xf32>
    %cst_50 = arith.constant 0.000000e+00 : f32
    %176 = vector.broadcast %cst_50 : f32 to vector<8x16xf32>
    %177 = arith.cmpf ogt, %175, %176 : vector<8x16xf32>
    %cst_51 = arith.constant 0.000000e+00 : f32
    %178 = vector.broadcast %cst_51 : f32 to vector<8x16xf32>
    %179 = arith.minimumf %175, %178 : vector<8x16xf32>
    %180 = math.exp %179 : vector<8x16xf32>
    %cst_52 = arith.constant 1.000000e+00 : f32
    %181 = vector.broadcast %cst_52 : f32 to vector<8x16xf32>
    %182 = arith.subf %180, %181 : vector<8x16xf32>
    %183 = arith.select %177, %175, %182 : vector<8x16xi1>, vector<8x16xf32>
    %184 = arith.truncf %183 : vector<8x16xf32> to vector<8x16xbf16>
    %c8 = arith.constant 8 : index
    %c0_53 = arith.constant 0 : index
    %185 = vector.load %arg8[%c8, %c0_53] : memref<32x64xbf16, #tpu.memory_space<vmem>>, vector<8x16xbf16>
    tpu.vector_store %arg8[%c8, %c0_53], %184 {strides = array<i32>} : memref<32x64xbf16, #tpu.memory_space<vmem>>, vector<8x16xbf16>,
    %186 = vector.extract_strided_slice %149 {offsets = [0, 16], sizes = [8, 16], strides = [1, 1]} : vector<8x64xbf16> to vector<8x16xbf16>
    %187 = vector.extract_strided_slice %150 {offsets = [0, 1], sizes = [8, 1], strides = [1, 1]} : vector<8x8xf32> to vector<8x1xf32>
    %188 = vector.extract_strided_slice %7 {offsets = [1, 8], sizes = [1, 8], strides = [1, 1]} : vector<4x32xf32> to vector<1x8xf32>
    %189 = vector.broadcast %187 : vector<8x1xf32> to vector<8x8xf32>
    %190 = vector.broadcast %188 : vector<1x8xf32> to vector<8x8xf32>
    %191 = arith.addf %189, %190 : vector<8x8xf32>
    %cst_54 = arith.constant 0.000000e+00 : f32
    %192 = vector.broadcast %cst_54 : f32 to vector<8x8xf32>
    %193 = arith.cmpf ogt, %191, %192 : vector<8x8xf32>
    %cst_55 = arith.constant 0.00999999977 : f32
    %194 = vector.broadcast %cst_55 : f32 to vector<8x8xf32>
    %195 = arith.mulf %194, %191 : vector<8x8xf32>
    %196 = arith.select %193, %191, %195 : vector<8x8xi1>, vector<8x8xf32>
    %197 = arith.addf %196, %151 : vector<8x8xf32>
    %cst_56 = arith.constant dense<0xFF800000> : vector<8xf32>
    %198 = vector.multi_reduction <maximumf>, %197, %cst_56 [0] : vector<8x8xf32> to vector<8xf32>
    %199 = vector.shape_cast %198 : vector<8xf32> to vector<1x8xf32>
    %200 = vector.broadcast %199 : vector<1x8xf32> to vector<8x8xf32>
    %201 = arith.subf %197, %200 : vector<8x8xf32>
    %202 = math.exp %201 : vector<8x8xf32>
    %cst_57 = arith.constant dense<0.000000e+00> : vector<8xf32>
    %203 = vector.multi_reduction <add>, %202, %cst_57 [0] : vector<8x8xf32> to vector<8xf32>
    %204 = vector.shape_cast %203 : vector<8xf32> to vector<1x8xf32>
    %205 = tpu.reciprocal %204 {approx = true} : vector<1x8xf32> -> vector<1x8xf32>
    %206 = vector.broadcast %205 : vector<1x8xf32> to vector<8x8xf32>
    %207 = arith.mulf %202, %206 : vector<8x8xf32>
    %208 = arith.truncf %207 : vector<8x8xf32> to vector<8x8xbf16>
    %cst_58 = arith.constant dense<0.000000e+00> : vector<8x16xf32>
    %209 = tpu.matmul %208, %186, %cst_58 {dimension_numbers = #tpu.dot_dimension_numbers<[1], [0], [0], [1], [0, 0, 1, 1], [], []>} : vector<8x8xbf16>, vector<8x16xbf16>, vector<8x16xf32> -> vector<8x16xf32>
    %cst_59 = arith.constant 0.000000e+00 : f32
    %210 = vector.broadcast %cst_59 : f32 to vector<8x16xf32>
    %211 = arith.cmpf ogt, %209, %210 : vector<8x16xf32>
    %cst_60 = arith.constant 0.000000e+00 : f32
    %212 = vector.broadcast %cst_60 : f32 to vector<8x16xf32>
    %213 = arith.minimumf %209, %212 : vector<8x16xf32>
    %214 = math.exp %213 : vector<8x16xf32>
    %cst_61 = arith.constant 1.000000e+00 : f32
    %215 = vector.broadcast %cst_61 : f32 to vector<8x16xf32>
    %216 = arith.subf %214, %215 : vector<8x16xf32>
    %217 = arith.select %211, %209, %216 : vector<8x16xi1>, vector<8x16xf32>
    %218 = arith.truncf %217 : vector<8x16xf32> to vector<8x16xbf16>
    %c8_62 = arith.constant 8 : index
    %c16_63 = arith.constant 16 : index
    %219 = vector.load %arg8[%c8_62, %c16_63] : memref<32x64xbf16, #tpu.memory_space<vmem>>, vector<8x16xbf16>
    tpu.vector_store %arg8[%c8_62, %c16_63], %218 {strides = array<i32>} : memref<32x64xbf16, #tpu.memory_space<vmem>>, vector<8x16xbf16>,
    %220 = vector.extract_strided_slice %149 {offsets = [0, 32], sizes = [8, 16], strides = [1, 1]} : vector<8x64xbf16> to vector<8x16xbf16>
    %221 = vector.extract_strided_slice %150 {offsets = [0, 2], sizes = [8, 1], strides = [1, 1]} : vector<8x8xf32> to vector<8x1xf32>
    %222 = vector.extract_strided_slice %7 {offsets = [2, 8], sizes = [1, 8], strides = [1, 1]} : vector<4x32xf32> to vector<1x8xf32>
    %223 = vector.broadcast %221 : vector<8x1xf32> to vector<8x8xf32>
    %224 = vector.broadcast %222 : vector<1x8xf32> to vector<8x8xf32>
    %225 = arith.addf %223, %224 : vector<8x8xf32>
    %cst_64 = arith.constant 0.000000e+00 : f32
    %226 = vector.broadcast %cst_64 : f32 to vector<8x8xf32>
    %227 = arith.cmpf ogt, %225, %226 : vector<8x8xf32>
    %cst_65 = arith.constant 0.00999999977 : f32
    %228 = vector.broadcast %cst_65 : f32 to vector<8x8xf32>
    %229 = arith.mulf %228, %225 : vector<8x8xf32>
    %230 = arith.select %227, %225, %229 : vector<8x8xi1>, vector<8x8xf32>
    %231 = arith.addf %230, %151 : vector<8x8xf32>
    %cst_66 = arith.constant dense<0xFF800000> : vector<8xf32>
    %232 = vector.multi_reduction <maximumf>, %231, %cst_66 [0] : vector<8x8xf32> to vector<8xf32>
    %233 = vector.shape_cast %232 : vector<8xf32> to vector<1x8xf32>
    %234 = vector.broadcast %233 : vector<1x8xf32> to vector<8x8xf32>
    %235 = arith.subf %231, %234 : vector<8x8xf32>
    %236 = math.exp %235 : vector<8x8xf32>
    %cst_67 = arith.constant dense<0.000000e+00> : vector<8xf32>
    %237 = vector.multi_reduction <add>, %236, %cst_67 [0] : vector<8x8xf32> to vector<8xf32>
    %238 = vector.shape_cast %237 : vector<8xf32> to vector<1x8xf32>
    %239 = tpu.reciprocal %238 {approx = true} : vector<1x8xf32> -> vector<1x8xf32>
    %240 = vector.broadcast %239 : vector<1x8xf32> to vector<8x8xf32>
    %241 = arith.mulf %236, %240 : vector<8x8xf32>
    %242 = arith.truncf %241 : vector<8x8xf32> to vector<8x8xbf16>
    %cst_68 = arith.constant dense<0.000000e+00> : vector<8x16xf32>
    %243 = tpu.matmul %242, %220, %cst_68 {dimension_numbers = #tpu.dot_dimension_numbers<[1], [0], [0], [1], [0, 0, 1, 1], [], []>} : vector<8x8xbf16>, vector<8x16xbf16>, vector<8x16xf32> -> vector<8x16xf32>
    %cst_69 = arith.constant 0.000000e+00 : f32
    %244 = vector.broadcast %cst_69 : f32 to vector<8x16xf32>
    %245 = arith.cmpf ogt, %243, %244 : vector<8x16xf32>
    %cst_70 = arith.constant 0.000000e+00 : f32
    %246 = vector.broadcast %cst_70 : f32 to vector<8x16xf32>
    %247 = arith.minimumf %243, %246 : vector<8x16xf32>
    %248 = math.exp %247 : vector<8x16xf32>
    %cst_71 = arith.constant 1.000000e+00 : f32
    %249 = vector.broadcast %cst_71 : f32 to vector<8x16xf32>
    %250 = arith.subf %248, %249 : vector<8x16xf32>
    %251 = arith.select %245, %243, %250 : vector<8x16xi1>, vector<8x16xf32>
    %252 = arith.truncf %251 : vector<8x16xf32> to vector<8x16xbf16>
    %c8_72 = arith.constant 8 : index
    %c32_73 = arith.constant 32 : index
    %253 = vector.load %arg8[%c8_72, %c32_73] : memref<32x64xbf16, #tpu.memory_space<vmem>>, vector<8x16xbf16>
    tpu.vector_store %arg8[%c8_72, %c32_73], %252 {strides = array<i32>} : memref<32x64xbf16, #tpu.memory_space<vmem>>, vector<8x16xbf16>,
    %254 = vector.extract_strided_slice %149 {offsets = [0, 48], sizes = [8, 16], strides = [1, 1]} : vector<8x64xbf16> to vector<8x16xbf16>
    %255 = vector.extract_strided_slice %150 {offsets = [0, 3], sizes = [8, 1], strides = [1, 1]} : vector<8x8xf32> to vector<8x1xf32>
    %256 = vector.extract_strided_slice %7 {offsets = [3, 8], sizes = [1, 8], strides = [1, 1]} : vector<4x32xf32> to vector<1x8xf32>
    %257 = vector.broadcast %255 : vector<8x1xf32> to vector<8x8xf32>
    %258 = vector.broadcast %256 : vector<1x8xf32> to vector<8x8xf32>
    %259 = arith.addf %257, %258 : vector<8x8xf32>
    %cst_74 = arith.constant 0.000000e+00 : f32
    %260 = vector.broadcast %cst_74 : f32 to vector<8x8xf32>
    %261 = arith.cmpf ogt, %259, %260 : vector<8x8xf32>
    %cst_75 = arith.constant 0.00999999977 : f32
    %262 = vector.broadcast %cst_75 : f32 to vector<8x8xf32>
    %263 = arith.mulf %262, %259 : vector<8x8xf32>
    %264 = arith.select %261, %259, %263 : vector<8x8xi1>, vector<8x8xf32>
    %265 = arith.addf %264, %151 : vector<8x8xf32>
    %cst_76 = arith.constant dense<0xFF800000> : vector<8xf32>
    %266 = vector.multi_reduction <maximumf>, %265, %cst_76 [0] : vector<8x8xf32> to vector<8xf32>
    %267 = vector.shape_cast %266 : vector<8xf32> to vector<1x8xf32>
    %268 = vector.broadcast %267 : vector<1x8xf32> to vector<8x8xf32>
    %269 = arith.subf %265, %268 : vector<8x8xf32>
    %270 = math.exp %269 : vector<8x8xf32>
    %cst_77 = arith.constant dense<0.000000e+00> : vector<8xf32>
    %271 = vector.multi_reduction <add>, %270, %cst_77 [0] : vector<8x8xf32> to vector<8xf32>
    %272 = vector.shape_cast %271 : vector<8xf32> to vector<1x8xf32>
    %273 = tpu.reciprocal %272 {approx = true} : vector<1x8xf32> -> vector<1x8xf32>
    %274 = vector.broadcast %273 : vector<1x8xf32> to vector<8x8xf32>
    %275 = arith.mulf %270, %274 : vector<8x8xf32>
    %276 = arith.truncf %275 : vector<8x8xf32> to vector<8x8xbf16>
    %cst_78 = arith.constant dense<0.000000e+00> : vector<8x16xf32>
    %277 = tpu.matmul %276, %254, %cst_78 {dimension_numbers = #tpu.dot_dimension_numbers<[1], [0], [0], [1], [0, 0, 1, 1], [], []>} : vector<8x8xbf16>, vector<8x16xbf16>, vector<8x16xf32> -> vector<8x16xf32>
    %cst_79 = arith.constant 0.000000e+00 : f32
    %278 = vector.broadcast %cst_79 : f32 to vector<8x16xf32>
    %279 = arith.cmpf ogt, %277, %278 : vector<8x16xf32>
    %cst_80 = arith.constant 0.000000e+00 : f32
    %280 = vector.broadcast %cst_80 : f32 to vector<8x16xf32>
    %281 = arith.minimumf %277, %280 : vector<8x16xf32>
    %282 = math.exp %281 : vector<8x16xf32>
    %cst_81 = arith.constant 1.000000e+00 : f32
    %283 = vector.broadcast %cst_81 : f32 to vector<8x16xf32>
    %284 = arith.subf %282, %283 : vector<8x16xf32>
    %285 = arith.select %279, %277, %284 : vector<8x16xi1>, vector<8x16xf32>
    %286 = arith.truncf %285 : vector<8x16xf32> to vector<8x16xbf16>
    %c8_82 = arith.constant 8 : index
    %c48_83 = arith.constant 48 : index
    %287 = vector.load %arg8[%c8_82, %c48_83] : memref<32x64xbf16, #tpu.memory_space<vmem>>, vector<8x16xbf16>
    tpu.vector_store %arg8[%c8_82, %c48_83], %286 {strides = array<i32>} : memref<32x64xbf16, #tpu.memory_space<vmem>>, vector<8x16xbf16>,
    %288 = vector.extract_strided_slice %3 {offsets = [16, 0], sizes = [8, 64], strides = [1, 1]} : vector<32x64xbf16> to vector<8x64xbf16>
    %289 = vector.extract_strided_slice %5 {offsets = [16, 0], sizes = [8, 8], strides = [1, 1]} : vector<32x8xf32> to vector<8x8xf32>
    %290 = vector.extract_strided_slice %9 {offsets = [16, 0], sizes = [8, 8], strides = [1, 1]} : vector<32x8xf32> to vector<8x8xf32>
    %291 = vector.extract_strided_slice %288 {offsets = [0, 0], sizes = [8, 16], strides = [1, 1]} : vector<8x64xbf16> to vector<8x16xbf16>
    %292 = vector.extract_strided_slice %289 {offsets = [0, 0], sizes = [8, 1], strides = [1, 1]} : vector<8x8xf32> to vector<8x1xf32>
    %293 = vector.extract_strided_slice %7 {offsets = [0, 16], sizes = [1, 8], strides = [1, 1]} : vector<4x32xf32> to vector<1x8xf32>
    %294 = vector.broadcast %292 : vector<8x1xf32> to vector<8x8xf32>
    %295 = vector.broadcast %293 : vector<1x8xf32> to vector<8x8xf32>
    %296 = arith.addf %294, %295 : vector<8x8xf32>
    %cst_84 = arith.constant 0.000000e+00 : f32
    %297 = vector.broadcast %cst_84 : f32 to vector<8x8xf32>
    %298 = arith.cmpf ogt, %296, %297 : vector<8x8xf32>
    %cst_85 = arith.constant 0.00999999977 : f32
    %299 = vector.broadcast %cst_85 : f32 to vector<8x8xf32>
    %300 = arith.mulf %299, %296 : vector<8x8xf32>
    %301 = arith.select %298, %296, %300 : vector<8x8xi1>, vector<8x8xf32>
    %302 = arith.addf %301, %290 : vector<8x8xf32>
    %cst_86 = arith.constant dense<0xFF800000> : vector<8xf32>
    %303 = vector.multi_reduction <maximumf>, %302, %cst_86 [0] : vector<8x8xf32> to vector<8xf32>
    %304 = vector.shape_cast %303 : vector<8xf32> to vector<1x8xf32>
    %305 = vector.broadcast %304 : vector<1x8xf32> to vector<8x8xf32>
    %306 = arith.subf %302, %305 : vector<8x8xf32>
    %307 = math.exp %306 : vector<8x8xf32>
    %cst_87 = arith.constant dense<0.000000e+00> : vector<8xf32>
    %308 = vector.multi_reduction <add>, %307, %cst_87 [0] : vector<8x8xf32> to vector<8xf32>
    %309 = vector.shape_cast %308 : vector<8xf32> to vector<1x8xf32>
    %310 = tpu.reciprocal %309 {approx = true} : vector<1x8xf32> -> vector<1x8xf32>
    %311 = vector.broadcast %310 : vector<1x8xf32> to vector<8x8xf32>
    %312 = arith.mulf %307, %311 : vector<8x8xf32>
    %313 = arith.truncf %312 : vector<8x8xf32> to vector<8x8xbf16>
    %cst_88 = arith.constant dense<0.000000e+00> : vector<8x16xf32>
    %314 = tpu.matmul %313, %291, %cst_88 {dimension_numbers = #tpu.dot_dimension_numbers<[1], [0], [0], [1], [0, 0, 1, 1], [], []>} : vector<8x8xbf16>, vector<8x16xbf16>, vector<8x16xf32> -> vector<8x16xf32>
    %cst_89 = arith.constant 0.000000e+00 : f32
    %315 = vector.broadcast %cst_89 : f32 to vector<8x16xf32>
    %316 = arith.cmpf ogt, %314, %315 : vector<8x16xf32>
    %cst_90 = arith.constant 0.000000e+00 : f32
    %317 = vector.broadcast %cst_90 : f32 to vector<8x16xf32>
    %318 = arith.minimumf %314, %317 : vector<8x16xf32>
    %319 = math.exp %318 : vector<8x16xf32>
    %cst_91 = arith.constant 1.000000e+00 : f32
    %320 = vector.broadcast %cst_91 : f32 to vector<8x16xf32>
    %321 = arith.subf %319, %320 : vector<8x16xf32>
    %322 = arith.select %316, %314, %321 : vector<8x16xi1>, vector<8x16xf32>
    %323 = arith.truncf %322 : vector<8x16xf32> to vector<8x16xbf16>
    %c16_92 = arith.constant 16 : index
    %c0_93 = arith.constant 0 : index
    %324 = vector.load %arg8[%c16_92, %c0_93] : memref<32x64xbf16, #tpu.memory_space<vmem>>, vector<8x16xbf16>
    tpu.vector_store %arg8[%c16_92, %c0_93], %323 {strides = array<i32>} : memref<32x64xbf16, #tpu.memory_space<vmem>>, vector<8x16xbf16>,
    %325 = vector.extract_strided_slice %288 {offsets = [0, 16], sizes = [8, 16], strides = [1, 1]} : vector<8x64xbf16> to vector<8x16xbf16>
    %326 = vector.extract_strided_slice %289 {offsets = [0, 1], sizes = [8, 1], strides = [1, 1]} : vector<8x8xf32> to vector<8x1xf32>
    %327 = vector.extract_strided_slice %7 {offsets = [1, 16], sizes = [1, 8], strides = [1, 1]} : vector<4x32xf32> to vector<1x8xf32>
    %328 = vector.broadcast %326 : vector<8x1xf32> to vector<8x8xf32>
    %329 = vector.broadcast %327 : vector<1x8xf32> to vector<8x8xf32>
    %330 = arith.addf %328, %329 : vector<8x8xf32>
    %cst_94 = arith.constant 0.000000e+00 : f32
    %331 = vector.broadcast %cst_94 : f32 to vector<8x8xf32>
    %332 = arith.cmpf ogt, %330, %331 : vector<8x8xf32>
    %cst_95 = arith.constant 0.00999999977 : f32
    %333 = vector.broadcast %cst_95 : f32 to vector<8x8xf32>
    %334 = arith.mulf %333, %330 : vector<8x8xf32>
    %335 = arith.select %332, %330, %334 : vector<8x8xi1>, vector<8x8xf32>
    %336 = arith.addf %335, %290 : vector<8x8xf32>
    %cst_96 = arith.constant dense<0xFF800000> : vector<8xf32>
    %337 = vector.multi_reduction <maximumf>, %336, %cst_96 [0] : vector<8x8xf32> to vector<8xf32>
    %338 = vector.shape_cast %337 : vector<8xf32> to vector<1x8xf32>
    %339 = vector.broadcast %338 : vector<1x8xf32> to vector<8x8xf32>
    %340 = arith.subf %336, %339 : vector<8x8xf32>
    %341 = math.exp %340 : vector<8x8xf32>
    %cst_97 = arith.constant dense<0.000000e+00> : vector<8xf32>
    %342 = vector.multi_reduction <add>, %341, %cst_97 [0] : vector<8x8xf32> to vector<8xf32>
    %343 = vector.shape_cast %342 : vector<8xf32> to vector<1x8xf32>
    %344 = tpu.reciprocal %343 {approx = true} : vector<1x8xf32> -> vector<1x8xf32>
    %345 = vector.broadcast %344 : vector<1x8xf32> to vector<8x8xf32>
    %346 = arith.mulf %341, %345 : vector<8x8xf32>
    %347 = arith.truncf %346 : vector<8x8xf32> to vector<8x8xbf16>
    %cst_98 = arith.constant dense<0.000000e+00> : vector<8x16xf32>
    %348 = tpu.matmul %347, %325, %cst_98 {dimension_numbers = #tpu.dot_dimension_numbers<[1], [0], [0], [1], [0, 0, 1, 1], [], []>} : vector<8x8xbf16>, vector<8x16xbf16>, vector<8x16xf32> -> vector<8x16xf32>
    %cst_99 = arith.constant 0.000000e+00 : f32
    %349 = vector.broadcast %cst_99 : f32 to vector<8x16xf32>
    %350 = arith.cmpf ogt, %348, %349 : vector<8x16xf32>
    %cst_100 = arith.constant 0.000000e+00 : f32
    %351 = vector.broadcast %cst_100 : f32 to vector<8x16xf32>
    %352 = arith.minimumf %348, %351 : vector<8x16xf32>
    %353 = math.exp %352 : vector<8x16xf32>
    %cst_101 = arith.constant 1.000000e+00 : f32
    %354 = vector.broadcast %cst_101 : f32 to vector<8x16xf32>
    %355 = arith.subf %353, %354 : vector<8x16xf32>
    %356 = arith.select %350, %348, %355 : vector<8x16xi1>, vector<8x16xf32>
    %357 = arith.truncf %356 : vector<8x16xf32> to vector<8x16xbf16>
    %c16_102 = arith.constant 16 : index
    %c16_103 = arith.constant 16 : index
    %358 = vector.load %arg8[%c16_102, %c16_103] : memref<32x64xbf16, #tpu.memory_space<vmem>>, vector<8x16xbf16>
    tpu.vector_store %arg8[%c16_102, %c16_103], %357 {strides = array<i32>} : memref<32x64xbf16, #tpu.memory_space<vmem>>, vector<8x16xbf16>,
    %359 = vector.extract_strided_slice %288 {offsets = [0, 32], sizes = [8, 16], strides = [1, 1]} : vector<8x64xbf16> to vector<8x16xbf16>
    %360 = vector.extract_strided_slice %289 {offsets = [0, 2], sizes = [8, 1], strides = [1, 1]} : vector<8x8xf32> to vector<8x1xf32>
    %361 = vector.extract_strided_slice %7 {offsets = [2, 16], sizes = [1, 8], strides = [1, 1]} : vector<4x32xf32> to vector<1x8xf32>
    %362 = vector.broadcast %360 : vector<8x1xf32> to vector<8x8xf32>
    %363 = vector.broadcast %361 : vector<1x8xf32> to vector<8x8xf32>
    %364 = arith.addf %362, %363 : vector<8x8xf32>
    %cst_104 = arith.constant 0.000000e+00 : f32
    %365 = vector.broadcast %cst_104 : f32 to vector<8x8xf32>
    %366 = arith.cmpf ogt, %364, %365 : vector<8x8xf32>
    %cst_105 = arith.constant 0.00999999977 : f32
    %367 = vector.broadcast %cst_105 : f32 to vector<8x8xf32>
    %368 = arith.mulf %367, %364 : vector<8x8xf32>
    %369 = arith.select %366, %364, %368 : vector<8x8xi1>, vector<8x8xf32>
    %370 = arith.addf %369, %290 : vector<8x8xf32>
    %cst_106 = arith.constant dense<0xFF800000> : vector<8xf32>
    %371 = vector.multi_reduction <maximumf>, %370, %cst_106 [0] : vector<8x8xf32> to vector<8xf32>
    %372 = vector.shape_cast %371 : vector<8xf32> to vector<1x8xf32>
    %373 = vector.broadcast %372 : vector<1x8xf32> to vector<8x8xf32>
    %374 = arith.subf %370, %373 : vector<8x8xf32>
    %375 = math.exp %374 : vector<8x8xf32>
    %cst_107 = arith.constant dense<0.000000e+00> : vector<8xf32>
    %376 = vector.multi_reduction <add>, %375, %cst_107 [0] : vector<8x8xf32> to vector<8xf32>
    %377 = vector.shape_cast %376 : vector<8xf32> to vector<1x8xf32>
    %378 = tpu.reciprocal %377 {approx = true} : vector<1x8xf32> -> vector<1x8xf32>
    %379 = vector.broadcast %378 : vector<1x8xf32> to vector<8x8xf32>
    %380 = arith.mulf %375, %379 : vector<8x8xf32>
    %381 = arith.truncf %380 : vector<8x8xf32> to vector<8x8xbf16>
    %cst_108 = arith.constant dense<0.000000e+00> : vector<8x16xf32>
    %382 = tpu.matmul %381, %359, %cst_108 {dimension_numbers = #tpu.dot_dimension_numbers<[1], [0], [0], [1], [0, 0, 1, 1], [], []>} : vector<8x8xbf16>, vector<8x16xbf16>, vector<8x16xf32> -> vector<8x16xf32>
    %cst_109 = arith.constant 0.000000e+00 : f32
    %383 = vector.broadcast %cst_109 : f32 to vector<8x16xf32>
    %384 = arith.cmpf ogt, %382, %383 : vector<8x16xf32>
    %cst_110 = arith.constant 0.000000e+00 : f32
    %385 = vector.broadcast %cst_110 : f32 to vector<8x16xf32>
    %386 = arith.minimumf %382, %385 : vector<8x16xf32>
    %387 = math.exp %386 : vector<8x16xf32>
    %cst_111 = arith.constant 1.000000e+00 : f32
    %388 = vector.broadcast %cst_111 : f32 to vector<8x16xf32>
    %389 = arith.subf %387, %388 : vector<8x16xf32>
    %390 = arith.select %384, %382, %389 : vector<8x16xi1>, vector<8x16xf32>
    %391 = arith.truncf %390 : vector<8x16xf32> to vector<8x16xbf16>
    %c16_112 = arith.constant 16 : index
    %c32_113 = arith.constant 32 : index
    %392 = vector.load %arg8[%c16_112, %c32_113] : memref<32x64xbf16, #tpu.memory_space<vmem>>, vector<8x16xbf16>
    tpu.vector_store %arg8[%c16_112, %c32_113], %391 {strides = array<i32>} : memref<32x64xbf16, #tpu.memory_space<vmem>>, vector<8x16xbf16>,
    %393 = vector.extract_strided_slice %288 {offsets = [0, 48], sizes = [8, 16], strides = [1, 1]} : vector<8x64xbf16> to vector<8x16xbf16>
    %394 = vector.extract_strided_slice %289 {offsets = [0, 3], sizes = [8, 1], strides = [1, 1]} : vector<8x8xf32> to vector<8x1xf32>
    %395 = vector.extract_strided_slice %7 {offsets = [3, 16], sizes = [1, 8], strides = [1, 1]} : vector<4x32xf32> to vector<1x8xf32>
    %396 = vector.broadcast %394 : vector<8x1xf32> to vector<8x8xf32>
    %397 = vector.broadcast %395 : vector<1x8xf32> to vector<8x8xf32>
    %398 = arith.addf %396, %397 : vector<8x8xf32>
    %cst_114 = arith.constant 0.000000e+00 : f32
    %399 = vector.broadcast %cst_114 : f32 to vector<8x8xf32>
    %400 = arith.cmpf ogt, %398, %399 : vector<8x8xf32>
    %cst_115 = arith.constant 0.00999999977 : f32
    %401 = vector.broadcast %cst_115 : f32 to vector<8x8xf32>
    %402 = arith.mulf %401, %398 : vector<8x8xf32>
    %403 = arith.select %400, %398, %402 : vector<8x8xi1>, vector<8x8xf32>
    %404 = arith.addf %403, %290 : vector<8x8xf32>
    %cst_116 = arith.constant dense<0xFF800000> : vector<8xf32>
    %405 = vector.multi_reduction <maximumf>, %404, %cst_116 [0] : vector<8x8xf32> to vector<8xf32>
    %406 = vector.shape_cast %405 : vector<8xf32> to vector<1x8xf32>
    %407 = vector.broadcast %406 : vector<1x8xf32> to vector<8x8xf32>
    %408 = arith.subf %404, %407 : vector<8x8xf32>
    %409 = math.exp %408 : vector<8x8xf32>
    %cst_117 = arith.constant dense<0.000000e+00> : vector<8xf32>
    %410 = vector.multi_reduction <add>, %409, %cst_117 [0] : vector<8x8xf32> to vector<8xf32>
    %411 = vector.shape_cast %410 : vector<8xf32> to vector<1x8xf32>
    %412 = tpu.reciprocal %411 {approx = true} : vector<1x8xf32> -> vector<1x8xf32>
    %413 = vector.broadcast %412 : vector<1x8xf32> to vector<8x8xf32>
    %414 = arith.mulf %409, %413 : vector<8x8xf32>
    %415 = arith.truncf %414 : vector<8x8xf32> to vector<8x8xbf16>
    %cst_118 = arith.constant dense<0.000000e+00> : vector<8x16xf32>
    %416 = tpu.matmul %415, %393, %cst_118 {dimension_numbers = #tpu.dot_dimension_numbers<[1], [0], [0], [1], [0, 0, 1, 1], [], []>} : vector<8x8xbf16>, vector<8x16xbf16>, vector<8x16xf32> -> vector<8x16xf32>
    %cst_119 = arith.constant 0.000000e+00 : f32
    %417 = vector.broadcast %cst_119 : f32 to vector<8x16xf32>
    %418 = arith.cmpf ogt, %416, %417 : vector<8x16xf32>
    %cst_120 = arith.constant 0.000000e+00 : f32
    %419 = vector.broadcast %cst_120 : f32 to vector<8x16xf32>
    %420 = arith.minimumf %416, %419 : vector<8x16xf32>
    %421 = math.exp %420 : vector<8x16xf32>
    %cst_121 = arith.constant 1.000000e+00 : f32
    %422 = vector.broadcast %cst_121 : f32 to vector<8x16xf32>
    %423 = arith.subf %421, %422 : vector<8x16xf32>
    %424 = arith.select %418, %416, %423 : vector<8x16xi1>, vector<8x16xf32>
    %425 = arith.truncf %424 : vector<8x16xf32> to vector<8x16xbf16>
    %c16_122 = arith.constant 16 : index
    %c48_123 = arith.constant 48 : index
    %426 = vector.load %arg8[%c16_122, %c48_123] : memref<32x64xbf16, #tpu.memory_space<vmem>>, vector<8x16xbf16>
    tpu.vector_store %arg8[%c16_122, %c48_123], %425 {strides = array<i32>} : memref<32x64xbf16, #tpu.memory_space<vmem>>, vector<8x16xbf16>,
    %427 = vector.extract_strided_slice %3 {offsets = [24, 0], sizes = [8, 64], strides = [1, 1]} : vector<32x64xbf16> to vector<8x64xbf16>
    %428 = vector.extract_strided_slice %5 {offsets = [24, 0], sizes = [8, 8], strides = [1, 1]} : vector<32x8xf32> to vector<8x8xf32>
    %429 = vector.extract_strided_slice %9 {offsets = [24, 0], sizes = [8, 8], strides = [1, 1]} : vector<32x8xf32> to vector<8x8xf32>
    %430 = vector.extract_strided_slice %427 {offsets = [0, 0], sizes = [8, 16], strides = [1, 1]} : vector<8x64xbf16> to vector<8x16xbf16>
    %431 = vector.extract_strided_slice %428 {offsets = [0, 0], sizes = [8, 1], strides = [1, 1]} : vector<8x8xf32> to vector<8x1xf32>
    %432 = vector.extract_strided_slice %7 {offsets = [0, 24], sizes = [1, 8], strides = [1, 1]} : vector<4x32xf32> to vector<1x8xf32>
    %433 = vector.broadcast %431 : vector<8x1xf32> to vector<8x8xf32>
    %434 = vector.broadcast %432 : vector<1x8xf32> to vector<8x8xf32>
    %435 = arith.addf %433, %434 : vector<8x8xf32>
    %cst_124 = arith.constant 0.000000e+00 : f32
    %436 = vector.broadcast %cst_124 : f32 to vector<8x8xf32>
    %437 = arith.cmpf ogt, %435, %436 : vector<8x8xf32>
    %cst_125 = arith.constant 0.00999999977 : f32
    %438 = vector.broadcast %cst_125 : f32 to vector<8x8xf32>
    %439 = arith.mulf %438, %435 : vector<8x8xf32>
    %440 = arith.select %437, %435, %439 : vector<8x8xi1>, vector<8x8xf32>
    %441 = arith.addf %440, %429 : vector<8x8xf32>
    %cst_126 = arith.constant dense<0xFF800000> : vector<8xf32>
    %442 = vector.multi_reduction <maximumf>, %441, %cst_126 [0] : vector<8x8xf32> to vector<8xf32>
    %443 = vector.shape_cast %442 : vector<8xf32> to vector<1x8xf32>
    %444 = vector.broadcast %443 : vector<1x8xf32> to vector<8x8xf32>
    %445 = arith.subf %441, %444 : vector<8x8xf32>
    %446 = math.exp %445 : vector<8x8xf32>
    %cst_127 = arith.constant dense<0.000000e+00> : vector<8xf32>
    %447 = vector.multi_reduction <add>, %446, %cst_127 [0] : vector<8x8xf32> to vector<8xf32>
    %448 = vector.shape_cast %447 : vector<8xf32> to vector<1x8xf32>
    %449 = tpu.reciprocal %448 {approx = true} : vector<1x8xf32> -> vector<1x8xf32>
    %450 = vector.broadcast %449 : vector<1x8xf32> to vector<8x8xf32>
    %451 = arith.mulf %446, %450 : vector<8x8xf32>
    %452 = arith.truncf %451 : vector<8x8xf32> to vector<8x8xbf16>
    %cst_128 = arith.constant dense<0.000000e+00> : vector<8x16xf32>
    %453 = tpu.matmul %452, %430, %cst_128 {dimension_numbers = #tpu.dot_dimension_numbers<[1], [0], [0], [1], [0, 0, 1, 1], [], []>} : vector<8x8xbf16>, vector<8x16xbf16>, vector<8x16xf32> -> vector<8x16xf32>
    %cst_129 = arith.constant 0.000000e+00 : f32
    %454 = vector.broadcast %cst_129 : f32 to vector<8x16xf32>
    %455 = arith.cmpf ogt, %453, %454 : vector<8x16xf32>
    %cst_130 = arith.constant 0.000000e+00 : f32
    %456 = vector.broadcast %cst_130 : f32 to vector<8x16xf32>
    %457 = arith.minimumf %453, %456 : vector<8x16xf32>
    %458 = math.exp %457 : vector<8x16xf32>
    %cst_131 = arith.constant 1.000000e+00 : f32
    %459 = vector.broadcast %cst_131 : f32 to vector<8x16xf32>
    %460 = arith.subf %458, %459 : vector<8x16xf32>
    %461 = arith.select %455, %453, %460 : vector<8x16xi1>, vector<8x16xf32>
    %462 = arith.truncf %461 : vector<8x16xf32> to vector<8x16xbf16>
    %c24 = arith.constant 24 : index
    %c0_132 = arith.constant 0 : index
    %463 = vector.load %arg8[%c24, %c0_132] : memref<32x64xbf16, #tpu.memory_space<vmem>>, vector<8x16xbf16>
    tpu.vector_store %arg8[%c24, %c0_132], %462 {strides = array<i32>} : memref<32x64xbf16, #tpu.memory_space<vmem>>, vector<8x16xbf16>,
    %464 = vector.extract_strided_slice %427 {offsets = [0, 16], sizes = [8, 16], strides = [1, 1]} : vector<8x64xbf16> to vector<8x16xbf16>
    %465 = vector.extract_strided_slice %428 {offsets = [0, 1], sizes = [8, 1], strides = [1, 1]} : vector<8x8xf32> to vector<8x1xf32>
    %466 = vector.extract_strided_slice %7 {offsets = [1, 24], sizes = [1, 8], strides = [1, 1]} : vector<4x32xf32> to vector<1x8xf32>
    %467 = vector.broadcast %465 : vector<8x1xf32> to vector<8x8xf32>
    %468 = vector.broadcast %466 : vector<1x8xf32> to vector<8x8xf32>
    %469 = arith.addf %467, %468 : vector<8x8xf32>
    %cst_133 = arith.constant 0.000000e+00 : f32
    %470 = vector.broadcast %cst_133 : f32 to vector<8x8xf32>
    %471 = arith.cmpf ogt, %469, %470 : vector<8x8xf32>
    %cst_134 = arith.constant 0.00999999977 : f32
    %472 = vector.broadcast %cst_134 : f32 to vector<8x8xf32>
    %473 = arith.mulf %472, %469 : vector<8x8xf32>
    %474 = arith.select %471, %469, %473 : vector<8x8xi1>, vector<8x8xf32>
    %475 = arith.addf %474, %429 : vector<8x8xf32>
    %cst_135 = arith.constant dense<0xFF800000> : vector<8xf32>
    %476 = vector.multi_reduction <maximumf>, %475, %cst_135 [0] : vector<8x8xf32> to vector<8xf32>
    %477 = vector.shape_cast %476 : vector<8xf32> to vector<1x8xf32>
    %478 = vector.broadcast %477 : vector<1x8xf32> to vector<8x8xf32>
    %479 = arith.subf %475, %478 : vector<8x8xf32>
    %480 = math.exp %479 : vector<8x8xf32>
    %cst_136 = arith.constant dense<0.000000e+00> : vector<8xf32>
    %481 = vector.multi_reduction <add>, %480, %cst_136 [0] : vector<8x8xf32> to vector<8xf32>
    %482 = vector.shape_cast %481 : vector<8xf32> to vector<1x8xf32>
    %483 = tpu.reciprocal %482 {approx = true} : vector<1x8xf32> -> vector<1x8xf32>
    %484 = vector.broadcast %483 : vector<1x8xf32> to vector<8x8xf32>
    %485 = arith.mulf %480, %484 : vector<8x8xf32>
    %486 = arith.truncf %485 : vector<8x8xf32> to vector<8x8xbf16>
    %cst_137 = arith.constant dense<0.000000e+00> : vector<8x16xf32>
    %487 = tpu.matmul %486, %464, %cst_137 {dimension_numbers = #tpu.dot_dimension_numbers<[1], [0], [0], [1], [0, 0, 1, 1], [], []>} : vector<8x8xbf16>, vector<8x16xbf16>, vector<8x16xf32> -> vector<8x16xf32>
    %cst_138 = arith.constant 0.000000e+00 : f32
    %488 = vector.broadcast %cst_138 : f32 to vector<8x16xf32>
    %489 = arith.cmpf ogt, %487, %488 : vector<8x16xf32>
    %cst_139 = arith.constant 0.000000e+00 : f32
    %490 = vector.broadcast %cst_139 : f32 to vector<8x16xf32>
    %491 = arith.minimumf %487, %490 : vector<8x16xf32>
    %492 = math.exp %491 : vector<8x16xf32>
    %cst_140 = arith.constant 1.000000e+00 : f32
    %493 = vector.broadcast %cst_140 : f32 to vector<8x16xf32>
    %494 = arith.subf %492, %493 : vector<8x16xf32>
    %495 = arith.select %489, %487, %494 : vector<8x16xi1>, vector<8x16xf32>
    %496 = arith.truncf %495 : vector<8x16xf32> to vector<8x16xbf16>
    %c24_141 = arith.constant 24 : index
    %c16_142 = arith.constant 16 : index
    %497 = vector.load %arg8[%c24_141, %c16_142] : memref<32x64xbf16, #tpu.memory_space<vmem>>, vector<8x16xbf16>
    tpu.vector_store %arg8[%c24_141, %c16_142], %496 {strides = array<i32>} : memref<32x64xbf16, #tpu.memory_space<vmem>>, vector<8x16xbf16>,
    %498 = vector.extract_strided_slice %427 {offsets = [0, 32], sizes = [8, 16], strides = [1, 1]} : vector<8x64xbf16> to vector<8x16xbf16>
    %499 = vector.extract_strided_slice %428 {offsets = [0, 2], sizes = [8, 1], strides = [1, 1]} : vector<8x8xf32> to vector<8x1xf32>
    %500 = vector.extract_strided_slice %7 {offsets = [2, 24], sizes = [1, 8], strides = [1, 1]} : vector<4x32xf32> to vector<1x8xf32>
    %501 = vector.broadcast %499 : vector<8x1xf32> to vector<8x8xf32>
    %502 = vector.broadcast %500 : vector<1x8xf32> to vector<8x8xf32>
    %503 = arith.addf %501, %502 : vector<8x8xf32>
    %cst_143 = arith.constant 0.000000e+00 : f32
    %504 = vector.broadcast %cst_143 : f32 to vector<8x8xf32>
    %505 = arith.cmpf ogt, %503, %504 : vector<8x8xf32>
    %cst_144 = arith.constant 0.00999999977 : f32
    %506 = vector.broadcast %cst_144 : f32 to vector<8x8xf32>
    %507 = arith.mulf %506, %503 : vector<8x8xf32>
    %508 = arith.select %505, %503, %507 : vector<8x8xi1>, vector<8x8xf32>
    %509 = arith.addf %508, %429 : vector<8x8xf32>
    %cst_145 = arith.constant dense<0xFF800000> : vector<8xf32>
    %510 = vector.multi_reduction <maximumf>, %509, %cst_145 [0] : vector<8x8xf32> to vector<8xf32>
    %511 = vector.shape_cast %510 : vector<8xf32> to vector<1x8xf32>
    %512 = vector.broadcast %511 : vector<1x8xf32> to vector<8x8xf32>
    %513 = arith.subf %509, %512 : vector<8x8xf32>
    %514 = math.exp %513 : vector<8x8xf32>
    %cst_146 = arith.constant dense<0.000000e+00> : vector<8xf32>
    %515 = vector.multi_reduction <add>, %514, %cst_146 [0] : vector<8x8xf32> to vector<8xf32>
    %516 = vector.shape_cast %515 : vector<8xf32> to vector<1x8xf32>
    %517 = tpu.reciprocal %516 {approx = true} : vector<1x8xf32> -> vector<1x8xf32>
    %518 = vector.broadcast %517 : vector<1x8xf32> to vector<8x8xf32>
    %519 = arith.mulf %514, %518 : vector<8x8xf32>
    %520 = arith.truncf %519 : vector<8x8xf32> to vector<8x8xbf16>
    %cst_147 = arith.constant dense<0.000000e+00> : vector<8x16xf32>
    %521 = tpu.matmul %520, %498, %cst_147 {dimension_numbers = #tpu.dot_dimension_numbers<[1], [0], [0], [1], [0, 0, 1, 1], [], []>} : vector<8x8xbf16>, vector<8x16xbf16>, vector<8x16xf32> -> vector<8x16xf32>
    %cst_148 = arith.constant 0.000000e+00 : f32
    %522 = vector.broadcast %cst_148 : f32 to vector<8x16xf32>
    %523 = arith.cmpf ogt, %521, %522 : vector<8x16xf32>
    %cst_149 = arith.constant 0.000000e+00 : f32
    %524 = vector.broadcast %cst_149 : f32 to vector<8x16xf32>
    %525 = arith.minimumf %521, %524 : vector<8x16xf32>
    %526 = math.exp %525 : vector<8x16xf32>
    %cst_150 = arith.constant 1.000000e+00 : f32
    %527 = vector.broadcast %cst_150 : f32 to vector<8x16xf32>
    %528 = arith.subf %526, %527 : vector<8x16xf32>
    %529 = arith.select %523, %521, %528 : vector<8x16xi1>, vector<8x16xf32>
    %530 = arith.truncf %529 : vector<8x16xf32> to vector<8x16xbf16>
    %c24_151 = arith.constant 24 : index
    %c32_152 = arith.constant 32 : index
    %531 = vector.load %arg8[%c24_151, %c32_152] : memref<32x64xbf16, #tpu.memory_space<vmem>>, vector<8x16xbf16>
    tpu.vector_store %arg8[%c24_151, %c32_152], %530 {strides = array<i32>} : memref<32x64xbf16, #tpu.memory_space<vmem>>, vector<8x16xbf16>,
    %532 = vector.extract_strided_slice %427 {offsets = [0, 48], sizes = [8, 16], strides = [1, 1]} : vector<8x64xbf16> to vector<8x16xbf16>
    %533 = vector.extract_strided_slice %428 {offsets = [0, 3], sizes = [8, 1], strides = [1, 1]} : vector<8x8xf32> to vector<8x1xf32>
    %534 = vector.extract_strided_slice %7 {offsets = [3, 24], sizes = [1, 8], strides = [1, 1]} : vector<4x32xf32> to vector<1x8xf32>
    %535 = vector.broadcast %533 : vector<8x1xf32> to vector<8x8xf32>
    %536 = vector.broadcast %534 : vector<1x8xf32> to vector<8x8xf32>
    %537 = arith.addf %535, %536 : vector<8x8xf32>
    %cst_153 = arith.constant 0.000000e+00 : f32
    %538 = vector.broadcast %cst_153 : f32 to vector<8x8xf32>
    %539 = arith.cmpf ogt, %537, %538 : vector<8x8xf32>
    %cst_154 = arith.constant 0.00999999977 : f32
    %540 = vector.broadcast %cst_154 : f32 to vector<8x8xf32>
    %541 = arith.mulf %540, %537 : vector<8x8xf32>
    %542 = arith.select %539, %537, %541 : vector<8x8xi1>, vector<8x8xf32>
    %543 = arith.addf %542, %429 : vector<8x8xf32>
    %cst_155 = arith.constant dense<0xFF800000> : vector<8xf32>
    %544 = vector.multi_reduction <maximumf>, %543, %cst_155 [0] : vector<8x8xf32> to vector<8xf32>
    %545 = vector.shape_cast %544 : vector<8xf32> to vector<1x8xf32>
    %546 = vector.broadcast %545 : vector<1x8xf32> to vector<8x8xf32>
    %547 = arith.subf %543, %546 : vector<8x8xf32>
    %548 = math.exp %547 : vector<8x8xf32>
    %cst_156 = arith.constant dense<0.000000e+00> : vector<8xf32>
    %549 = vector.multi_reduction <add>, %548, %cst_156 [0] : vector<8x8xf32> to vector<8xf32>
    %550 = vector.shape_cast %549 : vector<8xf32> to vector<1x8xf32>
    %551 = tpu.reciprocal %550 {approx = true} : vector<1x8xf32> -> vector<1x8xf32>
    %552 = vector.broadcast %551 : vector<1x8xf32> to vector<8x8xf32>
    %553 = arith.mulf %548, %552 : vector<8x8xf32>
    %554 = arith.truncf %553 : vector<8x8xf32> to vector<8x8xbf16>
    %cst_157 = arith.constant dense<0.000000e+00> : vector<8x16xf32>
    %555 = tpu.matmul %554, %532, %cst_157 {dimension_numbers = #tpu.dot_dimension_numbers<[1], [0], [0], [1], [0, 0, 1, 1], [], []>} : vector<8x8xbf16>, vector<8x16xbf16>, vector<8x16xf32> -> vector<8x16xf32>
    %cst_158 = arith.constant 0.000000e+00 : f32
    %556 = vector.broadcast %cst_158 : f32 to vector<8x16xf32>
    %557 = arith.cmpf ogt, %555, %556 : vector<8x16xf32>
    %cst_159 = arith.constant 0.000000e+00 : f32
    %558 = vector.broadcast %cst_159 : f32 to vector<8x16xf32>
    %559 = arith.minimumf %555, %558 : vector<8x16xf32>
    %560 = math.exp %559 : vector<8x16xf32>
    %cst_160 = arith.constant 1.000000e+00 : f32
    %561 = vector.broadcast %cst_160 : f32 to vector<8x16xf32>
    %562 = arith.subf %560, %561 : vector<8x16xf32>
    %563 = arith.select %557, %555, %562 : vector<8x16xi1>, vector<8x16xf32>
    %564 = arith.truncf %563 : vector<8x16xf32> to vector<8x16xbf16>
    %c24_161 = arith.constant 24 : index
    %c48_162 = arith.constant 48 : index
    %565 = vector.load %arg8[%c24_161, %c48_162] : memref<32x64xbf16, #tpu.memory_space<vmem>>, vector<8x16xbf16>
    tpu.vector_store %arg8[%c24_161, %c48_162], %564 {strides = array<i32>} : memref<32x64xbf16, #tpu.memory_space<vmem>>, vector<8x16xbf16>,
    %c0_163 = arith.constant 0 : index
    %c0_164 = arith.constant 0 : index
    %566 = vector.load %arg8[%c0_163, %c0_164] : memref<32x64xbf16, #tpu.memory_space<vmem>>, vector<32x64xbf16>
    %c0_165 = arith.constant 0 : index
    %c0_166 = arith.constant 0 : index
    %567 = vector.load %arg5[%c0_165, %c0_166] : memref<64x8xbf16, #tpu.memory_space<vmem>>, vector<64x8xbf16>
    %cst_167 = arith.constant dense<0.000000e+00> : vector<32x8xf32>
    %568 = tpu.matmul %566, %567, %cst_167 {dimension_numbers = #tpu.dot_dimension_numbers<[1], [0], [0], [1], [0, 0, 1, 1], [], []>} : vector<32x64xbf16>, vector<64x8xbf16>, vector<32x8xf32> -> vector<32x8xf32>
    %c0_168 = arith.constant 0 : index
    %c0_169 = arith.constant 0 : index
    %569 = vector.load %arg6[%c0_168, %c0_169] : memref<1x8xf32, #tpu.memory_space<vmem>>, vector<1x8xf32>
    %570 = vector.broadcast %569 : vector<1x8xf32> to vector<32x8xf32>
    %571 = arith.addf %568, %570 : vector<32x8xf32>
    %cst_170 = arith.constant 0.000000e+00 : f32
    %572 = vector.broadcast %cst_170 : f32 to vector<32x8xf32>
    %573 = arith.cmpf ogt, %571, %572 : vector<32x8xf32>
    %cst_171 = arith.constant 0.000000e+00 : f32
    %574 = vector.broadcast %cst_171 : f32 to vector<32x8xf32>
    %575 = arith.minimumf %571, %574 : vector<32x8xf32>
    %576 = math.exp %575 : vector<32x8xf32>
    %cst_172 = arith.constant 1.000000e+00 : f32
    %577 = vector.broadcast %cst_172 : f32 to vector<32x8xf32>
    %578 = arith.subf %576, %577 : vector<32x8xf32>
    %579 = arith.select %573, %571, %578 : vector<32x8xi1>, vector<32x8xf32>
    %cst_173 = arith.constant dense<0xFF800000> : vector<32xf32>
    %580 = vector.multi_reduction <maximumf>, %579, %cst_173 [1] : vector<32x8xf32> to vector<32xf32>
    %581 = vector.shape_cast %580 : vector<32xf32> to vector<32x1xf32>
    %582 = vector.broadcast %581 : vector<32x1xf32> to vector<32x8xf32>
    %583 = arith.subf %579, %582 : vector<32x8xf32>
    %584 = math.exp %583 : vector<32x8xf32>
    %cst_174 = arith.constant dense<0.000000e+00> : vector<32xf32>
    %585 = vector.multi_reduction <add>, %584, %cst_174 [1] : vector<32x8xf32> to vector<32xf32>
    %586 = vector.shape_cast %585 : vector<32xf32> to vector<32x1xf32>
    %587 = math.log %586 : vector<32x1xf32>
    %588 = vector.broadcast %587 : vector<32x1xf32> to vector<32x8xf32>
    %589 = arith.subf %583, %588 : vector<32x8xf32>
    %c0_175 = arith.constant 0 : index
    %c0_176 = arith.constant 0 : index
    %590 = vector.load %arg7[%c0_175, %c0_176] : memref<32x8xf32, #tpu.memory_space<vmem>>, vector<32x8xf32>
    tpu.vector_store %arg7[%c0_175, %c0_176], %589 {strides = array<i32>} : memref<32x8xf32, #tpu.memory_space<vmem>>, vector<32x8xf32>,
    return
  }
  func.func @transform_0(%arg0: i32) -> (i32, i32) {
    %c0_i32 = arith.constant 0 : i32
    %c0_i32_0 = arith.constant 0 : i32
    return %arg0, %c0_i32 : i32, i32
  }
  func.func @transform_1(%arg0: i32) -> (i32, i32) {
    %c0_i32 = arith.constant 0 : i32
    %c0_i32_0 = arith.constant 0 : i32
    %c0_i32_1 = arith.constant 0 : i32
    return %c0_i32, %c0_i32_0 : i32, i32
  }
  func.func @transform_2(%arg0: i32) -> (i32, i32) {
    %c0_i32 = arith.constant 0 : i32
    %c0_i32_0 = arith.constant 0 : i32
    %c0_i32_1 = arith.constant 0 : i32
    return %c0_i32, %c0_i32_0 : i32, i32
  }
  func.func @transform_3(%arg0: i32) -> (i32, i32) {
    %c0_i32 = arith.constant 0 : i32
    %c0_i32_0 = arith.constant 0 : i32
    return %arg0, %c0_i32 : i32, i32
  }
  func.func @transform_4(%arg0: i32) -> (i32, i32) {
    %c0_i32 = arith.constant 0 : i32
    %c0_i32_0 = arith.constant 0 : i32
    %c0_i32_1 = arith.constant 0 : i32
    return %c0_i32, %c0_i32_0 : i32, i32
  }
  func.func @transform_5(%arg0: i32) -> (i32, i32) {
    %c0_i32 = arith.constant 0 : i32
    %c0_i32_0 = arith.constant 0 : i32
    %c0_i32_1 = arith.constant 0 : i32
    return %c0_i32, %c0_i32_0 : i32, i32
  }
  func.func @transform_6(%arg0: i32) -> (i32, i32) {
    %c0_i32 = arith.constant 0 : i32
    %c0_i32_0 = arith.constant 0 : i32
    return %arg0, %c0_i32 : i32, i32
  }
}

</mosaic_0001>

<llo_original>
// kernel: tpu_custom_call.1
$region0: #{tpu_custom_call.1}
  #allocation0 [shape = 'u32[]', space=smem, size = 0x4, offset = 0x4, fixed_abs, tag = 'smem constant byte address 0x4 - core index']
  #allocation1 [shape = 'u32[144,128]{1,0:T(1,128)}', space=vmem, size = 0x12000, scoped, tag = 'internal scratch']
  #allocation2 [shape = 'bf16[32,64]{1,0:T(16,128)(2,1)}', space=vmem, size = 0x2000, scoped, tag = 'scratch operand']
  %s0 = inlined_call_operand.vmem [shape: bf16[64,32], index: 0, kind: input, shape index: {}]
  %s1 = inlined_call_operand.vmem [shape: bf16[32,64], index: 1, kind: input, shape index: {}]
  %s2 = inlined_call_operand.vmem [shape: bf16[64,8], index: 2, kind: input, shape index: {}]
  %s3 = inlined_call_operand.vmem [shape: bf16[64,8], index: 3, kind: input, shape index: {}]
  %s4 = inlined_call_operand.vmem [shape: bf16[64,8], index: 4, kind: input, shape index: {}]
  %s5 = inlined_call_operand.vmem [shape: f32[1,8], index: 5, kind: input, shape index: {}]
  %s6 = inlined_call_operand.vmem [shape: f32[64,8], index: 6, kind: output, shape index: {}]
  %s7 = sld [smem:[#allocation0]]
  $region57: #{tpu_custom_call.1} parent=0
    _
  %s9 = ssub.s32 1, %s7
  %s10 = scalar_select 0, %s9, %s7
  loop: start=0, step=1, limit=4
  $region2: #{tpu_custom_call.1} parent=0 // loop_pre_header
    _
  $region3: #{tpu_custom_call.1} parent=0 // loop_header
    %s12 = sphi 0, %s16
    %p13 = scmp.ge.s32.totalorder %s12, 4
    %s22 = sphi 0, %s24
    %s25 = sphi 0, %s22
    %s26 = sphi 0, %s25
    %s42 = sphi 0, %s26
    %s46 = sphi 0, %s46
    %s48 = sphi 0, %s46
    %s49 = sphi 0, %s48
    %s63 = sphi 0, %s49
    %s67 = sphi 0, %s67
    %s69 = sphi 0, %s67
    %s70 = sphi 0, %s69
    %s84 = sphi 0, %s70
    %s90 = sphi 0, %s92
    %s93 = sphi 0, %s90
    %s94 = sphi 0, %s93
    %s110 = sphi 0, %s94
    %s114 = sphi 0, %s114
    %s116 = sphi 0, %s114
    %s117 = sphi 0, %s116
    %s131 = sphi 0, %s117
    %s135 = sphi 0, %s135
    %s137 = sphi 0, %s135
    %s138 = sphi 0, %s137
    %s152 = sphi 0, %s138
    %s158 = sphi 0, %s160
    %s161 = sphi 0, %s158
    %s162 = sphi 0, %s161
    %s178 = sphi 0, %s162
  $region4: #{tpu_custom_call.1} parent=0 // loop_header_branch
    %15 = sbr.rel (%p13) target = $region8
  $region5: #{tpu_custom_call.1} parent=0 // loop_body
    %s17 = ssub.s32 %s12, 1
    %s18 = ssub.s32 %s12, 2
    %s19 = sadd.s32 %s12, 1
    %s20 = ssub.s32 %s12, %s19
    %p21 = scmp.eq.s32.totalorder %s20, 0
    %s23 = sadd.s32 %s22, 1
    %s24 = scalar_select %p21, %s22, %s23
    %p27 = pneg %p21
    %p28 = scmp.eq.s32.totalorder %s12, 1
    %p29 = por %p27, %p28
    %p30 = scmp.ne.s32.totalorder %s22, %s25
    %p31 = scmp.eq.s32.totalorder %s12, 0
    %p32 = por %p30, %p31
    %p33 = scmp.ne.s32.totalorder %s22, %s25
    %p34 = scmp.eq.s32.totalorder %s17, 1
    %p35 = por %p33, %p34
    %p36 = scmp.ne.s32.totalorder %s25, %s26
    %p37 = scmp.eq.s32.totalorder %s17, 0
    %p38 = por %p36, %p37
    %p39 = scmp.ne.s32.totalorder %s25, %s26
    %p40 = scmp.eq.s32.totalorder %s18, 1
    %p41 = por %p39, %p40
    %p43 = scmp.ne.s32.totalorder %s26, %s42
    %p44 = scmp.eq.s32.totalorder %s18, 0
    %p45 = por %p43, %p44
    %s47 = sadd.s32 %s46, 1
    %p50 = scmp.eq.s32.totalorder %s12, 1
    %p51 = scmp.ne.s32.totalorder %s46, %s48
    %p52 = scmp.eq.s32.totalorder %s12, 0
    %p53 = por %p51, %p52
    %p54 = scmp.ne.s32.totalorder %s46, %s48
    %p55 = scmp.eq.s32.totalorder %s17, 1
    %p56 = por %p54, %p55
    %p57 = scmp.ne.s32.totalorder %s48, %s49
    %p58 = scmp.eq.s32.totalorder %s17, 0
    %p59 = por %p57, %p58
    %p60 = scmp.ne.s32.totalorder %s48, %s49
    %p61 = scmp.eq.s32.totalorder %s18, 1
    %p62 = por %p60, %p61
    %p64 = scmp.ne.s32.totalorder %s49, %s63
    %p65 = scmp.eq.s32.totalorder %s18, 0
    %p66 = por %p64, %p65
    %s68 = sadd.s32 %s67, 1
    %p71 = scmp.eq.s32.totalorder %s12, 1
    %p72 = scmp.ne.s32.totalorder %s67, %s69
    %p73 = scmp.eq.s32.totalorder %s12, 0
    %p74 = por %p72, %p73
    %p75 = scmp.ne.s32.totalorder %s67, %s69
    %p76 = scmp.eq.s32.totalorder %s17, 1
    %p77 = por %p75, %p76
    %p78 = scmp.ne.s32.totalorder %s69, %s70
    %p79 = scmp.eq.s32.totalorder %s17, 0
    %p80 = por %p78, %p79
    %p81 = scmp.ne.s32.totalorder %s69, %s70
    %p82 = scmp.eq.s32.totalorder %s18, 1
    %p83 = por %p81, %p82
    %p85 = scmp.ne.s32.totalorder %s70, %s84
    %p86 = scmp.eq.s32.totalorder %s18, 0
    %p87 = por %p85, %p86
    %s88 = ssub.s32 %s12, %s19
    %p89 = scmp.eq.s32.totalorder %s88, 0
    %s91 = sadd.s32 %s90, 1
    %s92 = scalar_select %p89, %s90, %s91
    %p95 = pneg %p89
    %p96 = scmp.eq.s32.totalorder %s12, 1
    %p97 = por %p95, %p96
    %p98 = scmp.ne.s32.totalorder %s90, %s93
    %p99 = scmp.eq.s32.totalorder %s12, 0
    %p100 = por %p98, %p99
    %p101 = scmp.ne.s32.totalorder %s90, %s93
    %p102 = scmp.eq.s32.totalorder %s17, 1
    %p103 = por %p101, %p102
    %p104 = scmp.ne.s32.totalorder %s93, %s94
    %p105 = scmp.eq.s32.totalorder %s17, 0
    %p106 = por %p104, %p105
    %p107 = scmp.ne.s32.totalorder %s93, %s94
    %p108 = scmp.eq.s32.totalorder %s18, 1
    %p109 = por %p107, %p108
    %p111 = scmp.ne.s32.totalorder %s94, %s110
    %p112 = scmp.eq.s32.totalorder %s18, 0
    %p113 = por %p111, %p112
    %s115 = sadd.s32 %s114, 1
    %p118 = scmp.eq.s32.totalorder %s12, 1
    %p119 = scmp.ne.s32.totalorder %s114, %s116
    %p120 = scmp.eq.s32.totalorder %s12, 0
    %p121 = por %p119, %p120
    %p122 = scmp.ne.s32.totalorder %s114, %s116
    %p123 = scmp.eq.s32.totalorder %s17, 1
    %p124 = por %p122, %p123
    %p125 = scmp.ne.s32.totalorder %s116, %s117
    %p126 = scmp.eq.s32.totalorder %s17, 0
    %p127 = por %p125, %p126
    %p128 = scmp.ne.s32.totalorder %s116, %s117
    %p129 = scmp.eq.s32.totalorder %s18, 1
    %p130 = por %p128, %p129
    %p132 = scmp.ne.s32.totalorder %s117, %s131
    %p133 = scmp.eq.s32.totalorder %s18, 0
    %p134 = por %p132, %p133
    %s136 = sadd.s32 %s135, 1
    %p139 = scmp.eq.s32.totalorder %s12, 1
    %p140 = scmp.ne.s32.totalorder %s135, %s137
    %p141 = scmp.eq.s32.totalorder %s12, 0
    %p142 = por %p140, %p141
    %p143 = scmp.ne.s32.totalorder %s135, %s137
    %p144 = scmp.eq.s32.totalorder %s17, 1
    %p145 = por %p143, %p144
    %p146 = scmp.ne.s32.totalorder %s137, %s138
    %p147 = scmp.eq.s32.totalorder %s17, 0
    %p148 = por %p146, %p147
    %p149 = scmp.ne.s32.totalorder %s137, %s138
    %p150 = scmp.eq.s32.totalorder %s18, 1
    %p151 = por %p149, %p150
    %p153 = scmp.ne.s32.totalorder %s138, %s152
    %p154 = scmp.eq.s32.totalorder %s18, 0
    %p155 = por %p153, %p154
    %s156 = ssub.s32 %s12, %s19
    %p157 = scmp.eq.s32.totalorder %s156, 0
    %s159 = sadd.s32 %s158, 1
    %s160 = scalar_select %p157, %s158, %s159
    %p163 = pneg %p157
    %p164 = scmp.eq.s32.totalorder %s12, 1
    %p165 = por %p163, %p164
    %p166 = scmp.ne.s32.totalorder %s158, %s161
    %p167 = scmp.eq.s32.totalorder %s12, 0
    %p168 = por %p166, %p167
    %p169 = scmp.ne.s32.totalorder %s158, %s161
    %p170 = scmp.eq.s32.totalorder %s17, 1
    %p171 = por %p169, %p170
    %p172 = scmp.ne.s32.totalorder %s161, %s162
    %p173 = scmp.eq.s32.totalorder %s17, 0
    %p174 = por %p172, %p173
    %p175 = scmp.ne.s32.totalorder %s161, %s162
    %p176 = scmp.eq.s32.totalorder %s18, 1
    %p177 = por %p175, %p176
    %p179 = scmp.ne.s32.totalorder %s162, %s178
    %p180 = scmp.eq.s32.totalorder %s18, 0
    %p181 = por %p179, %p180
    %p182 = scmp.le.s32.totalorder 1, %s12
    %p183 = scmp.lt.s32.totalorder %s12, 3
    %p184 = pnand %p182, %p183
    %p185 = pneg %p184
    // Predicated region
    $region9: #{tpu_custom_call.1} parent=5 // pred_check
      _
    $region10: #{tpu_custom_call.1} parent=5 // pred_check_branch
      %187 = sbr.rel (%p184) target = $region12
    $region11: #{tpu_custom_call.1} parent=5 // pred_region
      %s188 = ssub.s32 %s12, 1
      // Predicated region
      $region13: #{tpu_custom_call.1} parent=11 // pred_check
        %p189 = pneg %p59
      $region14: #{tpu_custom_call.1} parent=11 // pred_check_branch
        %191 = sbr.rel (%p189) target = $region16
      $region15: #{tpu_custom_call.1} parent=11 // pred_region
        _
      $region16: #{tpu_custom_call.1} parent=11 // pred_fallthru
        _
      // Predicated region
      $region17: #{tpu_custom_call.1} parent=11 // pred_check
        %p192 = pneg %p80
      $region18: #{tpu_custom_call.1} parent=11 // pred_check_branch
        %194 = sbr.rel (%p192) target = $region20
      $region19: #{tpu_custom_call.1} parent=11 // pred_region
        _
      $region20: #{tpu_custom_call.1} parent=11 // pred_fallthru
        _
      // Predicated region
      $region21: #{tpu_custom_call.1} parent=11 // pred_check
        %p195 = pneg %p127
      $region22: #{tpu_custom_call.1} parent=11 // pred_check_branch
        %197 = sbr.rel (%p195) target = $region24
      $region23: #{tpu_custom_call.1} parent=11 // pred_region
        _
      $region24: #{tpu_custom_call.1} parent=11 // pred_fallthru
        _
      // Predicated region
      $region25: #{tpu_custom_call.1} parent=11 // pred_check
        %p198 = pneg %p148
      $region26: #{tpu_custom_call.1} parent=11 // pred_check_branch
        %200 = sbr.rel (%p198) target = $region28
      $region27: #{tpu_custom_call.1} parent=11 // pred_region
        _
      $region28: #{tpu_custom_call.1} parent=11 // pred_fallthru
        _
    $region12: #{tpu_custom_call.1} parent=5 // pred_fallthru
      _
    %p201 = scmp.lt.s32.totalorder %s12, 2
    // Predicated region
    $region29: #{tpu_custom_call.1} parent=5 // pred_check
      %p202 = pneg %p201
    $region30: #{tpu_custom_call.1} parent=5 // pred_check_branch
      %204 = sbr.rel (%p202) target = $region32
    $region31: #{tpu_custom_call.1} parent=5 // pred_region
      // Predicated region
      $region33: #{tpu_custom_call.1} parent=31 // pred_check
        %p205 = pneg %p32
      $region34: #{tpu_custom_call.1} parent=31 // pred_check_branch
        %207 = sbr.rel (%p205) target = $region36
      $region35: #{tpu_custom_call.1} parent=31 // pred_region
        %s208 = smul.u32 4, %s12
        %p209 = scmp.lt.s32.totalorder %s208, 7
        %s210 = scalar_select %p209, %s208, 7
        %s211 = smul.addr %s210, 4
        %s212 = scalar_lea.vmem %s0, %s211
        %s213 = smul.u32 4, %s12
      $region36: #{tpu_custom_call.1} parent=31 // pred_fallthru
        _
      // Predicated region
      $region37: #{tpu_custom_call.1} parent=31 // pred_check
        %p214 = pneg %p100
      $region38: #{tpu_custom_call.1} parent=31 // pred_check_branch
        %216 = sbr.rel (%p214) target = $region40
      $region39: #{tpu_custom_call.1} parent=31 // pred_region
        %s217 = smul.u32 4, %s12
        %p218 = scmp.lt.s32.totalorder %s217, 7
        %s219 = scalar_select %p218, %s217, 7
        %s220 = smul.addr %s219, 4
        %s221 = scalar_lea.vmem %s3, %s220
        %s222 = smul.u32 4, %s12
      $region40: #{tpu_custom_call.1} parent=31 // pred_fallthru
        _
    $region32: #{tpu_custom_call.1} parent=5 // pred_fallthru
      _
    %p223 = scmp.le.s32.totalorder 1, %s12
    %p224 = scmp.lt.s32.totalorder %s12, 3
    %p225 = pnand %p223, %p224
    %p226 = pneg %p225
    // Predicated region
    $region41: #{tpu_custom_call.1} parent=5 // pred_check
      _
    $region42: #{tpu_custom_call.1} parent=5 // pred_check_branch
      %228 = sbr.rel (%p225) target = $region44
    $region43: #{tpu_custom_call.1} parent=5 // pred_region
      %s229 = ssub.s32 %s12, 1
      %s230 = smul.u32 4, %s17
      %p231 = scmp.lt.s32.totalorder %s230, 7
      %s232 = scalar_select %p231, %s230, 7
      %s233 = smul.addr %s232, 4
      %s234 = scalar_lea.vmem %s0, %s233
      %p235 = pneg %p38
      %p236 = pneg %p35
      %p237 = pneg %p59
      %p238 = pneg %p56
      %p239 = pneg %p80
      %p240 = pneg %p77
      %s241 = smul.u32 4, %s17
      %p242 = scmp.lt.s32.totalorder %s241, 7
      %s243 = scalar_select %p242, %s241, 7
      %s244 = smul.addr %s243, 4
      %s245 = scalar_lea.vmem %s3, %s244
      %p246 = pneg %p106
      %p247 = pneg %p103
      %p248 = pneg %p127
      %p249 = pneg %p124
      %p250 = pneg %p148
      %p251 = pneg %p145
      %p252 = pneg %p174
      %p253 = pneg %p171
      %s254 = smul.u32 4, %s17
      %p255 = scmp.lt.s32.totalorder %s254, 7
      %s256 = scalar_select %p255, %s254, 7
      %s257 = smul.addr %s256, 8
      %s258 = scalar_lea.vmem %s6, %s257
      %s259 = smul.u32 4, %s17
      %p260 = scmp.lt.s32.totalorder %s259, 7
      %s261 = scalar_select %p260, %s259, 7
      %s262 = smul.addr %s261, 4
      %s263 = scalar_lea.vmem %s0, %s262
      %s264 = smul.u32 4, %s17
      %s265 = smul.u32 4, %s17
      %p266 = scmp.lt.s32.totalorder %s265, 7
      %s267 = scalar_select %p266, %s265, 7
      %s268 = smul.addr %s267, 4
      %s269 = scalar_lea.vmem %s3, %s268
      %s270 = smul.u32 4, %s17
      %s271 = smul.u32 4, %s17
      %p272 = scmp.lt.s32.totalorder %s271, 7
      %s273 = scalar_select %p272, %s271, 7
      %s274 = smul.addr %s273, 8
      %s275 = scalar_lea.vmem %s6, %s274
      %s276 = smul.u32 4, %s17
      %v278 = vld [vmem:[%s263] sm:$0xf]
      %v279 = vld [vmem:[%s263 + $0x4] sm:$0xf]
      %v280 = vld [vmem:[%s263 + $0x8] sm:$0xf]
      %v281 = vld [vmem:[%s263 + $0xc] sm:$0xf]
      %v282 = vld [vmem:[%s1] sm:$0xf]
      %v283 = vld [vmem:[%s1 + $0x4] sm:$0xf]
      %v284 = vld [vmem:[%s1 + $0x8] sm:$0xf]
      %v285 = vld [vmem:[%s1 + $0xc] sm:$0xf]
      %v290 = vunpack.c.l.b16 %v278
      %v291 = vunpack.c.l.b16 %v279
      %v292 = vunpack.c.l.b16 %v280
      %v293 = vunpack.c.l.b16 %v281
      %v294 = vpack.c.b16 %v291, %v290
      %v295 = vpack.c.b16 %v293, %v292
      %v300 = vunpack.c.l.b16 %v282
      %v301 = vunpack.c.l.b16 %v283
      %v302 = vunpack.c.l.b16 %v284
      %v303 = vunpack.c.l.b16 %v285
      %v304 = vpack.c.b16 %v301, %v300
      %v305 = vpack.c.b16 %v303, %v302
      %vm308 = vcmask 261120
      %v310 = vsel %vm308, %v294, 0
      %v313 = vsel %vm308, %v295, 0
      %315 = vmatprep.subr.bf16.mxu0 0
      %316 = vmatpush1.bf16.msra.mxu0 %v304
      %317 = vmatprep.subr.bf16.mxu0 0
      %318 = vmatpush1.bf16.msra.mxu0 %v305
      %319 = vmatprep.subr.bf16.mxu0 0
      %320 = vmatpush1.bf16.msra.mxu0 0
      %321 = vmatprep.subr.bf16.mxu0 0
      %322 = vmatpush1.bf16.msra.mxu0 0
      %323 = vmatprep.subr.bf16.mxu0 0
      %324 = vmatpush1.bf16.msra.mxu0 0
      %325 = vmatprep.subr.bf16.mxu0 0
      %326 = vmatpush1.bf16.msra.mxu0 0
      %327 = vmatprep.subr.bf16.mxu0 0
      %328 = vmatpush1.bf16.msra.mxu0 0
      %329 = vmatprep.subr.bf16.mxu0 0
      %330 = vmatpush1.bf16.msra.mxu0 0
      %331 = vmatprep.subr.bf16.mxu0 0
      %332 = vmatpush1.bf16.msra.mxu0 0
      %333 = vmatprep.subr.bf16.mxu0 0
      %334 = vmatpush1.bf16.msra.mxu0 0
      %335 = vmatprep.subr.bf16.mxu0 0
      %336 = vmatpush1.bf16.msra.mxu0 0
      %337 = vmatprep.subr.bf16.mxu0 0
      %338 = vmatpush1.bf16.msra.mxu0 0
      %339 = vmatprep.subr.bf16.mxu0 0
      %340 = vmatpush1.bf16.msra.mxu0 0
      %341 = vmatprep.subr.bf16.mxu0 0
      %342 = vmatpush1.bf16.msra.mxu0 0
      %343 = vmatprep.subr.bf16.mxu0 0
      %344 = vmatpush1.bf16.msra.mxu0 0
      %345 = vmatprep.subr.bf16.mxu0 0
      %346 = vmatpush1.bf16.msra.mxu0 0
      %347 = vmatprep.mubr.bf16.mxu0 0
      %348 = vmatmul.mubr.bf16.gmra.mrb[0].mxu0 %v310
      %v349 = vpop.f32.mrb[0].mxu0
      %v350 = vadd.f32 0.0, %v349
      %v351 = vpop.f32.mrb[0].mxu0
      %v352 = vpop.f32.mrb[0].mxu0
      %v353 = vadd.f32 0.0, %v352
      %v354 = vpop.f32.mrb[0].mxu0
      %355 = vmatprep.mubr.bf16.mxu0 0
      %356 = vmatmul.mubr.bf16.gmra.mrb[0].mxu0 %v313
      %v357 = vpop.f32.mrb[0].mxu0
      %v358 = vadd.f32 0.0, %v357
      %v359 = vpop.f32.mrb[0].mxu0
      %v360 = vpop.f32.mrb[0].mxu0
      %v361 = vadd.f32 0.0, %v360
      %v362 = vpop.f32.mrb[0].mxu0
      %363 = vdwg.mxu0
      %v364 = vpack.c.bf16 %v353, %v350
      %v365 = vpack.c.bf16 %v361, %v358
      %v366 = vld [vmem:[%s2] sm:$0xf]
      %v367 = vld [vmem:[%s2 + $0x4] sm:$0xf]
      %v368 = vld [vmem:[%s2 + $0x8] sm:$0xf]
      %v369 = vld [vmem:[%s2 + $0xc] sm:$0xf]
      %v370 = vld [vmem:[%s2 + $0x10] sm:$0xf]
      %v371 = vld [vmem:[%s2 + $0x14] sm:$0xf]
      %v372 = vld [vmem:[%s2 + $0x18] sm:$0xf]
      %v373 = vld [vmem:[%s2 + $0x1c] sm:$0xf]
      %v382 = vunpack.c.l.b16 %v366
      %v383 = vunpack.c.l.b16 %v367
      %v384 = vunpack.c.l.b16 %v368
      %v385 = vunpack.c.l.b16 %v369
      %v386 = vunpack.c.l.b16 %v370
      %v387 = vunpack.c.l.b16 %v371
      %v388 = vunpack.c.l.b16 %v372
      %v389 = vunpack.c.l.b16 %v373
      %v390 = vpack.c.b16 %v383, %v382
      %v391 = vpack.c.b16 %v385, %v384
      %v392 = vpack.c.b16 %v387, %v386
      %v393 = vpack.c.b16 %v389, %v388
      %vm398 = vcmask 523264
      %v400 = vsel %vm398, %v364, 0
      %v403 = vsel %vm398, %v365, 0
      %405 = vmatprep.subr.bf16.mxu0 0
      %406 = vmatpush1.bf16.msra.mxu0 %v390
      %407 = vmatprep.subr.bf16.mxu0 0
      %408 = vmatpush1.bf16.msra.mxu0 %v391
      %409 = vmatprep.subr.bf16.mxu0 0
      %410 = vmatpush1.bf16.msra.mxu0 %v392
      %411 = vmatprep.subr.bf16.mxu0 0
      %412 = vmatpush1.bf16.msra.mxu0 %v393
      %413 = vmatprep.subr.bf16.mxu0 0
      %414 = vmatpush1.bf16.msra.mxu0 0
      %415 = vmatprep.subr.bf16.mxu0 0
      %416 = vmatpush1.bf16.msra.mxu0 0
      %417 = vmatprep.subr.bf16.mxu0 0
      %418 = vmatpush1.bf16.msra.mxu0 0
      %419 = vmatprep.subr.bf16.mxu0 0
      %420 = vmatpush1.bf16.msra.mxu0 0
      %421 = vmatprep.subr.bf16.mxu0 0
      %422 = vmatpush1.bf16.msra.mxu0 0
      %423 = vmatprep.subr.bf16.mxu0 0
      %424 = vmatpush1.bf16.msra.mxu0 0
      %425 = vmatprep.subr.bf16.mxu0 0
      %426 = vmatpush1.bf16.msra.mxu0 0
      %427 = vmatprep.subr.bf16.mxu0 0
      %428 = vmatpush1.bf16.msra.mxu0 0
      %429 = vmatprep.subr.bf16.mxu0 0
      %430 = vmatpush1.bf16.msra.mxu0 0
      %431 = vmatprep.subr.bf16.mxu0 0
      %432 = vmatpush1.bf16.msra.mxu0 0
      %433 = vmatprep.subr.bf16.mxu0 0
      %434 = vmatpush1.bf16.msra.mxu0 0
      %435 = vmatprep.subr.bf16.mxu0 0
      %436 = vmatpush1.bf16.msra.mxu0 0
      %437 = vmatprep.mubr.bf16.mxu0 0
      %438 = vmatmul.mubr.bf16.gmra.mrb[0].mxu0 %v400
      %v439 = vpop.f32.mrb[0].mxu0
      %v440 = vadd.f32 0.0, %v439
      %v441 = vpop.f32.mrb[0].mxu0
      %v442 = vpop.f32.mrb[0].mxu0
      %v443 = vadd.f32 0.0, %v442
      %v444 = vpop.f32.mrb[0].mxu0
      %445 = vmatprep.mubr.bf16.mxu0 0
      %446 = vmatmul.mubr.bf16.gmra.mrb[0].mxu0 %v403
      %v447 = vpop.f32.mrb[0].mxu0
      %v448 = vadd.f32 0.0, %v447
      %v449 = vpop.f32.mrb[0].mxu0
      %v450 = vpop.f32.mrb[0].mxu0
      %v451 = vadd.f32 0.0, %v450
      %v452 = vpop.f32.mrb[0].mxu0
      %453 = vdwg.mxu0
      %458 = vrot.lane.b32.xlu0 %v440, 124
      %v459 = vpop.permute.xlu0 %458
      %460 = vrot.lane.b32.xlu0 %v443, 124
      %v461 = vpop.permute.xlu0 %460
      %462 = vrot.lane.b32.xlu0 %v448, 124
      %v463 = vpop.permute.xlu0 %462
      %464 = vrot.lane.b32.xlu0 %v451, 124
      %v465 = vpop.permute.xlu0 %464
      %470 = vxpose.xlu0.b32.start [1/16] %v459, 128
      %471 = vxpose.xlu0.b32.cont [2/16] %v461, 128
      %472 = vxpose.xlu0.b32.cont [3/16] %v463, 128
      %473 = vxpose.xlu0.b32.cont [4/16] %v465, 128
      %474 = vxpose.xlu0.b32.cont [5/16] 0.0, 128
      %475 = vxpose.xlu0.b32.cont [6/16] 0.0, 128
      %476 = vxpose.xlu0.b32.cont [7/16] 0.0, 128
      %477 = vxpose.xlu0.b32.cont [8/16] 0.0, 128
      %478 = vxpose.xlu0.b32.cont [9/16] 0.0, 128
      %479 = vxpose.xlu0.b32.cont [10/16] 0.0, 128
      %480 = vxpose.xlu0.b32.cont [11/16] 0.0, 128
      %481 = vxpose.xlu0.b32.cont [12/16] 0.0, 128
      %482 = vxpose.xlu0.b32.cont [13/16] 0.0, 128
      %483 = vxpose.xlu0.b32.cont [14/16] 0.0, 128
      %484 = vxpose.xlu0.b32.cont [15/16] 0.0, 128
      %485 = vxpose.xlu0.b32.end [16/16] 0.0, 128
      %v486 = vpop.trf.xlu0
      %v487 = vpop.trf.xlu0
      %v488 = vpop.trf.xlu0
      %v489 = vpop.trf.xlu0
      %v490 = vpop.trf.xlu0
      %v491 = vpop.trf.xlu0
      %v492 = vpop.trf.xlu0
      %v493 = vpop.trf.xlu0
      %v494 = vpop.trf.xlu0
      %v495 = vpop.trf.xlu0
      %v496 = vpop.trf.xlu0
      %v497 = vpop.trf.xlu0
      %v498 = vpop.trf.xlu0
      %v499 = vpop.trf.xlu0
      %v500 = vpop.trf.xlu0
      %v501 = vpop.trf.xlu0
      %v502 = vld [vmem:[%s269] sm:$0xf]
      %v503 = vld [vmem:[%s269 + $0x4] sm:$0xf]
      %v504 = vld [vmem:[%s269 + $0x8] sm:$0xf]
      %v505 = vld [vmem:[%s269 + $0xc] sm:$0xf]
      %v506 = vunpack.c.l.bf16 %v502
      %v507 = vunpack.c.l.bf16 %v503
      %v508 = vunpack.c.l.bf16 %v504
      %v509 = vunpack.c.l.bf16 %v505
      %510 = vset.pattern.permute.xlu0 0
      %511 = vperm.xlu0 %510, %v440
      %v512 = vpop.permute.xlu0 %511
      %v514 = vlaneseq
      %v515 = vshrl.u32 %v514, 7
      %v516 = vsub.s32 0, %v515
      %v517 = vrot.slane %v486, %v516
      %v518 = vadd.f32 %v512, %v517
      %vm519 = vcmp.gt.f32.partialorder %v518, 0.0
      %v520 = vmul.f32 %v518, 0.01
      %v521 = vsel %vm519, %v518, %v520
      %v522 = vadd.f32 %v521, %v506
      %vm523 = vcmask 64512
      %v524 = vsel %vm523, %v522, -inf
      %v525 = vrot.slane %v524, 4
      %v526 = vmax.f32 %v524, %v525
      %v527 = vrot.slane %v526, 2
      %v528 = vmax.f32 %v526, %v527
      %v529 = vrot.slane %v528, 1
      %v530 = vmax.f32 %v528, %v529
      %v531 = vsub.f32 %v522, %v530
      %v532 = vmul.f32 %v531, 1.442695
      %v533 = vpow.pop %v532
      %v534 = vsel %vm523, %v533, 0.0
      %v535 = vrot.slane %v534, 4
      %v536 = vadd.f32 %v534, %v535
      %v537 = vrot.slane %v536, 2
      %v538 = vadd.f32 %v536, %v537
      %v539 = vrot.slane %v538, 1
      %v540 = vadd.f32 %v538, %v539
      %v541 = vrcp.pop %v540
      %v542 = vmul.f32 %v533, %v541
      %v543 = vpack.c.bf16 %v542, %v542
      %v545 = vsel %vm523, %v543, 0
      %vm547 = vcmask 1043456
      %v548 = vsel %vm547, %v364, 0
      %550 = vmatprep.subr.bf16.mxu0 0
      %551 = vmatpush1.bf16.msra.mxu0 %v548
      %552 = vmatprep.subr.bf16.mxu0 0
      %553 = vmatpush1.bf16.msra.mxu0 0
      %554 = vmatprep.subr.bf16.mxu0 0
      %555 = vmatpush1.bf16.msra.mxu0 0
      %556 = vmatprep.subr.bf16.mxu0 0
      %557 = vmatpush1.bf16.msra.mxu0 0
      %558 = vmatprep.subr.bf16.mxu0 0
      %559 = vmatpush1.bf16.msra.mxu0 0
      %560 = vmatprep.subr.bf16.mxu0 0
      %561 = vmatpush1.bf16.msra.mxu0 0
      %562 = vmatprep.subr.bf16.mxu0 0
      %563 = vmatpush1.bf16.msra.mxu0 0
      %564 = vmatprep.subr.bf16.mxu0 0
      %565 = vmatpush1.bf16.msra.mxu0 0
      %566 = vmatprep.subr.bf16.mxu0 0
      %567 = vmatpush1.bf16.msra.mxu0 0
      %568 = vmatprep.subr.bf16.mxu0 0
      %569 = vmatpush1.bf16.msra.mxu0 0
      %570 = vmatprep.subr.bf16.mxu0 0
      %571 = vmatpush1.bf16.msra.mxu0 0
      %572 = vmatprep.subr.bf16.mxu0 0
      %573 = vmatpush1.bf16.msra.mxu0 0
      %574 = vmatprep.subr.bf16.mxu0 0
      %575 = vmatpush1.bf16.msra.mxu0 0
      %576 = vmatprep.subr.bf16.mxu0 0
      %577 = vmatpush1.bf16.msra.mxu0 0
      %578 = vmatprep.subr.bf16.mxu0 0
      %579 = vmatpush1.bf16.msra.mxu0 0
      %580 = vmatprep.subr.bf16.mxu0 0
      %581 = vmatpush1.bf16.msra.mxu0 0
      %582 = vmatprep.mubr.bf16.mxu0 0
      %583 = vmatmul.mubr.bf16.gmra.mrb[0].mxu0 %v545
      %v584 = vpop.f32.mrb[0].mxu0
      %v585 = vadd.f32 0.0, %v584
      %v586 = vpop.f32.mrb[0].mxu0
      %v587 = vpop.f32.mrb[0].mxu0
      %v588 = vpop.f32.mrb[0].mxu0
      %589 = vdwg.mxu0
      %vm590 = vcmp.gt.f32.partialorder %v585, 0.0
      %v591 = vmin.f32 %v585, 0.0
      %v592 = vmul.f32 %v591, 1.442695
      %v593 = vpow.pop %v592
      %v594 = vsub.f32 %v593, 1.0
      %v595 = vsel %vm590, %v585, %v594
      %v596 = vpack.c.bf16 %v595, %v595
      %vm597 = vcmask 125952
      %598 = vst.msk [vmem:[#allocation2] sm:$0xf] %vm597, %v596
      %599 = vset.pattern.permute.xlu0 1
      %600 = vperm.xlu0 %599, %v440
      %v601 = vpop.permute.xlu0 %600
      %v603 = vlaneseq
      %v604 = vshrl.u32 %v603, 7
      %v605 = vsub.s32 1, %v604
      %v606 = vrot.slane %v486, %v605
      %v607 = vadd.f32 %v601, %v606
      %vm608 = vcmp.gt.f32.partialorder %v607, 0.0
      %v609 = vmul.f32 %v607, 0.01
      %v610 = vsel %vm608, %v607, %v609
      %v611 = vadd.f32 %v610, %v506
      %v612 = vsel %vm523, %v611, -inf
      %v613 = vrot.slane %v612, 4
      %v614 = vmax.f32 %v612, %v613
      %v615 = vrot.slane %v614, 2
      %v616 = vmax.f32 %v614, %v615
      %v617 = vrot.slane %v616, 1
      %v618 = vmax.f32 %v616, %v617
      %v619 = vsub.f32 %v611, %v618
      %v620 = vmul.f32 %v619, 1.442695
      %v621 = vpow.pop %v620
      %v622 = vsel %vm523, %v621, 0.0
      %v623 = vrot.slane %v622, 4
      %v624 = vadd.f32 %v622, %v623
      %v625 = vrot.slane %v624, 2
      %v626 = vadd.f32 %v624, %v625
      %v627 = vrot.slane %v626, 1
      %v628 = vadd.f32 %v626, %v627
      %v629 = vrcp.pop %v628
      %v630 = vmul.f32 %v621, %v629
      %v631 = vpack.c.bf16 %v630, %v630
      %633 = vrot.lane.b32.xlu0 %v364, 112
      %v634 = vpop.permute.xlu0 %633
      %v636 = vsel %vm523, %v631, 0
      %v639 = vsel %vm547, %v634, 0
      %641 = vmatprep.subr.bf16.mxu0 0
      %642 = vmatpush1.bf16.msra.mxu0 %v639
      %643 = vmatprep.subr.bf16.mxu0 0
      %644 = vmatpush1.bf16.msra.mxu0 0
      %645 = vmatprep.subr.bf16.mxu0 0
      %646 = vmatpush1.bf16.msra.mxu0 0
      %647 = vmatprep.subr.bf16.mxu0 0
      %648 = vmatpush1.bf16.msra.mxu0 0
      %649 = vmatprep.subr.bf16.mxu0 0
      %650 = vmatpush1.bf16.msra.mxu0 0
      %651 = vmatprep.subr.bf16.mxu0 0
      %652 = vmatpush1.bf16.msra.mxu0 0
      %653 = vmatprep.subr.bf16.mxu0 0
      %654 = vmatpush1.bf16.msra.mxu0 0
      %655 = vmatprep.subr.bf16.mxu0 0
      %656 = vmatpush1.bf16.msra.mxu0 0
      %657 = vmatprep.subr.bf16.mxu0 0
      %658 = vmatpush1.bf16.msra.mxu0 0
      %659 = vmatprep.subr.bf16.mxu0 0
      %660 = vmatpush1.bf16.msra.mxu0 0
      %661 = vmatprep.subr.bf16.mxu0 0
      %662 = vmatpush1.bf16.msra.mxu0 0
      %663 = vmatprep.subr.bf16.mxu0 0
      %664 = vmatpush1.bf16.msra.mxu0 0
      %665 = vmatprep.subr.bf16.mxu0 0
      %666 = vmatpush1.bf16.msra.mxu0 0
      %667 = vmatprep.subr.bf16.mxu0 0
      %668 = vmatpush1.bf16.msra.mxu0 0
      %669 = vmatprep.subr.bf16.mxu0 0
      %670 = vmatpush1.bf16.msra.mxu0 0
      %671 = vmatprep.subr.bf16.mxu0 0
      %672 = vmatpush1.bf16.msra.mxu0 0
      %673 = vmatprep.mubr.bf16.mxu0 0
      %674 = vmatmul.mubr.bf16.gmra.mrb[0].mxu0 %v636
      %v675 = vpop.f32.mrb[0].mxu0
      %v676 = vadd.f32 0.0, %v675
      %v677 = vpop.f32.mrb[0].mxu0
      %v678 = vpop.f32.mrb[0].mxu0
      %v679 = vpop.f32.mrb[0].mxu0
      %680 = vdwg.mxu0
      %vm681 = vcmp.gt.f32.partialorder %v676, 0.0
      %v682 = vmin.f32 %v676, 0.0
      %v683 = vmul.f32 %v682, 1.442695
      %v684 = vpow.pop %v683
      %v685 = vsub.f32 %v684, 1.0
      %v686 = vsel %vm681, %v676, %v685
      %v687 = vpack.c.bf16 %v686, %v686
      %689 = vrot.lane.b32.xlu0 %v687, 16
      %v690 = vpop.permute.xlu0 %689
      %vm692 = vcmask 257152
      %693 = vst.msk [vmem:[#allocation2] sm:$0xf] %vm692, %v690
      %694 = vset.pattern.permute.xlu0 2
      %695 = vperm.xlu0 %694, %v440
      %v696 = vpop.permute.xlu0 %695
      %v698 = vlaneseq
      %v699 = vshrl.u32 %v698, 7
      %v700 = vsub.s32 2, %v699
      %v701 = vrot.slane %v486, %v700
      %v702 = vadd.f32 %v696, %v701
      %vm703 = vcmp.gt.f32.partialorder %v702, 0.0
      %v704 = vmul.f32 %v702, 0.01
      %v705 = vsel %vm703, %v702, %v704
      %v706 = vadd.f32 %v705, %v506
      %v707 = vsel %vm523, %v706, -inf
      %v708 = vrot.slane %v707, 4
      %v709 = vmax.f32 %v707, %v708
      %v710 = vrot.slane %v709, 2
      %v711 = vmax.f32 %v709, %v710
      %v712 = vrot.slane %v711, 1
      %v713 = vmax.f32 %v711, %v712
      %v714 = vsub.f32 %v706, %v713
      %v715 = vmul.f32 %v714, 1.442695
      %v716 = vpow.pop %v715
      %v717 = vsel %vm523, %v716, 0.0
      %v718 = vrot.slane %v717, 4
      %v719 = vadd.f32 %v717, %v718
      %v720 = vrot.slane %v719, 2
      %v721 = vadd.f32 %v719, %v720
      %v722 = vrot.slane %v721, 1
      %v723 = vadd.f32 %v721, %v722
      %v724 = vrcp.pop %v723
      %v725 = vmul.f32 %v716, %v724
      %v726 = vpack.c.bf16 %v725, %v725
      %727 = vrot.lane.b32.xlu0 %v364, 96
      %v728 = vpop.permute.xlu0 %727
      %v730 = vsel %vm523, %v726, 0
      %v733 = vsel %vm547, %v728, 0
      %735 = vmatprep.subr.bf16.mxu0 0
      %736 = vmatpush1.bf16.msra.mxu0 %v733
      %737 = vmatprep.subr.bf16.mxu0 0
      %738 = vmatpush1.bf16.msra.mxu0 0
      %739 = vmatprep.subr.bf16.mxu0 0
      %740 = vmatpush1.bf16.msra.mxu0 0
      %741 = vmatprep.subr.bf16.mxu0 0
      %742 = vmatpush1.bf16.msra.mxu0 0
      %743 = vmatprep.subr.bf16.mxu0 0
      %744 = vmatpush1.bf16.msra.mxu0 0
      %745 = vmatprep.subr.bf16.mxu0 0
      %746 = vmatpush1.bf16.msra.mxu0 0
      %747 = vmatprep.subr.bf16.mxu0 0
      %748 = vmatpush1.bf16.msra.mxu0 0
      %749 = vmatprep.subr.bf16.mxu0 0
      %750 = vmatpush1.bf16.msra.mxu0 0
      %751 = vmatprep.subr.bf16.mxu0 0
      %752 = vmatpush1.bf16.msra.mxu0 0
      %753 = vmatprep.subr.bf16.mxu0 0
      %754 = vmatpush1.bf16.msra.mxu0 0
      %755 = vmatprep.subr.bf16.mxu0 0
      %756 = vmatpush1.bf16.msra.mxu0 0
      %757 = vmatprep.subr.bf16.mxu0 0
      %758 = vmatpush1.bf16.msra.mxu0 0
      %759 = vmatprep.subr.bf16.mxu0 0
      %760 = vmatpush1.bf16.msra.mxu0 0
      %761 = vmatprep.subr.bf16.mxu0 0
      %762 = vmatpush1.bf16.msra.mxu0 0
      %763 = vmatprep.subr.bf16.mxu0 0
      %764 = vmatpush1.bf16.msra.mxu0 0
      %765 = vmatprep.subr.bf16.mxu0 0
      %766 = vmatpush1.bf16.msra.mxu0 0
      %767 = vmatprep.mubr.bf16.mxu0 0
      %768 = vmatmul.mubr.bf16.gmra.mrb[0].mxu0 %v730
      %v769 = vpop.f32.mrb[0].mxu0
      %v770 = vadd.f32 0.0, %v769
      %v771 = vpop.f32.mrb[0].mxu0
      %v772 = vpop.f32.mrb[0].mxu0
      %v773 = vpop.f32.mrb[0].mxu0
      %774 = vdwg.mxu0
      %vm775 = vcmp.gt.f32.partialorder %v770, 0.0
      %v776 = vmin.f32 %v770, 0.0
      %v777 = vmul.f32 %v776, 1.442695
      %v778 = vpow.pop %v777
      %v779 = vsub.f32 %v778, 1.0
      %v780 = vsel %vm775, %v770, %v779
      %v781 = vpack.c.bf16 %v780, %v780
      %783 = vrot.lane.b32.xlu0 %v781, 32
      %v784 = vpop.permute.xlu0 %783
      %vm786 = vcmask 388352
      %787 = vst.msk [vmem:[#allocation2] sm:$0xf] %vm786, %v784
      %788 = vset.pattern.permute.xlu0 3
      %789 = vperm.xlu0 %788, %v440
      %v790 = vpop.permute.xlu0 %789
      %v792 = vlaneseq
      %v793 = vshrl.u32 %v792, 7
      %v794 = vsub.s32 3, %v793
      %v795 = vrot.slane %v486, %v794
      %v796 = vadd.f32 %v790, %v795
      %vm797 = vcmp.gt.f32.partialorder %v796, 0.0
      %v798 = vmul.f32 %v796, 0.01
      %v799 = vsel %vm797, %v796, %v798
      %v800 = vadd.f32 %v799, %v506
      %v801 = vsel %vm523, %v800, -inf
      %v802 = vrot.slane %v801, 4
      %v803 = vmax.f32 %v801, %v802
      %v804 = vrot.slane %v803, 2
      %v805 = vmax.f32 %v803, %v804
      %v806 = vrot.slane %v805, 1
      %v807 = vmax.f32 %v805, %v806
      %v808 = vsub.f32 %v800, %v807
      %v809 = vmul.f32 %v808, 1.442695
      %v810 = vpow.pop %v809
      %v811 = vsel %vm523, %v810, 0.0
      %v812 = vrot.slane %v811, 4
      %v813 = vadd.f32 %v811, %v812
      %v814 = vrot.slane %v813, 2
      %v815 = vadd.f32 %v813, %v814
      %v816 = vrot.slane %v815, 1
      %v817 = vadd.f32 %v815, %v816
      %v818 = vrcp.pop %v817
      %v819 = vmul.f32 %v810, %v818
      %v820 = vpack.c.bf16 %v819, %v819
      %821 = vrot.lane.b32.xlu0 %v364, 80
      %v822 = vpop.permute.xlu0 %821
      %v824 = vsel %vm523, %v820, 0
      %v827 = vsel %vm547, %v822, 0
      %829 = vmatprep.subr.bf16.mxu0 0
      %830 = vmatpush1.bf16.msra.mxu0 %v827
      %831 = vmatprep.subr.bf16.mxu0 0
      %832 = vmatpush1.bf16.msra.mxu0 0
      %833 = vmatprep.subr.bf16.mxu0 0
      %834 = vmatpush1.bf16.msra.mxu0 0
      %835 = vmatprep.subr.bf16.mxu0 0
      %836 = vmatpush1.bf16.msra.mxu0 0
      %837 = vmatprep.subr.bf16.mxu0 0
      %838 = vmatpush1.bf16.msra.mxu0 0
      %839 = vmatprep.subr.bf16.mxu0 0
      %840 = vmatpush1.bf16.msra.mxu0 0
      %841 = vmatprep.subr.bf16.mxu0 0
      %842 = vmatpush1.bf16.msra.mxu0 0
      %843 = vmatprep.subr.bf16.mxu0 0
      %844 = vmatpush1.bf16.msra.mxu0 0
      %845 = vmatprep.subr.bf16.mxu0 0
      %846 = vmatpush1.bf16.msra.mxu0 0
      %847 = vmatprep.subr.bf16.mxu0 0
      %848 = vmatpush1.bf16.msra.mxu0 0
      %849 = vmatprep.subr.bf16.mxu0 0
      %850 = vmatpush1.bf16.msra.mxu0 0
      %851 = vmatprep.subr.bf16.mxu0 0
      %852 = vmatpush1.bf16.msra.mxu0 0
      %853 = vmatprep.subr.bf16.mxu0 0
      %854 = vmatpush1.bf16.msra.mxu0 0
      %855 = vmatprep.subr.bf16.mxu0 0
      %856 = vmatpush1.bf16.msra.mxu0 0
      %857 = vmatprep.subr.bf16.mxu0 0
      %858 = vmatpush1.bf16.msra.mxu0 0
      %859 = vmatprep.subr.bf16.mxu0 0
      %860 = vmatpush1.bf16.msra.mxu0 0
      %861 = vmatprep.mubr.bf16.mxu0 0
      %862 = vmatmul.mubr.bf16.gmra.mrb[0].mxu0 %v824
      %v863 = vpop.f32.mrb[0].mxu0
      %v864 = vadd.f32 0.0, %v863
      %v865 = vpop.f32.mrb[0].mxu0
      %v866 = vpop.f32.mrb[0].mxu0
      %v867 = vpop.f32.mrb[0].mxu0
      %868 = vdwg.mxu0
      %vm869 = vcmp.gt.f32.partialorder %v864, 0.0
      %v870 = vmin.f32 %v864, 0.0
      %v871 = vmul.f32 %v870, 1.442695
      %v872 = vpow.pop %v871
      %v873 = vsub.f32 %v872, 1.0
      %v874 = vsel %vm869, %v864, %v873
      %v875 = vpack.c.bf16 %v874, %v874
      %877 = vrot.lane.b32.xlu0 %v875, 48
      %v878 = vpop.permute.xlu0 %877
      %vm880 = vcmask 519552
      %881 = vst.msk [vmem:[#allocation2] sm:$0xf] %vm880, %v878
      %882 = vset.pattern.permute.xlu0 0
      %883 = vperm.xlu0 %882, %v443
      %v884 = vpop.permute.xlu0 %883
      %v886 = vadd.f32 %v884, %v517
      %vm887 = vcmp.gt.f32.partialorder %v886, 0.0
      %v888 = vmul.f32 %v886, 0.01
      %v889 = vsel %vm887, %v886, %v888
      %891 = vrot.lane.b32.xlu0 %v507, 8
      %v892 = vpop.permute.xlu0 %891
      %v894 = vadd.f32 %v889, %v892
      %vm895 = vcmask 130112
      %v896 = vsel %vm895, %v894, -inf
      %v897 = vrot.slane %v896, 4
      %v898 = vmax.f32 %v896, %v897
      %v899 = vrot.slane %v898, 2
      %v900 = vmax.f32 %v898, %v899
      %v901 = vrot.slane %v900, 1
      %v902 = vmax.f32 %v900, %v901
      %v903 = vsub.f32 %v894, %v902
      %v904 = vmul.f32 %v903, 1.442695
      %v905 = vpow.pop %v904
      %v906 = vsel %vm895, %v905, 0.0
      %v907 = vrot.slane %v906, 4
      %v908 = vadd.f32 %v906, %v907
      %v909 = vrot.slane %v908, 2
      %v910 = vadd.f32 %v908, %v909
      %v911 = vrot.slane %v910, 1
      %v912 = vadd.f32 %v910, %v911
      %v913 = vrcp.pop %v912
      %v914 = vmul.f32 %v905, %v913
      %v915 = vpack.c.bf16 %v914, %v914
      %917 = vrot.lane.b32.xlu0 %v915, 120
      %v918 = vpop.permute.xlu0 %917
      %v919 = vrot.slane %v364, 4
      %v921 = vsel %vm523, %v918, 0
      %v924 = vsel %vm547, %v919, 0
      %926 = vmatprep.subr.bf16.mxu0 0
      %927 = vmatpush1.bf16.msra.mxu0 %v924
      %928 = vmatprep.subr.bf16.mxu0 0
      %929 = vmatpush1.bf16.msra.mxu0 0
      %930 = vmatprep.subr.bf16.mxu0 0
      %931 = vmatpush1.bf16.msra.mxu0 0
      %932 = vmatprep.subr.bf16.mxu0 0
      %933 = vmatpush1.bf16.msra.mxu0 0
      %934 = vmatprep.subr.bf16.mxu0 0
      %935 = vmatpush1.bf16.msra.mxu0 0
      %936 = vmatprep.subr.bf16.mxu0 0
      %937 = vmatpush1.bf16.msra.mxu0 0
      %938 = vmatprep.subr.bf16.mxu0 0
      %939 = vmatpush1.bf16.msra.mxu0 0
      %940 = vmatprep.subr.bf16.mxu0 0
      %941 = vmatpush1.bf16.msra.mxu0 0
      %942 = vmatprep.subr.bf16.mxu0 0
      %943 = vmatpush1.bf16.msra.mxu0 0
      %944 = vmatprep.subr.bf16.mxu0 0
      %945 = vmatpush1.bf16.msra.mxu0 0
      %946 = vmatprep.subr.bf16.mxu0 0
      %947 = vmatpush1.bf16.msra.mxu0 0
      %948 = vmatprep.subr.bf16.mxu0 0
      %949 = vmatpush1.bf16.msra.mxu0 0
      %950 = vmatprep.subr.bf16.mxu0 0
      %951 = vmatpush1.bf16.msra.mxu0 0
      %952 = vmatprep.subr.bf16.mxu0 0
      %953 = vmatpush1.bf16.msra.mxu0 0
      %954 = vmatprep.subr.bf16.mxu0 0
      %955 = vmatpush1.bf16.msra.mxu0 0
      %956 = vmatprep.subr.bf16.mxu0 0
      %957 = vmatpush1.bf16.msra.mxu0 0
      %958 = vmatprep.mubr.bf16.mxu0 0
      %959 = vmatmul.mubr.bf16.gmra.mrb[0].mxu0 %v921
      %v960 = vpop.f32.mrb[0].mxu0
      %v961 = vadd.f32 0.0, %v960
      %v962 = vpop.f32.mrb[0].mxu0
      %v963 = vpop.f32.mrb[0].mxu0
      %v964 = vpop.f32.mrb[0].mxu0
      %965 = vdwg.mxu0
      %vm966 = vcmp.gt.f32.partialorder %v961, 0.0
      %v967 = vmin.f32 %v961, 0.0
      %v968 = vmul.f32 %v967, 1.442695
      %v969 = vpow.pop %v968
      %v970 = vsub.f32 %v969, 1.0
      %v971 = vsel %vm966, %v961, %v970
      %v972 = vpack.c.bf16 %v971, %v971
      %v974 = vrot.slane %v972, 4
      %vm976 = vcmask 130052
      %977 = vst.msk [vmem:[#allocation2] sm:$0xf0] %vm976, %v974
      %978 = vset.pattern.permute.xlu0 1
      %979 = vperm.xlu0 %978, %v443
      %v980 = vpop.permute.xlu0 %979
      %v982 = vadd.f32 %v980, %v606
      %vm983 = vcmp.gt.f32.partialorder %v982, 0.0
      %v984 = vmul.f32 %v982, 0.01
      %v985 = vsel %vm983, %v982, %v984
      %v986 = vadd.f32 %v985, %v892
      %v987 = vsel %vm895, %v986, -inf
      %v988 = vrot.slane %v987, 4
      %v989 = vmax.f32 %v987, %v988
      %v990 = vrot.slane %v989, 2
      %v991 = vmax.f32 %v989, %v990
      %v992 = vrot.slane %v991, 1
      %v993 = vmax.f32 %v991, %v992
      %v994 = vsub.f32 %v986, %v993
      %v995 = vmul.f32 %v994, 1.442695
      %v996 = vpow.pop %v995
      %v997 = vsel %vm895, %v996, 0.0
      %v998 = vrot.slane %v997, 4
      %v999 = vadd.f32 %v997, %v998
      %v1000 = vrot.slane %v999, 2
      %v1001 = vadd.f32 %v999, %v1000
      %v1002 = vrot.slane %v1001, 1
      %v1003 = vadd.f32 %v1001, %v1002
      %v1004 = vrcp.pop %v1003
      %v1005 = vmul.f32 %v996, %v1004
      %v1006 = vpack.c.bf16 %v1005, %v1005
      %1008 = vrot.lane.b32.xlu0 %v1006, 120
      %v1009 = vpop.permute.xlu0 %1008
      %1010 = vrot.lane.b32.xlu0 %v919, 112
      %v1011 = vpop.permute.xlu0 %1010
      %v1013 = vsel %vm523, %v1009, 0
      %v1016 = vsel %vm547, %v1011, 0
      %1018 = vmatprep.subr.bf16.mxu0 0
      %1019 = vmatpush1.bf16.msra.mxu0 %v1016
      %1020 = vmatprep.subr.bf16.mxu0 0
      %1021 = vmatpush1.bf16.msra.mxu0 0
      %1022 = vmatprep.subr.bf16.mxu0 0
      %1023 = vmatpush1.bf16.msra.mxu0 0
      %1024 = vmatprep.subr.bf16.mxu0 0
      %1025 = vmatpush1.bf16.msra.mxu0 0
      %1026 = vmatprep.subr.bf16.mxu0 0
      %1027 = vmatpush1.bf16.msra.mxu0 0
      %1028 = vmatprep.subr.bf16.mxu0 0
      %1029 = vmatpush1.bf16.msra.mxu0 0
      %1030 = vmatprep.subr.bf16.mxu0 0
      %1031 = vmatpush1.bf16.msra.mxu0 0
      %1032 = vmatprep.subr.bf16.mxu0 0
      %1033 = vmatpush1.bf16.msra.mxu0 0
      %1034 = vmatprep.subr.bf16.mxu0 0
      %1035 = vmatpush1.bf16.msra.mxu0 0
      %1036 = vmatprep.subr.bf16.mxu0 0
      %1037 = vmatpush1.bf16.msra.mxu0 0
      %1038 = vmatprep.subr.bf16.mxu0 0
      %1039 = vmatpush1.bf16.msra.mxu0 0
      %1040 = vmatprep.subr.bf16.mxu0 0
      %1041 = vmatpush1.bf16.msra.mxu0 0
      %1042 = vmatprep.subr.bf16.mxu0 0
      %1043 = vmatpush1.bf16.msra.mxu0 0
      %1044 = vmatprep.subr.bf16.mxu0 0
      %1045 = vmatpush1.bf16.msra.mxu0 0
      %1046 = vmatprep.subr.bf16.mxu0 0
      %1047 = vmatpush1.bf16.msra.mxu0 0
      %1048 = vmatprep.subr.bf16.mxu0 0
      %1049 = vmatpush1.bf16.msra.mxu0 0
      %1050 = vmatprep.mubr.bf16.mxu0 0
      %1051 = vmatmul.mubr.bf16.gmra.mrb[0].mxu0 %v1013
      %v1052 = vpop.f32.mrb[0].mxu0
      %v1053 = vadd.f32 0.0, %v1052
      %v1054 = vpop.f32.mrb[0].mxu0
      %v1055 = vpop.f32.mrb[0].mxu0
      %v1056 = vpop.f32.mrb[0].mxu0
      %1057 = vdwg.mxu0
      %vm1058 = vcmp.gt.f32.partialorder %v1053, 0.0
      %v1059 = vmin.f32 %v1053, 0.0
      %v1060 = vmul.f32 %v1059, 1.442695
      %v1061 = vpow.pop %v1060
      %v1062 = vsub.f32 %v1061, 1.0
      %v1063 = vsel %vm1058, %v1053, %v1062
      %v1064 = vpack.c.bf16 %v1063, %v1063
      %v1066 = vrot.slane %v1064, 4
      %1067 = vrot.lane.b32.xlu0 %v1066, 16
      %v1068 = vpop.permute.xlu0 %1067
      %vm1070 = vcmask 261252
      %1071 = vst.msk [vmem:[#allocation2] sm:$0xf0] %vm1070, %v1068
      %1072 = vset.pattern.permute.xlu0 2
      %1073 = vperm.xlu0 %1072, %v443
      %v1074 = vpop.permute.xlu0 %1073
      %v1076 = vadd.f32 %v1074, %v701
      %vm1077 = vcmp.gt.f32.partialorder %v1076, 0.0
      %v1078 = vmul.f32 %v1076, 0.01
      %v1079 = vsel %vm1077, %v1076, %v1078
      %v1080 = vadd.f32 %v1079, %v892
      %v1081 = vsel %vm895, %v1080, -inf
      %v1082 = vrot.slane %v1081, 4
      %v1083 = vmax.f32 %v1081, %v1082
      %v1084 = vrot.slane %v1083, 2
      %v1085 = vmax.f32 %v1083, %v1084
      %v1086 = vrot.slane %v1085, 1
      %v1087 = vmax.f32 %v1085, %v1086
      %v1088 = vsub.f32 %v1080, %v1087
      %v1089 = vmul.f32 %v1088, 1.442695
      %v1090 = vpow.pop %v1089
      %v1091 = vsel %vm895, %v1090, 0.0
      %v1092 = vrot.slane %v1091, 4
      %v1093 = vadd.f32 %v1091, %v1092
      %v1094 = vrot.slane %v1093, 2
      %v1095 = vadd.f32 %v1093, %v1094
      %v1096 = vrot.slane %v1095, 1
      %v1097 = vadd.f32 %v1095, %v1096
      %v1098 = vrcp.pop %v1097
      %v1099 = vmul.f32 %v1090, %v1098
      %v1100 = vpack.c.bf16 %v1099, %v1099
      %1102 = vrot.lane.b32.xlu0 %v1100, 120
      %v1103 = vpop.permute.xlu0 %1102
      %1104 = vrot.lane.b32.xlu0 %v919, 96
      %v1105 = vpop.permute.xlu0 %1104
      %v1107 = vsel %vm523, %v1103, 0
      %v1110 = vsel %vm547, %v1105, 0
      %1112 = vmatprep.subr.bf16.mxu0 0
      %1113 = vmatpush1.bf16.msra.mxu0 %v1110
      %1114 = vmatprep.subr.bf16.mxu0 0
      %1115 = vmatpush1.bf16.msra.mxu0 0
      %1116 = vmatprep.subr.bf16.mxu0 0
      %1117 = vmatpush1.bf16.msra.mxu0 0
      %1118 = vmatprep.subr.bf16.mxu0 0
      %1119 = vmatpush1.bf16.msra.mxu0 0
      %1120 = vmatprep.subr.bf16.mxu0 0
      %1121 = vmatpush1.bf16.msra.mxu0 0
      %1122 = vmatprep.subr.bf16.mxu0 0
      %1123 = vmatpush1.bf16.msra.mxu0 0
      %1124 = vmatprep.subr.bf16.mxu0 0
      %1125 = vmatpush1.bf16.msra.mxu0 0
      %1126 = vmatprep.subr.bf16.mxu0 0
      %1127 = vmatpush1.bf16.msra.mxu0 0
      %1128 = vmatprep.subr.bf16.mxu0 0
      %1129 = vmatpush1.bf16.msra.mxu0 0
      %1130 = vmatprep.subr.bf16.mxu0 0
      %1131 = vmatpush1.bf16.msra.mxu0 0
      %1132 = vmatprep.subr.bf16.mxu0 0
      %1133 = vmatpush1.bf16.msra.mxu0 0
      %1134 = vmatprep.subr.bf16.mxu0 0
      %1135 = vmatpush1.bf16.msra.mxu0 0
      %1136 = vmatprep.subr.bf16.mxu0 0
      %1137 = vmatpush1.bf16.msra.mxu0 0
      %1138 = vmatprep.subr.bf16.mxu0 0
      %1139 = vmatpush1.bf16.msra.mxu0 0
      %1140 = vmatprep.subr.bf16.mxu0 0
      %1141 = vmatpush1.bf16.msra.mxu0 0
      %1142 = vmatprep.subr.bf16.mxu0 0
      %1143 = vmatpush1.bf16.msra.mxu0 0
      %1144 = vmatprep.mubr.bf16.mxu0 0
      %1145 = vmatmul.mubr.bf16.gmra.mrb[0].mxu0 %v1107
      %v1146 = vpop.f32.mrb[0].mxu0
      %v1147 = vadd.f32 0.0, %v1146
      %v1148 = vpop.f32.mrb[0].mxu0
      %v1149 = vpop.f32.mrb[0].mxu0
      %v1150 = vpop.f32.mrb[0].mxu0
      %1151 = vdwg.mxu0
      %vm1152 = vcmp.gt.f32.partialorder %v1147, 0.0
      %v1153 = vmin.f32 %v1147, 0.0
      %v1154 = vmul.f32 %v1153, 1.442695
      %v1155 = vpow.pop %v1154
      %v1156 = vsub.f32 %v1155, 1.0
      %v1157 = vsel %vm1152, %v1147, %v1156
      %v1158 = vpack.c.bf16 %v1157, %v1157
      %v1160 = vrot.slane %v1158, 4
      %1161 = vrot.lane.b32.xlu0 %v1160, 32
      %v1162 = vpop.permute.xlu0 %1161
      %vm1164 = vcmask 392452
      %1165 = vst.msk [vmem:[#allocation2] sm:$0xf0] %vm1164, %v1162
      %1166 = vset.pattern.permute.xlu0 3
      %1167 = vperm.xlu0 %1166, %v443
      %v1168 = vpop.permute.xlu0 %1167
      %v1170 = vadd.f32 %v1168, %v795
      %vm1171 = vcmp.gt.f32.partialorder %v1170, 0.0
      %v1172 = vmul.f32 %v1170, 0.01
      %v1173 = vsel %vm1171, %v1170, %v1172
      %v1174 = vadd.f32 %v1173, %v892
      %v1175 = vsel %vm895, %v1174, -inf
      %v1176 = vrot.slane %v1175, 4
      %v1177 = vmax.f32 %v1175, %v1176
      %v1178 = vrot.slane %v1177, 2
      %v1179 = vmax.f32 %v1177, %v1178
      %v1180 = vrot.slane %v1179, 1
      %v1181 = vmax.f32 %v1179, %v1180
      %v1182 = vsub.f32 %v1174, %v1181
      %v1183 = vmul.f32 %v1182, 1.442695
      %v1184 = vpow.pop %v1183
      %v1185 = vsel %vm895, %v1184, 0.0
      %v1186 = vrot.slane %v1185, 4
      %v1187 = vadd.f32 %v1185, %v1186
      %v1188 = vrot.slane %v1187, 2
      %v1189 = vadd.f32 %v1187, %v1188
      %v1190 = vrot.slane %v1189, 1
      %v1191 = vadd.f32 %v1189, %v1190
      %v1192 = vrcp.pop %v1191
      %v1193 = vmul.f32 %v1184, %v1192
      %v1194 = vpack.c.bf16 %v1193, %v1193
      %1196 = vrot.lane.b32.xlu0 %v1194, 120
      %v1197 = vpop.permute.xlu0 %1196
      %1198 = vrot.lane.b32.xlu0 %v919, 80
      %v1199 = vpop.permute.xlu0 %1198
      %v1201 = vsel %vm523, %v1197, 0
      %v1204 = vsel %vm547, %v1199, 0
      %1206 = vmatprep.subr.bf16.mxu0 0
      %1207 = vmatpush1.bf16.msra.mxu0 %v1204
      %1208 = vmatprep.subr.bf16.mxu0 0
      %1209 = vmatpush1.bf16.msra.mxu0 0
      %1210 = vmatprep.subr.bf16.mxu0 0
      %1211 = vmatpush1.bf16.msra.mxu0 0
      %1212 = vmatprep.subr.bf16.mxu0 0
      %1213 = vmatpush1.bf16.msra.mxu0 0
      %1214 = vmatprep.subr.bf16.mxu0 0
      %1215 = vmatpush1.bf16.msra.mxu0 0
      %1216 = vmatprep.subr.bf16.mxu0 0
      %1217 = vmatpush1.bf16.msra.mxu0 0
      %1218 = vmatprep.subr.bf16.mxu0 0
      %1219 = vmatpush1.bf16.msra.mxu0 0
      %1220 = vmatprep.subr.bf16.mxu0 0
      %1221 = vmatpush1.bf16.msra.mxu0 0
      %1222 = vmatprep.subr.bf16.mxu0 0
      %1223 = vmatpush1.bf16.msra.mxu0 0
      %1224 = vmatprep.subr.bf16.mxu0 0
      %1225 = vmatpush1.bf16.msra.mxu0 0
      %1226 = vmatprep.subr.bf16.mxu0 0
      %1227 = vmatpush1.bf16.msra.mxu0 0
      %1228 = vmatprep.subr.bf16.mxu0 0
      %1229 = vmatpush1.bf16.msra.mxu0 0
      %1230 = vmatprep.subr.bf16.mxu0 0
      %1231 = vmatpush1.bf16.msra.mxu0 0
      %1232 = vmatprep.subr.bf16.mxu0 0
      %1233 = vmatpush1.bf16.msra.mxu0 0
      %1234 = vmatprep.subr.bf16.mxu0 0
      %1235 = vmatpush1.bf16.msra.mxu0 0
      %1236 = vmatprep.subr.bf16.mxu0 0
      %1237 = vmatpush1.bf16.msra.mxu0 0
      %1238 = vmatprep.mubr.bf16.mxu0 0
      %1239 = vmatmul.mubr.bf16.gmra.mrb[0].mxu0 %v1201
      %v1240 = vpop.f32.mrb[0].mxu0
      %v1241 = vadd.f32 0.0, %v1240
      %v1242 = vpop.f32.mrb[0].mxu0
      %v1243 = vpop.f32.mrb[0].mxu0
      %v1244 = vpop.f32.mrb[0].mxu0
      %1245 = vdwg.mxu0
      %vm1246 = vcmp.gt.f32.partialorder %v1241, 0.0
      %v1247 = vmin.f32 %v1241, 0.0
      %v1248 = vmul.f32 %v1247, 1.442695
      %v1249 = vpow.pop %v1248
      %v1250 = vsub.f32 %v1249, 1.0
      %v1251 = vsel %vm1246, %v1241, %v1250
      %v1252 = vpack.c.bf16 %v1251, %v1251
      %v1254 = vrot.slane %v1252, 4
      %1255 = vrot.lane.b32.xlu0 %v1254, 48
      %v1256 = vpop.permute.xlu0 %1255
      %vm1258 = vcmask 523652
      %1259 = vst.msk [vmem:[#allocation2] sm:$0xf0] %vm1258, %v1256
      %1260 = vset.pattern.permute.xlu0 0
      %1261 = vperm.xlu0 %1260, %v448
      %v1262 = vpop.permute.xlu0 %1261
      %v1264 = vadd.f32 %v1262, %v517
      %vm1265 = vcmp.gt.f32.partialorder %v1264, 0.0
      %v1266 = vmul.f32 %v1264, 0.01
      %v1267 = vsel %vm1265, %v1264, %v1266
      %1269 = vrot.lane.b32.xlu0 %v508, 16
      %v1270 = vpop.permute.xlu0 %1269
      %v1272 = vadd.f32 %v1267, %v1270
      %vm1273 = vcmask 195712
      %v1274 = vsel %vm1273, %v1272, -inf
      %v1275 = vrot.slane %v1274, 4
      %v1276 = vmax.f32 %v1274, %v1275
      %v1277 = vrot.slane %v1276, 2
      %v1278 = vmax.f32 %v1276, %v1277
      %v1279 = vrot.slane %v1278, 1
      %v1280 = vmax.f32 %v1278, %v1279
      %v1281 = vsub.f32 %v1272, %v1280
      %v1282 = vmul.f32 %v1281, 1.442695
      %v1283 = vpow.pop %v1282
      %v1284 = vsel %vm1273, %v1283, 0.0
      %v1285 = vrot.slane %v1284, 4
      %v1286 = vadd.f32 %v1284, %v1285
      %v1287 = vrot.slane %v1286, 2
      %v1288 = vadd.f32 %v1286, %v1287
      %v1289 = vrot.slane %v1288, 1
      %v1290 = vadd.f32 %v1288, %v1289
      %v1291 = vrcp.pop %v1290
      %v1292 = vmul.f32 %v1283, %v1291
      %v1293 = vpack.c.bf16 %v1292, %v1292
      %1295 = vrot.lane.b32.xlu0 %v1293, 112
      %v1296 = vpop.permute.xlu0 %1295
      %v1298 = vsel %vm523, %v1296, 0
      %v1300 = vsel %vm547, %v365, 0
      %1302 = vmatprep.subr.bf16.mxu0 0
      %1303 = vmatpush1.bf16.msra.mxu0 %v1300
      %1304 = vmatprep.subr.bf16.mxu0 0
      %1305 = vmatpush1.bf16.msra.mxu0 0
      %1306 = vmatprep.subr.bf16.mxu0 0
      %1307 = vmatpush1.bf16.msra.mxu0 0
      %1308 = vmatprep.subr.bf16.mxu0 0
      %1309 = vmatpush1.bf16.msra.mxu0 0
      %1310 = vmatprep.subr.bf16.mxu0 0
      %1311 = vmatpush1.bf16.msra.mxu0 0
      %1312 = vmatprep.subr.bf16.mxu0 0
      %1313 = vmatpush1.bf16.msra.mxu0 0
      %1314 = vmatprep.subr.bf16.mxu0 0
      %1315 = vmatpush1.bf16.msra.mxu0 0
      %1316 = vmatprep.subr.bf16.mxu0 0
      %1317 = vmatpush1.bf16.msra.mxu0 0
      %1318 = vmatprep.subr.bf16.mxu0 0
      %1319 = vmatpush1.bf16.msra.mxu0 0
      %1320 = vmatprep.subr.bf16.mxu0 0
      %1321 = vmatpush1.bf16.msra.mxu0 0
      %1322 = vmatprep.subr.bf16.mxu0 0
      %1323 = vmatpush1.bf16.msra.mxu0 0
      %1324 = vmatprep.subr.bf16.mxu0 0
      %1325 = vmatpush1.bf16.msra.mxu0 0
      %1326 = vmatprep.subr.bf16.mxu0 0
      %1327 = vmatpush1.bf16.msra.mxu0 0
      %1328 = vmatprep.subr.bf16.mxu0 0
      %1329 = vmatpush1.bf16.msra.mxu0 0
      %1330 = vmatprep.subr.bf16.mxu0 0
      %1331 = vmatpush1.bf16.msra.mxu0 0
      %1332 = vmatprep.subr.bf16.mxu0 0
      %1333 = vmatpush1.bf16.msra.mxu0 0
      %1334 = vmatprep.mubr.bf16.mxu0 0
      %1335 = vmatmul.mubr.bf16.gmra.mrb[0].mxu0 %v1298
      %v1336 = vpop.f32.mrb[0].mxu0
      %v1337 = vadd.f32 0.0, %v1336
      %v1338 = vpop.f32.mrb[0].mxu0
      %v1339 = vpop.f32.mrb[0].mxu0
      %v1340 = vpop.f32.mrb[0].mxu0
      %1341 = vdwg.mxu0
      %vm1342 = vcmp.gt.f32.partialorder %v1337, 0.0
      %v1343 = vmin.f32 %v1337, 0.0
      %v1344 = vmul.f32 %v1343, 1.442695
      %v1345 = vpow.pop %v1344
      %v1346 = vsub.f32 %v1345, 1.0
      %v1347 = vsel %vm1342, %v1337, %v1346
      %v1348 = vpack.c.bf16 %v1347, %v1347
      %1349 = vst.msk [vmem:[#allocation2 + $0x8] sm:$0xf] %vm597, %v1348
      %1350 = vset.pattern.permute.xlu0 1
      %1351 = vperm.xlu0 %1350, %v448
      %v1352 = vpop.permute.xlu0 %1351
      %v1354 = vadd.f32 %v1352, %v606
      %vm1355 = vcmp.gt.f32.partialorder %v1354, 0.0
      %v1356 = vmul.f32 %v1354, 0.01
      %v1357 = vsel %vm1355, %v1354, %v1356
      %v1358 = vadd.f32 %v1357, %v1270
      %v1359 = vsel %vm1273, %v1358, -inf
      %v1360 = vrot.slane %v1359, 4
      %v1361 = vmax.f32 %v1359, %v1360
      %v1362 = vrot.slane %v1361, 2
      %v1363 = vmax.f32 %v1361, %v1362
      %v1364 = vrot.slane %v1363, 1
      %v1365 = vmax.f32 %v1363, %v1364
      %v1366 = vsub.f32 %v1358, %v1365
      %v1367 = vmul.f32 %v1366, 1.442695
      %v1368 = vpow.pop %v1367
      %v1369 = vsel %vm1273, %v1368, 0.0
      %v1370 = vrot.slane %v1369, 4
      %v1371 = vadd.f32 %v1369, %v1370
      %v1372 = vrot.slane %v1371, 2
      %v1373 = vadd.f32 %v1371, %v1372
      %v1374 = vrot.slane %v1373, 1
      %v1375 = vadd.f32 %v1373, %v1374
      %v1376 = vrcp.pop %v1375
      %v1377 = vmul.f32 %v1368, %v1376
      %v1378 = vpack.c.bf16 %v1377, %v1377
      %1380 = vrot.lane.b32.xlu0 %v1378, 112
      %v1381 = vpop.permute.xlu0 %1380
      %1383 = vrot.lane.b32.xlu0 %v365, 112
      %v1384 = vpop.permute.xlu0 %1383
      %v1386 = vsel %vm523, %v1381, 0
      %v1389 = vsel %vm547, %v1384, 0
      %1391 = vmatprep.subr.bf16.mxu0 0
      %1392 = vmatpush1.bf16.msra.mxu0 %v1389
      %1393 = vmatprep.subr.bf16.mxu0 0
      %1394 = vmatpush1.bf16.msra.mxu0 0
      %1395 = vmatprep.subr.bf16.mxu0 0
      %1396 = vmatpush1.bf16.msra.mxu0 0
      %1397 = vmatprep.subr.bf16.mxu0 0
      %1398 = vmatpush1.bf16.msra.mxu0 0
      %1399 = vmatprep.subr.bf16.mxu0 0
      %1400 = vmatpush1.bf16.msra.mxu0 0
      %1401 = vmatprep.subr.bf16.mxu0 0
      %1402 = vmatpush1.bf16.msra.mxu0 0
      %1403 = vmatprep.subr.bf16.mxu0 0
      %1404 = vmatpush1.bf16.msra.mxu0 0
      %1405 = vmatprep.subr.bf16.mxu0 0
      %1406 = vmatpush1.bf16.msra.mxu0 0
      %1407 = vmatprep.subr.bf16.mxu0 0
      %1408 = vmatpush1.bf16.msra.mxu0 0
      %1409 = vmatprep.subr.bf16.mxu0 0
      %1410 = vmatpush1.bf16.msra.mxu0 0
      %1411 = vmatprep.subr.bf16.mxu0 0
      %1412 = vmatpush1.bf16.msra.mxu0 0
      %1413 = vmatprep.subr.bf16.mxu0 0
      %1414 = vmatpush1.bf16.msra.mxu0 0
      %1415 = vmatprep.subr.bf16.mxu0 0
      %1416 = vmatpush1.bf16.msra.mxu0 0
      %1417 = vmatprep.subr.bf16.mxu0 0
      %1418 = vmatpush1.bf16.msra.mxu0 0
      %1419 = vmatprep.subr.bf16.mxu0 0
      %1420 = vmatpush1.bf16.msra.mxu0 0
      %1421 = vmatprep.subr.bf16.mxu0 0
      %1422 = vmatpush1.bf16.msra.mxu0 0
      %1423 = vmatprep.mubr.bf16.mxu0 0
      %1424 = vmatmul.mubr.bf16.gmra.mrb[0].mxu0 %v1386
      %v1425 = vpop.f32.mrb[0].mxu0
      %v1426 = vadd.f32 0.0, %v1425
      %v1427 = vpop.f32.mrb[0].mxu0
      %v1428 = vpop.f32.mrb[0].mxu0
      %v1429 = vpop.f32.mrb[0].mxu0
      %1430 = vdwg.mxu0
      %vm1431 = vcmp.gt.f32.partialorder %v1426, 0.0
      %v1432 = vmin.f32 %v1426, 0.0
      %v1433 = vmul.f32 %v1432, 1.442695
      %v1434 = vpow.pop %v1433
      %v1435 = vsub.f32 %v1434, 1.0
      %v1436 = vsel %vm1431, %v1426, %v1435
      %v1437 = vpack.c.bf16 %v1436, %v1436
      %1439 = vrot.lane.b32.xlu0 %v1437, 16
      %v1440 = vpop.permute.xlu0 %1439
      %1442 = vst.msk [vmem:[#allocation2 + $0x8] sm:$0xf] %vm692, %v1440
      %1443 = vset.pattern.permute.xlu0 2
      %1444 = vperm.xlu0 %1443, %v448
      %v1445 = vpop.permute.xlu0 %1444
      %v1447 = vadd.f32 %v1445, %v701
      %vm1448 = vcmp.gt.f32.partialorder %v1447, 0.0
      %v1449 = vmul.f32 %v1447, 0.01
      %v1450 = vsel %vm1448, %v1447, %v1449
      %v1451 = vadd.f32 %v1450, %v1270
      %v1452 = vsel %vm1273, %v1451, -inf
      %v1453 = vrot.slane %v1452, 4
      %v1454 = vmax.f32 %v1452, %v1453
      %v1455 = vrot.slane %v1454, 2
      %v1456 = vmax.f32 %v1454, %v1455
      %v1457 = vrot.slane %v1456, 1
      %v1458 = vmax.f32 %v1456, %v1457
      %v1459 = vsub.f32 %v1451, %v1458
      %v1460 = vmul.f32 %v1459, 1.442695
      %v1461 = vpow.pop %v1460
      %v1462 = vsel %vm1273, %v1461, 0.0
      %v1463 = vrot.slane %v1462, 4
      %v1464 = vadd.f32 %v1462, %v1463
      %v1465 = vrot.slane %v1464, 2
      %v1466 = vadd.f32 %v1464, %v1465
      %v1467 = vrot.slane %v1466, 1
      %v1468 = vadd.f32 %v1466, %v1467
      %v1469 = vrcp.pop %v1468
      %v1470 = vmul.f32 %v1461, %v1469
      %v1471 = vpack.c.bf16 %v1470, %v1470
      %1473 = vrot.lane.b32.xlu0 %v1471, 112
      %v1474 = vpop.permute.xlu0 %1473
      %1475 = vrot.lane.b32.xlu0 %v365, 96
      %v1476 = vpop.permute.xlu0 %1475
      %v1478 = vsel %vm523, %v1474, 0
      %v1481 = vsel %vm547, %v1476, 0
      %1483 = vmatprep.subr.bf16.mxu0 0
      %1484 = vmatpush1.bf16.msra.mxu0 %v1481
      %1485 = vmatprep.subr.bf16.mxu0 0
      %1486 = vmatpush1.bf16.msra.mxu0 0
      %1487 = vmatprep.subr.bf16.mxu0 0
      %1488 = vmatpush1.bf16.msra.mxu0 0
      %1489 = vmatprep.subr.bf16.mxu0 0
      %1490 = vmatpush1.bf16.msra.mxu0 0
      %1491 = vmatprep.subr.bf16.mxu0 0
      %1492 = vmatpush1.bf16.msra.mxu0 0
      %1493 = vmatprep.subr.bf16.mxu0 0
      %1494 = vmatpush1.bf16.msra.mxu0 0
      %1495 = vmatprep.subr.bf16.mxu0 0
      %1496 = vmatpush1.bf16.msra.mxu0 0
      %1497 = vmatprep.subr.bf16.mxu0 0
      %1498 = vmatpush1.bf16.msra.mxu0 0
      %1499 = vmatprep.subr.bf16.mxu0 0
      %1500 = vmatpush1.bf16.msra.mxu0 0
      %1501 = vmatprep.subr.bf16.mxu0 0
      %1502 = vmatpush1.bf16.msra.mxu0 0
      %1503 = vmatprep.subr.bf16.mxu0 0
      %1504 = vmatpush1.bf16.msra.mxu0 0
      %1505 = vmatprep.subr.bf16.mxu0 0
      %1506 = vmatpush1.bf16.msra.mxu0 0
      %1507 = vmatprep.subr.bf16.mxu0 0
      %1508 = vmatpush1.bf16.msra.mxu0 0
      %1509 = vmatprep.subr.bf16.mxu0 0
      %1510 = vmatpush1.bf16.msra.mxu0 0
      %1511 = vmatprep.subr.bf16.mxu0 0
      %1512 = vmatpush1.bf16.msra.mxu0 0
      %1513 = vmatprep.subr.bf16.mxu0 0
      %1514 = vmatpush1.bf16.msra.mxu0 0
      %1515 = vmatprep.mubr.bf16.mxu0 0
      %1516 = vmatmul.mubr.bf16.gmra.mrb[0].mxu0 %v1478
      %v1517 = vpop.f32.mrb[0].mxu0
      %v1518 = vadd.f32 0.0, %v1517
      %v1519 = vpop.f32.mrb[0].mxu0
      %v1520 = vpop.f32.mrb[0].mxu0
      %v1521 = vpop.f32.mrb[0].mxu0
      %1522 = vdwg.mxu0
      %vm1523 = vcmp.gt.f32.partialorder %v1518, 0.0
      %v1524 = vmin.f32 %v1518, 0.0
      %v1525 = vmul.f32 %v1524, 1.442695
      %v1526 = vpow.pop %v1525
      %v1527 = vsub.f32 %v1526, 1.0
      %v1528 = vsel %vm1523, %v1518, %v1527
      %v1529 = vpack.c.bf16 %v1528, %v1528
      %1531 = vrot.lane.b32.xlu0 %v1529, 32
      %v1532 = vpop.permute.xlu0 %1531
      %1534 = vst.msk [vmem:[#allocation2 + $0x8] sm:$0xf] %vm786, %v1532
      %1535 = vset.pattern.permute.xlu0 3
      %1536 = vperm.xlu0 %1535, %v448
      %v1537 = vpop.permute.xlu0 %1536
      %v1539 = vadd.f32 %v1537, %v795
      %vm1540 = vcmp.gt.f32.partialorder %v1539, 0.0
      %v1541 = vmul.f32 %v1539, 0.01
      %v1542 = vsel %vm1540, %v1539, %v1541
      %v1543 = vadd.f32 %v1542, %v1270
      %v1544 = vsel %vm1273, %v1543, -inf
      %v1545 = vrot.slane %v1544, 4
      %v1546 = vmax.f32 %v1544, %v1545
      %v1547 = vrot.slane %v1546, 2
      %v1548 = vmax.f32 %v1546, %v1547
      %v1549 = vrot.slane %v1548, 1
      %v1550 = vmax.f32 %v1548, %v1549
      %v1551 = vsub.f32 %v1543, %v1550
      %v1552 = vmul.f32 %v1551, 1.442695
      %v1553 = vpow.pop %v1552
      %v1554 = vsel %vm1273, %v1553, 0.0
      %v1555 = vrot.slane %v1554, 4
      %v1556 = vadd.f32 %v1554, %v1555
      %v1557 = vrot.slane %v1556, 2
      %v1558 = vadd.f32 %v1556, %v1557
      %v1559 = vrot.slane %v1558, 1
      %v1560 = vadd.f32 %v1558, %v1559
      %v1561 = vrcp.pop %v1560
      %v1562 = vmul.f32 %v1553, %v1561
      %v1563 = vpack.c.bf16 %v1562, %v1562
      %1565 = vrot.lane.b32.xlu0 %v1563, 112
      %v1566 = vpop.permute.xlu0 %1565
      %1567 = vrot.lane.b32.xlu0 %v365, 80
      %v1568 = vpop.permute.xlu0 %1567
      %v1570 = vsel %vm523, %v1566, 0
      %v1573 = vsel %vm547, %v1568, 0
      %1575 = vmatprep.subr.bf16.mxu0 0
      %1576 = vmatpush1.bf16.msra.mxu0 %v1573
      %1577 = vmatprep.subr.bf16.mxu0 0
      %1578 = vmatpush1.bf16.msra.mxu0 0
      %1579 = vmatprep.subr.bf16.mxu0 0
      %1580 = vmatpush1.bf16.msra.mxu0 0
      %1581 = vmatprep.subr.bf16.mxu0 0
      %1582 = vmatpush1.bf16.msra.mxu0 0
      %1583 = vmatprep.subr.bf16.mxu0 0
      %1584 = vmatpush1.bf16.msra.mxu0 0
      %1585 = vmatprep.subr.bf16.mxu0 0
      %1586 = vmatpush1.bf16.msra.mxu0 0
      %1587 = vmatprep.subr.bf16.mxu0 0
      %1588 = vmatpush1.bf16.msra.mxu0 0
      %1589 = vmatprep.subr.bf16.mxu0 0
      %1590 = vmatpush1.bf16.msra.mxu0 0
      %1591 = vmatprep.subr.bf16.mxu0 0
      %1592 = vmatpush1.bf16.msra.mxu0 0
      %1593 = vmatprep.subr.bf16.mxu0 0
      %1594 = vmatpush1.bf16.msra.mxu0 0
      %1595 = vmatprep.subr.bf16.mxu0 0
      %1596 = vmatpush1.bf16.msra.mxu0 0
      %1597 = vmatprep.subr.bf16.mxu0 0
      %1598 = vmatpush1.bf16.msra.mxu0 0
      %1599 = vmatprep.subr.bf16.mxu0 0
      %1600 = vmatpush1.bf16.msra.mxu0 0
      %1601 = vmatprep.subr.bf16.mxu0 0
      %1602 = vmatpush1.bf16.msra.mxu0 0
      %1603 = vmatprep.subr.bf16.mxu0 0
      %1604 = vmatpush1.bf16.msra.mxu0 0
      %1605 = vmatprep.subr.bf16.mxu0 0
      %1606 = vmatpush1.bf16.msra.mxu0 0
      %1607 = vmatprep.mubr.bf16.mxu0 0
      %1608 = vmatmul.mubr.bf16.gmra.mrb[0].mxu0 %v1570
      %v1609 = vpop.f32.mrb[0].mxu0
      %v1610 = vadd.f32 0.0, %v1609
      %v1611 = vpop.f32.mrb[0].mxu0
      %v1612 = vpop.f32.mrb[0].mxu0
      %v1613 = vpop.f32.mrb[0].mxu0
      %1614 = vdwg.mxu0
      %vm1615 = vcmp.gt.f32.partialorder %v1610, 0.0
      %v1616 = vmin.f32 %v1610, 0.0
      %v1617 = vmul.f32 %v1616, 1.442695
      %v1618 = vpow.pop %v1617
      %v1619 = vsub.f32 %v1618, 1.0
      %v1620 = vsel %vm1615, %v1610, %v1619
      %v1621 = vpack.c.bf16 %v1620, %v1620
      %1623 = vrot.lane.b32.xlu0 %v1621, 48
      %v1624 = vpop.permute.xlu0 %1623
      %1626 = vst.msk [vmem:[#allocation2 + $0x8] sm:$0xf] %vm880, %v1624
      %1627 = vset.pattern.permute.xlu0 0
      %1628 = vperm.xlu0 %1627, %v451
      %v1629 = vpop.permute.xlu0 %1628
      %v1631 = vadd.f32 %v1629, %v517
      %vm1632 = vcmp.gt.f32.partialorder %v1631, 0.0
      %v1633 = vmul.f32 %v1631, 0.01
      %v1634 = vsel %vm1632, %v1631, %v1633
      %1636 = vrot.lane.b32.xlu0 %v509, 24
      %v1637 = vpop.permute.xlu0 %1636
      %v1639 = vadd.f32 %v1634, %v1637
      %vm1640 = vcmask 261312
      %v1641 = vsel %vm1640, %v1639, -inf
      %v1642 = vrot.slane %v1641, 4
      %v1643 = vmax.f32 %v1641, %v1642
      %v1644 = vrot.slane %v1643, 2
      %v1645 = vmax.f32 %v1643, %v1644
      %v1646 = vrot.slane %v1645, 1
      %v1647 = vmax.f32 %v1645, %v1646
      %v1648 = vsub.f32 %v1639, %v1647
      %v1649 = vmul.f32 %v1648, 1.442695
      %v1650 = vpow.pop %v1649
      %v1651 = vsel %vm1640, %v1650, 0.0
      %v1652 = vrot.slane %v1651, 4
      %v1653 = vadd.f32 %v1651, %v1652
      %v1654 = vrot.slane %v1653, 2
      %v1655 = vadd.f32 %v1653, %v1654
      %v1656 = vrot.slane %v1655, 1
      %v1657 = vadd.f32 %v1655, %v1656
      %v1658 = vrcp.pop %v1657
      %v1659 = vmul.f32 %v1650, %v1658
      %v1660 = vpack.c.bf16 %v1659, %v1659
      %1662 = vrot.lane.b32.xlu0 %v1660, 104
      %v1663 = vpop.permute.xlu0 %1662
      %v1664 = vrot.slane %v365, 4
      %v1666 = vsel %vm523, %v1663, 0
      %v1669 = vsel %vm547, %v1664, 0
      %1671 = vmatprep.subr.bf16.mxu0 0
      %1672 = vmatpush1.bf16.msra.mxu0 %v1669
      %1673 = vmatprep.subr.bf16.mxu0 0
      %1674 = vmatpush1.bf16.msra.mxu0 0
      %1675 = vmatprep.subr.bf16.mxu0 0
      %1676 = vmatpush1.bf16.msra.mxu0 0
      %1677 = vmatprep.subr.bf16.mxu0 0
      %1678 = vmatpush1.bf16.msra.mxu0 0
      %1679 = vmatprep.subr.bf16.mxu0 0
      %1680 = vmatpush1.bf16.msra.mxu0 0
      %1681 = vmatprep.subr.bf16.mxu0 0
      %1682 = vmatpush1.bf16.msra.mxu0 0
      %1683 = vmatprep.subr.bf16.mxu0 0
      %1684 = vmatpush1.bf16.msra.mxu0 0
      %1685 = vmatprep.subr.bf16.mxu0 0
      %1686 = vmatpush1.bf16.msra.mxu0 0
      %1687 = vmatprep.subr.bf16.mxu0 0
      %1688 = vmatpush1.bf16.msra.mxu0 0
      %1689 = vmatprep.subr.bf16.mxu0 0
      %1690 = vmatpush1.bf16.msra.mxu0 0
      %1691 = vmatprep.subr.bf16.mxu0 0
      %1692 = vmatpush1.bf16.msra.mxu0 0
      %1693 = vmatprep.subr.bf16.mxu0 0
      %1694 = vmatpush1.bf16.msra.mxu0 0
      %1695 = vmatprep.subr.bf16.mxu0 0
      %1696 = vmatpush1.bf16.msra.mxu0 0
      %1697 = vmatprep.subr.bf16.mxu0 0
      %1698 = vmatpush1.bf16.msra.mxu0 0
      %1699 = vmatprep.subr.bf16.mxu0 0
      %1700 = vmatpush1.bf16.msra.mxu0 0
      %1701 = vmatprep.subr.bf16.mxu0 0
      %1702 = vmatpush1.bf16.msra.mxu0 0
      %1703 = vmatprep.mubr.bf16.mxu0 0
      %1704 = vmatmul.mubr.bf16.gmra.mrb[0].mxu0 %v1666
      %v1705 = vpop.f32.mrb[0].mxu0
      %v1706 = vadd.f32 0.0, %v1705
      %v1707 = vpop.f32.mrb[0].mxu0
      %v1708 = vpop.f32.mrb[0].mxu0
      %v1709 = vpop.f32.mrb[0].mxu0
      %1710 = vdwg.mxu0
      %vm1711 = vcmp.gt.f32.partialorder %v1706, 0.0
      %v1712 = vmin.f32 %v1706, 0.0
      %v1713 = vmul.f32 %v1712, 1.442695
      %v1714 = vpow.pop %v1713
      %v1715 = vsub.f32 %v1714, 1.0
      %v1716 = vsel %vm1711, %v1706, %v1715
      %v1717 = vpack.c.bf16 %v1716, %v1716
      %v1719 = vrot.slane %v1717, 4
      %1721 = vst.msk [vmem:[#allocation2 + $0x8] sm:$0xf0] %vm976, %v1719
      %1722 = vset.pattern.permute.xlu0 1
      %1723 = vperm.xlu0 %1722, %v451
      %v1724 = vpop.permute.xlu0 %1723
      %v1726 = vadd.f32 %v1724, %v606
      %vm1727 = vcmp.gt.f32.partialorder %v1726, 0.0
      %v1728 = vmul.f32 %v1726, 0.01
      %v1729 = vsel %vm1727, %v1726, %v1728
      %v1730 = vadd.f32 %v1729, %v1637
      %v1731 = vsel %vm1640, %v1730, -inf
      %v1732 = vrot.slane %v1731, 4
      %v1733 = vmax.f32 %v1731, %v1732
      %v1734 = vrot.slane %v1733, 2
      %v1735 = vmax.f32 %v1733, %v1734
      %v1736 = vrot.slane %v1735, 1
      %v1737 = vmax.f32 %v1735, %v1736
      %v1738 = vsub.f32 %v1730, %v1737
      %v1739 = vmul.f32 %v1738, 1.442695
      %v1740 = vpow.pop %v1739
      %v1741 = vsel %vm1640, %v1740, 0.0
      %v1742 = vrot.slane %v1741, 4
      %v1743 = vadd.f32 %v1741, %v1742
      %v1744 = vrot.slane %v1743, 2
      %v1745 = vadd.f32 %v1743, %v1744
      %v1746 = vrot.slane %v1745, 1
      %v1747 = vadd.f32 %v1745, %v1746
      %v1748 = vrcp.pop %v1747
      %v1749 = vmul.f32 %v1740, %v1748
      %v1750 = vpack.c.bf16 %v1749, %v1749
      %1752 = vrot.lane.b32.xlu0 %v1750, 104
      %v1753 = vpop.permute.xlu0 %1752
      %1754 = vrot.lane.b32.xlu0 %v1664, 112
      %v1755 = vpop.permute.xlu0 %1754
      %v1757 = vsel %vm523, %v1753, 0
      %v1760 = vsel %vm547, %v1755, 0
      %1762 = vmatprep.subr.bf16.mxu0 0
      %1763 = vmatpush1.bf16.msra.mxu0 %v1760
      %1764 = vmatprep.subr.bf16.mxu0 0
      %1765 = vmatpush1.bf16.msra.mxu0 0
      %1766 = vmatprep.subr.bf16.mxu0 0
      %1767 = vmatpush1.bf16.msra.mxu0 0
      %1768 = vmatprep.subr.bf16.mxu0 0
      %1769 = vmatpush1.bf16.msra.mxu0 0
      %1770 = vmatprep.subr.bf16.mxu0 0
      %1771 = vmatpush1.bf16.msra.mxu0 0
      %1772 = vmatprep.subr.bf16.mxu0 0
      %1773 = vmatpush1.bf16.msra.mxu0 0
      %1774 = vmatprep.subr.bf16.mxu0 0
      %1775 = vmatpush1.bf16.msra.mxu0 0
      %1776 = vmatprep.subr.bf16.mxu0 0
      %1777 = vmatpush1.bf16.msra.mxu0 0
      %1778 = vmatprep.subr.bf16.mxu0 0
      %1779 = vmatpush1.bf16.msra.mxu0 0
      %1780 = vmatprep.subr.bf16.mxu0 0
      %1781 = vmatpush1.bf16.msra.mxu0 0
      %1782 = vmatprep.subr.bf16.mxu0 0
      %1783 = vmatpush1.bf16.msra.mxu0 0
      %1784 = vmatprep.subr.bf16.mxu0 0
      %1785 = vmatpush1.bf16.msra.mxu0 0
      %1786 = vmatprep.subr.bf16.mxu0 0
      %1787 = vmatpush1.bf16.msra.mxu0 0
      %1788 = vmatprep.subr.bf16.mxu0 0
      %1789 = vmatpush1.bf16.msra.mxu0 0
      %1790 = vmatprep.subr.bf16.mxu0 0
      %1791 = vmatpush1.bf16.msra.mxu0 0
      %1792 = vmatprep.subr.bf16.mxu0 0
      %1793 = vmatpush1.bf16.msra.mxu0 0
      %1794 = vmatprep.mubr.bf16.mxu0 0
      %1795 = vmatmul.mubr.bf16.gmra.mrb[0].mxu0 %v1757
      %v1796 = vpop.f32.mrb[0].mxu0
      %v1797 = vadd.f32 0.0, %v1796
      %v1798 = vpop.f32.mrb[0].mxu0
      %v1799 = vpop.f32.mrb[0].mxu0
      %v1800 = vpop.f32.mrb[0].mxu0
      %1801 = vdwg.mxu0
      %vm1802 = vcmp.gt.f32.partialorder %v1797, 0.0
      %v1803 = vmin.f32 %v1797, 0.0
      %v1804 = vmul.f32 %v1803, 1.442695
      %v1805 = vpow.pop %v1804
      %v1806 = vsub.f32 %v1805, 1.0
      %v1807 = vsel %vm1802, %v1797, %v1806
      %v1808 = vpack.c.bf16 %v1807, %v1807
      %v1810 = vrot.slane %v1808, 4
      %1811 = vrot.lane.b32.xlu0 %v1810, 16
      %v1812 = vpop.permute.xlu0 %1811
      %1814 = vst.msk [vmem:[#allocation2 + $0x8] sm:$0xf0] %vm1070, %v1812
      %1815 = vset.pattern.permute.xlu0 2
      %1816 = vperm.xlu0 %1815, %v451
      %v1817 = vpop.permute.xlu0 %1816
      %v1819 = vadd.f32 %v1817, %v701
      %vm1820 = vcmp.gt.f32.partialorder %v1819, 0.0
      %v1821 = vmul.f32 %v1819, 0.01
      %v1822 = vsel %vm1820, %v1819, %v1821
      %v1823 = vadd.f32 %v1822, %v1637
      %v1824 = vsel %vm1640, %v1823, -inf
      %v1825 = vrot.slane %v1824, 4
      %v1826 = vmax.f32 %v1824, %v1825
      %v1827 = vrot.slane %v1826, 2
      %v1828 = vmax.f32 %v1826, %v1827
      %v1829 = vrot.slane %v1828, 1
      %v1830 = vmax.f32 %v1828, %v1829
      %v1831 = vsub.f32 %v1823, %v1830
      %v1832 = vmul.f32 %v1831, 1.442695
      %v1833 = vpow.pop %v1832
      %v1834 = vsel %vm1640, %v1833, 0.0
      %v1835 = vrot.slane %v1834, 4
      %v1836 = vadd.f32 %v1834, %v1835
      %v1837 = vrot.slane %v1836, 2
      %v1838 = vadd.f32 %v1836, %v1837
      %v1839 = vrot.slane %v1838, 1
      %v1840 = vadd.f32 %v1838, %v1839
      %v1841 = vrcp.pop %v1840
      %v1842 = vmul.f32 %v1833, %v1841
      %v1843 = vpack.c.bf16 %v1842, %v1842
      %1845 = vrot.lane.b32.xlu0 %v1843, 104
      %v1846 = vpop.permute.xlu0 %1845
      %1847 = vrot.lane.b32.xlu0 %v1664, 96
      %v1848 = vpop.permute.xlu0 %1847
      %v1850 = vsel %vm523, %v1846, 0
      %v1853 = vsel %vm547, %v1848, 0
      %1855 = vmatprep.subr.bf16.mxu0 0
      %1856 = vmatpush1.bf16.msra.mxu0 %v1853
      %1857 = vmatprep.subr.bf16.mxu0 0
      %1858 = vmatpush1.bf16.msra.mxu0 0
      %1859 = vmatprep.subr.bf16.mxu0 0
      %1860 = vmatpush1.bf16.msra.mxu0 0
      %1861 = vmatprep.subr.bf16.mxu0 0
      %1862 = vmatpush1.bf16.msra.mxu0 0
      %1863 = vmatprep.subr.bf16.mxu0 0
      %1864 = vmatpush1.bf16.msra.mxu0 0
      %1865 = vmatprep.subr.bf16.mxu0 0
      %1866 = vmatpush1.bf16.msra.mxu0 0
      %1867 = vmatprep.subr.bf16.mxu0 0
      %1868 = vmatpush1.bf16.msra.mxu0 0
      %1869 = vmatprep.subr.bf16.mxu0 0
      %1870 = vmatpush1.bf16.msra.mxu0 0
      %1871 = vmatprep.subr.bf16.mxu0 0
      %1872 = vmatpush1.bf16.msra.mxu0 0
      %1873 = vmatprep.subr.bf16.mxu0 0
      %1874 = vmatpush1.bf16.msra.mxu0 0
      %1875 = vmatprep.subr.bf16.mxu0 0
      %1876 = vmatpush1.bf16.msra.mxu0 0
      %1877 = vmatprep.subr.bf16.mxu0 0
      %1878 = vmatpush1.bf16.msra.mxu0 0
      %1879 = vmatprep.subr.bf16.mxu0 0
      %1880 = vmatpush1.bf16.msra.mxu0 0
      %1881 = vmatprep.subr.bf16.mxu0 0
      %1882 = vmatpush1.bf16.msra.mxu0 0
      %1883 = vmatprep.subr.bf16.mxu0 0
      %1884 = vmatpush1.bf16.msra.mxu0 0
      %1885 = vmatprep.subr.bf16.mxu0 0
      %1886 = vmatpush1.bf16.msra.mxu0 0
      %1887 = vmatprep.mubr.bf16.mxu0 0
      %1888 = vmatmul.mubr.bf16.gmra.mrb[0].mxu0 %v1850
      %v1889 = vpop.f32.mrb[0].mxu0
      %v1890 = vadd.f32 0.0, %v1889
      %v1891 = vpop.f32.mrb[0].mxu0
      %v1892 = vpop.f32.mrb[0].mxu0
      %v1893 = vpop.f32.mrb[0].mxu0
      %1894 = vdwg.mxu0
      %vm1895 = vcmp.gt.f32.partialorder %v1890, 0.0
      %v1896 = vmin.f32 %v1890, 0.0
      %v1897 = vmul.f32 %v1896, 1.442695
      %v1898 = vpow.pop %v1897
      %v1899 = vsub.f32 %v1898, 1.0
      %v1900 = vsel %vm1895, %v1890, %v1899
      %v1901 = vpack.c.bf16 %v1900, %v1900
      %v1903 = vrot.slane %v1901, 4
      %1904 = vrot.lane.b32.xlu0 %v1903, 32
      %v1905 = vpop.permute.xlu0 %1904
      %1907 = vst.msk [vmem:[#allocation2 + $0x8] sm:$0xf0] %vm1164, %v1905
      %1908 = vset.pattern.permute.xlu0 3
      %1909 = vperm.xlu0 %1908, %v451
      %v1910 = vpop.permute.xlu0 %1909
      %v1912 = vadd.f32 %v1910, %v795
      %vm1913 = vcmp.gt.f32.partialorder %v1912, 0.0
      %v1914 = vmul.f32 %v1912, 0.01
      %v1915 = vsel %vm1913, %v1912, %v1914
      %v1916 = vadd.f32 %v1915, %v1637
      %v1917 = vsel %vm1640, %v1916, -inf
      %v1918 = vrot.slane %v1917, 4
      %v1919 = vmax.f32 %v1917, %v1918
      %v1920 = vrot.slane %v1919, 2
      %v1921 = vmax.f32 %v1919, %v1920
      %v1922 = vrot.slane %v1921, 1
      %v1923 = vmax.f32 %v1921, %v1922
      %v1924 = vsub.f32 %v1916, %v1923
      %v1925 = vmul.f32 %v1924, 1.442695
      %v1926 = vpow.pop %v1925
      %v1927 = vsel %vm1640, %v1926, 0.0
      %v1928 = vrot.slane %v1927, 4
      %v1929 = vadd.f32 %v1927, %v1928
      %v1930 = vrot.slane %v1929, 2
      %v1931 = vadd.f32 %v1929, %v1930
      %v1932 = vrot.slane %v1931, 1
      %v1933 = vadd.f32 %v1931, %v1932
      %v1934 = vrcp.pop %v1933
      %v1935 = vmul.f32 %v1926, %v1934
      %v1936 = vpack.c.bf16 %v1935, %v1935
      %1938 = vrot.lane.b32.xlu0 %v1936, 104
      %v1939 = vpop.permute.xlu0 %1938
      %1940 = vrot.lane.b32.xlu0 %v1664, 80
      %v1941 = vpop.permute.xlu0 %1940
      %v1943 = vsel %vm523, %v1939, 0
      %v1946 = vsel %vm547, %v1941, 0
      %1948 = vmatprep.subr.bf16.mxu0 0
      %1949 = vmatpush1.bf16.msra.mxu0 %v1946
      %1950 = vmatprep.subr.bf16.mxu0 0
      %1951 = vmatpush1.bf16.msra.mxu0 0
      %1952 = vmatprep.subr.bf16.mxu0 0
      %1953 = vmatpush1.bf16.msra.mxu0 0
      %1954 = vmatprep.subr.bf16.mxu0 0
      %1955 = vmatpush1.bf16.msra.mxu0 0
      %1956 = vmatprep.subr.bf16.mxu0 0
      %1957 = vmatpush1.bf16.msra.mxu0 0
      %1958 = vmatprep.subr.bf16.mxu0 0
      %1959 = vmatpush1.bf16.msra.mxu0 0
      %1960 = vmatprep.subr.bf16.mxu0 0
      %1961 = vmatpush1.bf16.msra.mxu0 0
      %1962 = vmatprep.subr.bf16.mxu0 0
      %1963 = vmatpush1.bf16.msra.mxu0 0
      %1964 = vmatprep.subr.bf16.mxu0 0
      %1965 = vmatpush1.bf16.msra.mxu0 0
      %1966 = vmatprep.subr.bf16.mxu0 0
      %1967 = vmatpush1.bf16.msra.mxu0 0
      %1968 = vmatprep.subr.bf16.mxu0 0
      %1969 = vmatpush1.bf16.msra.mxu0 0
      %1970 = vmatprep.subr.bf16.mxu0 0
      %1971 = vmatpush1.bf16.msra.mxu0 0
      %1972 = vmatprep.subr.bf16.mxu0 0
      %1973 = vmatpush1.bf16.msra.mxu0 0
      %1974 = vmatprep.subr.bf16.mxu0 0
      %1975 = vmatpush1.bf16.msra.mxu0 0
      %1976 = vmatprep.subr.bf16.mxu0 0
      %1977 = vmatpush1.bf16.msra.mxu0 0
      %1978 = vmatprep.subr.bf16.mxu0 0
      %1979 = vmatpush1.bf16.msra.mxu0 0
      %1980 = vmatprep.mubr.bf16.mxu0 0
      %1981 = vmatmul.mubr.bf16.gmra.mrb[0].mxu0 %v1943
      %v1982 = vpop.f32.mrb[0].mxu0
      %v1983 = vadd.f32 0.0, %v1982
      %v1984 = vpop.f32.mrb[0].mxu0
      %v1985 = vpop.f32.mrb[0].mxu0
      %v1986 = vpop.f32.mrb[0].mxu0
      %1987 = vdwg.mxu0
      %vm1988 = vcmp.gt.f32.partialorder %v1983, 0.0
      %v1989 = vmin.f32 %v1983, 0.0
      %v1990 = vmul.f32 %v1989, 1.442695
      %v1991 = vpow.pop %v1990
      %v1992 = vsub.f32 %v1991, 1.0
      %v1993 = vsel %vm1988, %v1983, %v1992
      %v1994 = vpack.c.bf16 %v1993, %v1993
      %v1996 = vrot.slane %v1994, 4
      %1997 = vrot.lane.b32.xlu0 %v1996, 48
      %v1998 = vpop.permute.xlu0 %1997
      %2000 = vst.msk [vmem:[#allocation2 + $0x8] sm:$0xf0] %vm1258, %v1998
      %v2001 = vld [vmem:[#allocation2] sm:$0xff]
      %v2002 = vld [vmem:[#allocation2 + $0x8] sm:$0xff]
      %v2003 = vld [vmem:[%s4] sm:$0xf]
      %v2004 = vld [vmem:[%s4 + $0x4] sm:$0xf]
      %v2005 = vld [vmem:[%s4 + $0x8] sm:$0xf]
      %v2006 = vld [vmem:[%s4 + $0xc] sm:$0xf]
      %v2007 = vld [vmem:[%s4 + $0x10] sm:$0xf]
      %v2008 = vld [vmem:[%s4 + $0x14] sm:$0xf]
      %v2009 = vld [vmem:[%s4 + $0x18] sm:$0xf]
      %v2010 = vld [vmem:[%s4 + $0x1c] sm:$0xf]
      %v2011 = vld [vmem:[%s5] sm:$0x1]
      %v2013 = vlaneseq
      %v2014 = vshrl.u32 %v2013, 7
      %v2015 = vsub.s32 0, %v2014
      %v2016 = vrot.slane %v2011, %v2015
      %v2026 = vunpack.c.l.b16 %v2003
      %v2027 = vunpack.c.l.b16 %v2004
      %v2028 = vunpack.c.l.b16 %v2005
      %v2029 = vunpack.c.l.b16 %v2006
      %v2030 = vunpack.c.l.b16 %v2007
      %v2031 = vunpack.c.l.b16 %v2008
      %v2032 = vunpack.c.l.b16 %v2009
      %v2033 = vunpack.c.l.b16 %v2010
      %v2034 = vpack.c.b16 %v2027, %v2026
      %v2035 = vpack.c.b16 %v2029, %v2028
      %v2036 = vpack.c.b16 %v2031, %v2030
      %v2037 = vpack.c.b16 %v2033, %v2032
      %v2043 = vsel %vm398, %v2001, 0
      %v2046 = vsel %vm398, %v2002, 0
      %2048 = vmatprep.subr.bf16.mxu0 0
      %2049 = vmatpush1.bf16.msra.mxu0 %v2034
      %2050 = vmatprep.subr.bf16.mxu0 0
      %2051 = vmatpush1.bf16.msra.mxu0 %v2035
      %2052 = vmatprep.subr.bf16.mxu0 0
      %2053 = vmatpush1.bf16.msra.mxu0 %v2036
      %2054 = vmatprep.subr.bf16.mxu0 0
      %2055 = vmatpush1.bf16.msra.mxu0 %v2037
      %2056 = vmatprep.subr.bf16.mxu0 0
      %2057 = vmatpush1.bf16.msra.mxu0 0
      %2058 = vmatprep.subr.bf16.mxu0 0
      %2059 = vmatpush1.bf16.msra.mxu0 0
      %2060 = vmatprep.subr.bf16.mxu0 0
      %2061 = vmatpush1.bf16.msra.mxu0 0
      %2062 = vmatprep.subr.bf16.mxu0 0
      %2063 = vmatpush1.bf16.msra.mxu0 0
      %2064 = vmatprep.subr.bf16.mxu0 0
      %2065 = vmatpush1.bf16.msra.mxu0 0
      %2066 = vmatprep.subr.bf16.mxu0 0
      %2067 = vmatpush1.bf16.msra.mxu0 0
      %2068 = vmatprep.subr.bf16.mxu0 0
      %2069 = vmatpush1.bf16.msra.mxu0 0
      %2070 = vmatprep.subr.bf16.mxu0 0
      %2071 = vmatpush1.bf16.msra.mxu0 0
      %2072 = vmatprep.subr.bf16.mxu0 0
      %2073 = vmatpush1.bf16.msra.mxu0 0
      %2074 = vmatprep.subr.bf16.mxu0 0
      %2075 = vmatpush1.bf16.msra.mxu0 0
      %2076 = vmatprep.subr.bf16.mxu0 0
      %2077 = vmatpush1.bf16.msra.mxu0 0
      %2078 = vmatprep.subr.bf16.mxu0 0
      %2079 = vmatpush1.bf16.msra.mxu0 0
      %2080 = vmatprep.mubr.bf16.mxu0 0
      %2081 = vmatmul.mubr.bf16.gmra.mrb[0].mxu0 %v2043
      %v2082 = vpop.f32.mrb[0].mxu0
      %v2083 = vadd.f32 %v2016, %v2082
      %v2084 = vpop.f32.mrb[0].mxu0
      %v2085 = vpop.f32.mrb[0].mxu0
      %v2086 = vadd.f32 %v2016, %v2085
      %v2087 = vpop.f32.mrb[0].mxu0
      %2088 = vmatprep.mubr.bf16.mxu0 0
      %2089 = vmatmul.mubr.bf16.gmra.mrb[0].mxu0 %v2046
      %v2090 = vpop.f32.mrb[0].mxu0
      %v2091 = vadd.f32 %v2016, %v2090
      %v2092 = vpop.f32.mrb[0].mxu0
      %v2093 = vpop.f32.mrb[0].mxu0
      %v2094 = vadd.f32 %v2016, %v2093
      %v2095 = vpop.f32.mrb[0].mxu0
      %2096 = vdwg.mxu0
      %vm2097 = vcmp.gt.f32.partialorder %v2083, 0.0
      %vm2098 = vcmp.gt.f32.partialorder %v2086, 0.0
      %vm2099 = vcmp.gt.f32.partialorder %v2091, 0.0
      %vm2100 = vcmp.gt.f32.partialorder %v2094, 0.0
      %v2101 = vmin.f32 %v2083, 0.0
      %v2102 = vmin.f32 %v2086, 0.0
      %v2103 = vmin.f32 %v2091, 0.0
      %v2104 = vmin.f32 %v2094, 0.0
      %v2105 = vmul.f32 %v2101, 1.442695
      %v2106 = vpow.pop %v2105
      %v2107 = vmul.f32 %v2102, 1.442695
      %v2108 = vpow.pop %v2107
      %v2109 = vmul.f32 %v2103, 1.442695
      %v2110 = vpow.pop %v2109
      %v2111 = vmul.f32 %v2104, 1.442695
      %v2112 = vpow.pop %v2111
      %v2113 = vsub.f32 %v2106, 1.0
      %v2114 = vsub.f32 %v2108, 1.0
      %v2115 = vsub.f32 %v2110, 1.0
      %v2116 = vsub.f32 %v2112, 1.0
      %v2117 = vsel %vm2097, %v2083, %v2113
      %v2118 = vsel %vm2098, %v2086, %v2114
      %v2119 = vsel %vm2099, %v2091, %v2115
      %v2120 = vsel %vm2100, %v2094, %v2116
      %v2121 = vsel %vm523, %v2117, -inf
      %2122 = vmax.xlane.f32.xlu0 %v2121
      %v2123 = vpop.xlane.xlu0 %2122
      %v2124 = vsel %vm523, %v2118, -inf
      %2125 = vmax.xlane.f32.xlu0 %v2124
      %v2126 = vpop.xlane.xlu0 %2125
      %v2127 = vsel %vm523, %v2119, -inf
      %2128 = vmax.xlane.f32.xlu0 %v2127
      %v2129 = vpop.xlane.xlu0 %2128
      %v2130 = vsel %vm523, %v2120, -inf
      %2131 = vmax.xlane.f32.xlu0 %v2130
      %v2132 = vpop.xlane.xlu0 %2131
      %v2133 = vsub.f32 %v2117, %v2123
      %v2134 = vsub.f32 %v2118, %v2126
      %v2135 = vsub.f32 %v2119, %v2129
      %v2136 = vsub.f32 %v2120, %v2132
      %v2137 = vmul.f32 %v2133, 1.442695
      %v2138 = vpow.pop %v2137
      %v2139 = vmul.f32 %v2134, 1.442695
      %v2140 = vpow.pop %v2139
      %v2141 = vmul.f32 %v2135, 1.442695
      %v2142 = vpow.pop %v2141
      %v2143 = vmul.f32 %v2136, 1.442695
      %v2144 = vpow.pop %v2143
      %v2145 = vsel %vm523, %v2138, 0.0
      %2146 = vadd.xlane.f32.xlu0 %v2145
      %v2147 = vpop.xlane.xlu0 %2146
      %v2148 = vsel %vm523, %v2140, 0.0
      %2149 = vadd.xlane.f32.xlu0 %v2148
      %v2150 = vpop.xlane.xlu0 %2149
      %v2151 = vsel %vm523, %v2142, 0.0
      %2152 = vadd.xlane.f32.xlu0 %v2151
      %v2153 = vpop.xlane.xlu0 %2152
      %v2154 = vsel %vm523, %v2144, 0.0
      %2155 = vadd.xlane.f32.xlu0 %v2154
      %v2156 = vpop.xlane.xlu0 %2155
      %v2157 = vlog2.pop %v2147
      %v2158 = vmul.f32 %v2157, 0.6931472
      %v2159 = vlog2.pop %v2150
      %v2160 = vmul.f32 %v2159, 0.6931472
      %v2161 = vlog2.pop %v2153
      %v2162 = vmul.f32 %v2161, 0.6931472
      %v2163 = vlog2.pop %v2156
      %v2164 = vmul.f32 %v2163, 0.6931472
      %v2165 = vsub.f32 %v2133, %v2158
      %v2166 = vsub.f32 %v2134, %v2160
      %v2167 = vsub.f32 %v2135, %v2162
      %v2168 = vsub.f32 %v2136, %v2164
      %2169 = vst.msk [vmem:[%s275] sm:$0xff] %vm523, %v2165
      %2170 = vst.msk [vmem:[%s275 + $0x8] sm:$0xff] %vm523, %v2166
      %2171 = vst.msk [vmem:[%s275 + $0x10] sm:$0xff] %vm523, %v2167
      %2172 = vst.msk [vmem:[%s275 + $0x18] sm:$0xff] %vm523, %v2168
      %s2173 = smul.u32 4, %s17
      %p2174 = scmp.lt.s32.totalorder %s2173, 7
      %s2175 = scalar_select %p2174, %s2173, 7
      %s2176 = smul.addr %s2175, 8
      %s2177 = scalar_lea.vmem %s6, %s2176
      // Predicated region
      $region45: #{tpu_custom_call.1} parent=43 // pred_check
        %p2178 = pneg %p171
      $region46: #{tpu_custom_call.1} parent=43 // pred_check_branch
        %2180 = sbr.rel (%p2178) target = $region48
      $region47: #{tpu_custom_call.1} parent=43 // pred_region
        %s2181 = smul.u32 4, %s17
      $region48: #{tpu_custom_call.1} parent=43 // pred_fallthru
        _
    $region44: #{tpu_custom_call.1} parent=5 // pred_fallthru
      _
    %p2182 = scmp.le.s32.totalorder 2, %s12
    // Predicated region
    $region49: #{tpu_custom_call.1} parent=5 // pred_check
      %p2183 = pneg %p2182
    $region50: #{tpu_custom_call.1} parent=5 // pred_check_branch
      %2185 = sbr.rel (%p2183) target = $region52
    $region51: #{tpu_custom_call.1} parent=5 // pred_region
      %s2186 = ssub.s32 %s12, 2
      // Predicated region
      $region53: #{tpu_custom_call.1} parent=51 // pred_check
        %p2187 = pneg %p177
      $region54: #{tpu_custom_call.1} parent=51 // pred_check_branch
        %2189 = sbr.rel (%p2187) target = $region56
      $region55: #{tpu_custom_call.1} parent=51 // pred_region
        %s2190 = smul.u32 4, %s18
        %p2191 = scmp.lt.s32.totalorder %s2190, 7
        %s2192 = scalar_select %p2191, %s2190, 7
        %s2193 = smul.addr %s2192, 8
        %s2194 = scalar_lea.vmem %s6, %s2193
      $region56: #{tpu_custom_call.1} parent=51 // pred_fallthru
        _
    $region52: #{tpu_custom_call.1} parent=5 // pred_fallthru
      _
  $region6: #{tpu_custom_call.1} parent=0 // loop_footer
    %s16 = sadd.s32 1, %s12
  $region7: #{tpu_custom_call.1} parent=0 // loop_footer_branch
    %11 = sbr.rel target = $region3
  $region8: #{tpu_custom_call.1} parent=0 // loop_exit
    _

</llo_original>
